<compile_context>
chip_gen: v7x
topology: tpu7x:2x2x1
jax: 0.10.0
libtpu: 0.0.40
codegen_flags: <defaults>
</compile_context>

<pallas_src>
import functools

import jax
import jax.numpy as jnp
from jax.experimental import pallas as pl
from jax.experimental.pallas import tpu as pltpu


# Original layer sizes of the autoencoder (encoder then decoder).
LAYER_DIMS = [784, 128, 64, 12, 3, 12, 64, 128, 784]
NUM_LAYERS = len(LAYER_DIMS) - 1            # 8 Linear layers
RELU_LAYERS = (0, 1, 2, 4, 5, 6)            # ReLU(True) positions; layer 7 -> tanh

IN_DIM = 784
OUT_DIM = 784


def _round_up(n, m):
    return -(-n // m) * m


# ----------------------------------------------------------------------------
# Kernel
# ----------------------------------------------------------------------------
def _ae_kernel(x_ref, *refs):
    """Full (fused) autoencoder forward for one (TB, 784) batch tile.

    refs = (w1, b1, ..., w7, b7, out_ref) after bottleneck fusion:
      dims: 784->128->64->12->12->64->128->784
      ReLU after layers 0..5, tanh after layer 6.
    Weights are bf16 (in, out); biases are f32 (1, out).  x/out are f32.
    """
    out_ref = refs[-1]
    param_refs = refs[:-1]
    n_layers = len(param_refs) // 2

    h = x_ref[...].astype(jnp.bfloat16)                 # (TB, 784) f32 -> bf16
    for layer in range(n_layers):
        w = param_refs[2 * layer][...]                  # bf16 (in, out)
        b = param_refs[2 * layer + 1][...]              # f32  (1, out)
        z = jnp.dot(h, w, preferred_element_type=jnp.float32) + b
        if layer < n_layers - 1:
            h = jnp.maximum(z, 0.0).astype(jnp.bfloat16)
        else:
            h = jnp.tanh(z)                             # f32
    out_ref[...] = h.astype(out_ref.dtype)


# ----------------------------------------------------------------------------
# Wrapper
# ----------------------------------------------------------------------------
@functools.partial(jax.jit, static_argnames=("tb",))
def autoencoder_forward(x, prepped_params, *, tb=512):
    """x: (B, 784) float32.  prepped_params: output of prepare_params()."""
    B, D = x.shape
    assert D == IN_DIM

    # --- static tile-size selection (B and tb are trace-time constants) -----
    tb_eff = max(8, _round_up(min(tb, 1024), 8))     # floor 8, cap 1024 (v7x VMEM)
    tb_eff = min(tb_eff, _round_up(B, 8))            # never exceed the batch
    if pl.cdiv(B, tb_eff) < 2 and B >= 16:           # >= 2 tiles keeps both v7x TCs busy
        tb_eff = min(tb_eff, _round_up(pl.cdiv(B, 2), 8))
    n_tiles = pl.cdiv(B, tb_eff)                     # ragged last tile is masked

    in_specs = [pl.BlockSpec((tb_eff, IN_DIM), lambda i: (i, 0))]
    for p in prepped_params:
        # Weights/biases: full-extent block, constant index map -> DMA'd once
        # and kept resident in VMEM across the whole grid.  (Explicit
        # single-buffering would only reclaim ~0.5 MB of dormant VMEM here.)
        in_specs.append(pl.BlockSpec(p.shape, lambda i: (0, 0)))

    return pl.pallas_call(
        _ae_kernel,
        out_shape=jax.ShapeDtypeStruct((B, OUT_DIM), jnp.float32),
        grid=(n_tiles,),
        in_specs=in_specs,
        out_specs=pl.BlockSpec((tb_eff, OUT_DIM), lambda i: (i, 0)),
        compiler_params=pltpu.CompilerParams(
            dimension_semantics=("parallel",)),
    )(x, *prepped_params)


# ----------------------------------------------------------------------------
# Parameter handling
# ----------------------------------------------------------------------------
def init_params(key):
    """torch.nn.Linear-style init (U[-1/sqrt(in), 1/sqrt(in)]).

    Weights are (in_features, out_features); biases are (1, out_features).
    """
    params = []
    for layer in range(NUM_LAYERS):
        fan_in = LAYER_DIMS[layer]
        fan_out = LAYER_DIMS[layer + 1]
        key, kw, kb = jax.random.split(key, 3)
        bound = 1.0 / jnp.sqrt(jnp.float32(fan_in))
        w = jax.random.uniform(kw, (fan_in, fan_out), jnp.float32, -bound, bound)
        b = jax.random.uniform(kb, (1, fan_out), jnp.float32, -bound, bound)
        params.extend([w, b])
    return params


def prepare_params(params):
    """One-time param prep: fuse the 12->3->12 bottleneck, cast weights to bf16."""
    ws = [params[2 * i] for i in range(NUM_LAYERS)]
    bs = [params[2 * i + 1] for i in range(NUM_LAYERS)]

    # Fuse layer 3 (12->3, no activation) with layer 4 (3->12): exact composition.
    w_fused = ws[3] @ ws[4]
    b_fused = bs[3] @ ws[4] + bs[4]
    ws = ws[:3] + [w_fused] + ws[5:]
    bs = bs[:3] + [b_fused] + bs[5:]

    prepped = []
    for w, b in zip(ws, bs):
        prepped.append(w.astype(jnp.bfloat16))
        prepped.append(b.astype(jnp.float32))
    return prepped


# ----------------------------------------------------------------------------
# References for correctness checking
# ----------------------------------------------------------------------------
def reference_forward(x, params):
    """Pure-f32 JAX reference with the original 8-layer structure (torch semantics)."""
    h = x
    for layer in range(NUM_LAYERS):
        w = params[2 * layer]
        b = params[2 * layer + 1]
        h = h @ w + b
        if layer in RELU_LAYERS:
            h = jnp.maximum(h, 0.0)
        elif layer == NUM_LAYERS - 1:
            h = jnp.tanh(h)
    return h


def replica_reference(x, prepped_params):
    """Pure-JAX mirror of the kernel math (bf16 matmuls, fused bottleneck)."""
    n_layers = len(prepped_params) // 2
    h = x.astype(jnp.bfloat16)
    for layer in range(n_layers):
        w = prepped_params[2 * layer]
        b = prepped_params[2 * layer + 1]
        z = jnp.dot(h, w, preferred_element_type=jnp.float32) + b
        if layer < n_layers - 1:
            h = jnp.maximum(z, 0.0).astype(jnp.bfloat16)
        else:
            h = jnp.tanh(z)
    return h


# ----------------------------------------------------------------------------
if __name__ == "__main__":
    key = jax.random.PRNGKey(0)
    key, kx = jax.random.split(key)

    B = 200                                   # not a tile multiple: exercises the
    x = jax.random.normal(kx, (B, 28 * 28), jnp.float32)  # ragged masked last tile

    params = init_params(key)
    prepped = prepare_params(params)

    # Auto tile selection: B=200 -> tb=104, 2 tiles (second tile ragged/masked).
    out = autoencoder_forward(x, prepped)
    out = jax.block_until_ready(out)
    assert out.shape == (B, 28 * 28)
    assert jnp.all(jnp.isfinite(out)), "non-finite values leaked from masked tile"

    # Tight check vs a pure-JAX replica of the exact kernel math (validates the
    # Pallas tiling / ragged-tile masking / fusion mechanics).
    ref_exact = replica_reference(x, prepped)
    assert jnp.allclose(out, ref_exact, atol=5e-3, rtol=5e-3), \
        "mismatch vs replicated-math reference"

    # Loose check vs the full-f32 torch-equivalent reference (validates semantics;
    # tolerance accounts for bf16 matmul inputs -- the accepted precision contract).
    ref_f32 = reference_forward(x, params)
    assert jnp.allclose(out, ref_f32, atol=5e-2, rtol=5e-2), \
        "mismatch vs f32 reference"

    print("KERNEL_OK")
</pallas_src>

<mosaic_0001>
module attributes {stable_mosaic.version = 11 : i64} {
  func.func @_ae_kernel(%arg0: i32, %arg1: memref<104x784xf32, #tpu.memory_space<vmem>>, %arg2: memref<784x128xbf16, #tpu.memory_space<vmem>>, %arg3: memref<1x128xf32, #tpu.memory_space<vmem>>, %arg4: memref<128x64xbf16, #tpu.memory_space<vmem>>, %arg5: memref<1x64xf32, #tpu.memory_space<vmem>>, %arg6: memref<64x12xbf16, #tpu.memory_space<vmem>>, %arg7: memref<1x12xf32, #tpu.memory_space<vmem>>, %arg8: memref<12x12xbf16, #tpu.memory_space<vmem>>, %arg9: memref<1x12xf32, #tpu.memory_space<vmem>>, %arg10: memref<12x64xbf16, #tpu.memory_space<vmem>>, %arg11: memref<1x64xf32, #tpu.memory_space<vmem>>, %arg12: memref<64x128xbf16, #tpu.memory_space<vmem>>, %arg13: memref<1x128xf32, #tpu.memory_space<vmem>>, %arg14: memref<128x784xbf16, #tpu.memory_space<vmem>>, %arg15: memref<1x784xf32, #tpu.memory_space<vmem>>, %arg16: memref<104x784xf32, #tpu.memory_space<vmem>>) attributes {dimension_semantics = [#tpu.dimension_semantics<parallel>], iteration_bounds = array<i64: 2>, scalar_prefetch = 0 : i64, scratch_operands = 0 : i64, tpu.core_type = #tpu.core_type<tc>, window_params = [{transform_indices = @transform_0, window_bounds = array<i64: 104, 784>}, {pipeline_mode = #tpu.pipeline_mode<synchronous>, transform_indices = @transform_1, window_bounds = array<i64: 784, 128>}, {pipeline_mode = #tpu.pipeline_mode<synchronous>, transform_indices = @transform_2, window_bounds = array<i64: 1, 128>}, {pipeline_mode = #tpu.pipeline_mode<synchronous>, transform_indices = @transform_3, window_bounds = array<i64: 128, 64>}, {pipeline_mode = #tpu.pipeline_mode<synchronous>, transform_indices = @transform_4, window_bounds = array<i64: 1, 64>}, {pipeline_mode = #tpu.pipeline_mode<synchronous>, transform_indices = @transform_5, window_bounds = array<i64: 64, 12>}, {pipeline_mode = #tpu.pipeline_mode<synchronous>, transform_indices = @transform_6, window_bounds = array<i64: 1, 12>}, {pipeline_mode = #tpu.pipeline_mode<synchronous>, transform_indices = @transform_7, window_bounds = array<i64: 12, 12>}, {pipeline_mode = #tpu.pipeline_mode<synchronous>, transform_indices = @transform_8, window_bounds = array<i64: 1, 12>}, {pipeline_mode = #tpu.pipeline_mode<synchronous>, transform_indices = @transform_9, window_bounds = array<i64: 12, 64>}, {pipeline_mode = #tpu.pipeline_mode<synchronous>, transform_indices = @transform_10, window_bounds = array<i64: 1, 64>}, {pipeline_mode = #tpu.pipeline_mode<synchronous>, transform_indices = @transform_11, window_bounds = array<i64: 64, 128>}, {pipeline_mode = #tpu.pipeline_mode<synchronous>, transform_indices = @transform_12, window_bounds = array<i64: 1, 128>}, {pipeline_mode = #tpu.pipeline_mode<synchronous>, transform_indices = @transform_13, window_bounds = array<i64: 128, 784>}, {pipeline_mode = #tpu.pipeline_mode<synchronous>, transform_indices = @transform_14, window_bounds = array<i64: 1, 784>}, {transform_indices = @transform_15, window_bounds = array<i64: 104, 784>}]} {
    %c0 = arith.constant 0 : index
    %c0_0 = arith.constant 0 : index
    %0 = vector.load %arg1[%c0, %c0_0] : memref<104x784xf32, #tpu.memory_space<vmem>>, vector<104x784xf32>
    %1 = arith.truncf %0 : vector<104x784xf32> to vector<104x784xbf16>
    %c0_1 = arith.constant 0 : index
    %c0_2 = arith.constant 0 : index
    %2 = vector.load %arg2[%c0_1, %c0_2] : memref<784x128xbf16, #tpu.memory_space<vmem>>, vector<784x128xbf16>
    %c0_3 = arith.constant 0 : index
    %c0_4 = arith.constant 0 : index
    %3 = vector.load %arg3[%c0_3, %c0_4] : memref<1x128xf32, #tpu.memory_space<vmem>>, vector<1x128xf32>
    %cst = arith.constant dense<0.000000e+00> : vector<104x128xf32>
    %4 = tpu.matmul %1, %2, %cst {dimension_numbers = #tpu.dot_dimension_numbers<[1], [0], [0], [1], [0, 0, 1, 1], [], []>} : vector<104x784xbf16>, vector<784x128xbf16>, vector<104x128xf32> -> vector<104x128xf32>
    %5 = vector.broadcast %3 : vector<1x128xf32> to vector<104x128xf32>
    %6 = arith.addf %4, %5 : vector<104x128xf32>
    %cst_5 = arith.constant 0.000000e+00 : f32
    %7 = vector.broadcast %cst_5 : f32 to vector<104x128xf32>
    %8 = arith.maximumf %6, %7 : vector<104x128xf32>
    %9 = arith.truncf %8 : vector<104x128xf32> to vector<104x128xbf16>
    %c0_6 = arith.constant 0 : index
    %c0_7 = arith.constant 0 : index
    %10 = vector.load %arg4[%c0_6, %c0_7] : memref<128x64xbf16, #tpu.memory_space<vmem>>, vector<128x64xbf16>
    %c0_8 = arith.constant 0 : index
    %c0_9 = arith.constant 0 : index
    %11 = vector.load %arg5[%c0_8, %c0_9] : memref<1x64xf32, #tpu.memory_space<vmem>>, vector<1x64xf32>
    %cst_10 = arith.constant dense<0.000000e+00> : vector<104x64xf32>
    %12 = tpu.matmul %9, %10, %cst_10 {dimension_numbers = #tpu.dot_dimension_numbers<[1], [0], [0], [1], [0, 0, 1, 1], [], []>} : vector<104x128xbf16>, vector<128x64xbf16>, vector<104x64xf32> -> vector<104x64xf32>
    %13 = vector.broadcast %11 : vector<1x64xf32> to vector<104x64xf32>
    %14 = arith.addf %12, %13 : vector<104x64xf32>
    %cst_11 = arith.constant 0.000000e+00 : f32
    %15 = vector.broadcast %cst_11 : f32 to vector<104x64xf32>
    %16 = arith.maximumf %14, %15 : vector<104x64xf32>
    %17 = arith.truncf %16 : vector<104x64xf32> to vector<104x64xbf16>
    %c0_12 = arith.constant 0 : index
    %c0_13 = arith.constant 0 : index
    %18 = vector.load %arg6[%c0_12, %c0_13] : memref<64x12xbf16, #tpu.memory_space<vmem>>, vector<64x12xbf16>
    %c0_14 = arith.constant 0 : index
    %c0_15 = arith.constant 0 : index
    %19 = vector.load %arg7[%c0_14, %c0_15] : memref<1x12xf32, #tpu.memory_space<vmem>>, vector<1x12xf32>
    %cst_16 = arith.constant dense<0.000000e+00> : vector<104x12xf32>
    %20 = tpu.matmul %17, %18, %cst_16 {dimension_numbers = #tpu.dot_dimension_numbers<[1], [0], [0], [1], [0, 0, 1, 1], [], []>} : vector<104x64xbf16>, vector<64x12xbf16>, vector<104x12xf32> -> vector<104x12xf32>
    %21 = vector.broadcast %19 : vector<1x12xf32> to vector<104x12xf32>
    %22 = arith.addf %20, %21 : vector<104x12xf32>
    %cst_17 = arith.constant 0.000000e+00 : f32
    %23 = vector.broadcast %cst_17 : f32 to vector<104x12xf32>
    %24 = arith.maximumf %22, %23 : vector<104x12xf32>
    %25 = arith.truncf %24 : vector<104x12xf32> to vector<104x12xbf16>
    %c0_18 = arith.constant 0 : index
    %c0_19 = arith.constant 0 : index
    %26 = vector.load %arg8[%c0_18, %c0_19] : memref<12x12xbf16, #tpu.memory_space<vmem>>, vector<12x12xbf16>
    %c0_20 = arith.constant 0 : index
    %c0_21 = arith.constant 0 : index
    %27 = vector.load %arg9[%c0_20, %c0_21] : memref<1x12xf32, #tpu.memory_space<vmem>>, vector<1x12xf32>
    %cst_22 = arith.constant dense<0.000000e+00> : vector<104x12xf32>
    %28 = tpu.matmul %25, %26, %cst_22 {dimension_numbers = #tpu.dot_dimension_numbers<[1], [0], [0], [1], [0, 0, 1, 1], [], []>} : vector<104x12xbf16>, vector<12x12xbf16>, vector<104x12xf32> -> vector<104x12xf32>
    %29 = vector.broadcast %27 : vector<1x12xf32> to vector<104x12xf32>
    %30 = arith.addf %28, %29 : vector<104x12xf32>
    %cst_23 = arith.constant 0.000000e+00 : f32
    %31 = vector.broadcast %cst_23 : f32 to vector<104x12xf32>
    %32 = arith.maximumf %30, %31 : vector<104x12xf32>
    %33 = arith.truncf %32 : vector<104x12xf32> to vector<104x12xbf16>
    %c0_24 = arith.constant 0 : index
    %c0_25 = arith.constant 0 : index
    %34 = vector.load %arg10[%c0_24, %c0_25] : memref<12x64xbf16, #tpu.memory_space<vmem>>, vector<12x64xbf16>
    %c0_26 = arith.constant 0 : index
    %c0_27 = arith.constant 0 : index
    %35 = vector.load %arg11[%c0_26, %c0_27] : memref<1x64xf32, #tpu.memory_space<vmem>>, vector<1x64xf32>
    %cst_28 = arith.constant dense<0.000000e+00> : vector<104x64xf32>
    %36 = tpu.matmul %33, %34, %cst_28 {dimension_numbers = #tpu.dot_dimension_numbers<[1], [0], [0], [1], [0, 0, 1, 1], [], []>} : vector<104x12xbf16>, vector<12x64xbf16>, vector<104x64xf32> -> vector<104x64xf32>
    %37 = vector.broadcast %35 : vector<1x64xf32> to vector<104x64xf32>
    %38 = arith.addf %36, %37 : vector<104x64xf32>
    %cst_29 = arith.constant 0.000000e+00 : f32
    %39 = vector.broadcast %cst_29 : f32 to vector<104x64xf32>
    %40 = arith.maximumf %38, %39 : vector<104x64xf32>
    %41 = arith.truncf %40 : vector<104x64xf32> to vector<104x64xbf16>
    %c0_30 = arith.constant 0 : index
    %c0_31 = arith.constant 0 : index
    %42 = vector.load %arg12[%c0_30, %c0_31] : memref<64x128xbf16, #tpu.memory_space<vmem>>, vector<64x128xbf16>
    %c0_32 = arith.constant 0 : index
    %c0_33 = arith.constant 0 : index
    %43 = vector.load %arg13[%c0_32, %c0_33] : memref<1x128xf32, #tpu.memory_space<vmem>>, vector<1x128xf32>
    %cst_34 = arith.constant dense<0.000000e+00> : vector<104x128xf32>
    %44 = tpu.matmul %41, %42, %cst_34 {dimension_numbers = #tpu.dot_dimension_numbers<[1], [0], [0], [1], [0, 0, 1, 1], [], []>} : vector<104x64xbf16>, vector<64x128xbf16>, vector<104x128xf32> -> vector<104x128xf32>
    %45 = vector.broadcast %43 : vector<1x128xf32> to vector<104x128xf32>
    %46 = arith.addf %44, %45 : vector<104x128xf32>
    %cst_35 = arith.constant 0.000000e+00 : f32
    %47 = vector.broadcast %cst_35 : f32 to vector<104x128xf32>
    %48 = arith.maximumf %46, %47 : vector<104x128xf32>
    %49 = arith.truncf %48 : vector<104x128xf32> to vector<104x128xbf16>
    %c0_36 = arith.constant 0 : index
    %c0_37 = arith.constant 0 : index
    %50 = vector.load %arg14[%c0_36, %c0_37] : memref<128x784xbf16, #tpu.memory_space<vmem>>, vector<128x784xbf16>
    %c0_38 = arith.constant 0 : index
    %c0_39 = arith.constant 0 : index
    %51 = vector.load %arg15[%c0_38, %c0_39] : memref<1x784xf32, #tpu.memory_space<vmem>>, vector<1x784xf32>
    %cst_40 = arith.constant dense<0.000000e+00> : vector<104x784xf32>
    %52 = tpu.matmul %49, %50, %cst_40 {dimension_numbers = #tpu.dot_dimension_numbers<[1], [0], [0], [1], [0, 0, 1, 1], [], []>} : vector<104x128xbf16>, vector<128x784xbf16>, vector<104x784xf32> -> vector<104x784xf32>
    %53 = vector.broadcast %51 : vector<1x784xf32> to vector<104x784xf32>
    %54 = arith.addf %52, %53 : vector<104x784xf32>
    %55 = math.tanh %54 : vector<104x784xf32>
    %c0_41 = arith.constant 0 : index
    %c0_42 = arith.constant 0 : index
    %56 = vector.load %arg16[%c0_41, %c0_42] : memref<104x784xf32, #tpu.memory_space<vmem>>, vector<104x784xf32>
    tpu.vector_store %arg16[%c0_41, %c0_42], %55 {strides = array<i32>} : memref<104x784xf32, #tpu.memory_space<vmem>>, vector<104x784xf32>,
    return
  }
  func.func @transform_0(%arg0: i32) -> (i32, i32) {
    %c0_i32 = arith.constant 0 : i32
    %c0_i32_0 = arith.constant 0 : i32
    return %arg0, %c0_i32 : i32, i32
  }
  func.func @transform_1(%arg0: i32) -> (i32, i32) {
    %c0_i32 = arith.constant 0 : i32
    %c0_i32_0 = arith.constant 0 : i32
    %c0_i32_1 = arith.constant 0 : i32
    return %c0_i32, %c0_i32_0 : i32, i32
  }
  func.func @transform_2(%arg0: i32) -> (i32, i32) {
    %c0_i32 = arith.constant 0 : i32
    %c0_i32_0 = arith.constant 0 : i32
    %c0_i32_1 = arith.constant 0 : i32
    return %c0_i32, %c0_i32_0 : i32, i32
  }
  func.func @transform_3(%arg0: i32) -> (i32, i32) {
    %c0_i32 = arith.constant 0 : i32
    %c0_i32_0 = arith.constant 0 : i32
    %c0_i32_1 = arith.constant 0 : i32
    return %c0_i32, %c0_i32_0 : i32, i32
  }
  func.func @transform_4(%arg0: i32) -> (i32, i32) {
    %c0_i32 = arith.constant 0 : i32
    %c0_i32_0 = arith.constant 0 : i32
    %c0_i32_1 = arith.constant 0 : i32
    return %c0_i32, %c0_i32_0 : i32, i32
  }
  func.func @transform_5(%arg0: i32) -> (i32, i32) {
    %c0_i32 = arith.constant 0 : i32
    %c0_i32_0 = arith.constant 0 : i32
    %c0_i32_1 = arith.constant 0 : i32
    return %c0_i32, %c0_i32_0 : i32, i32
  }
  func.func @transform_6(%arg0: i32) -> (i32, i32) {
    %c0_i32 = arith.constant 0 : i32
    %c0_i32_0 = arith.constant 0 : i32
    %c0_i32_1 = arith.constant 0 : i32
    return %c0_i32, %c0_i32_0 : i32, i32
  }
  func.func @transform_7(%arg0: i32) -> (i32, i32) {
    %c0_i32 = arith.constant 0 : i32
    %c0_i32_0 = arith.constant 0 : i32
    %c0_i32_1 = arith.constant 0 : i32
    return %c0_i32, %c0_i32_0 : i32, i32
  }
  func.func @transform_8(%arg0: i32) -> (i32, i32) {
    %c0_i32 = arith.constant 0 : i32
    %c0_i32_0 = arith.constant 0 : i32
    %c0_i32_1 = arith.constant 0 : i32
    return %c0_i32, %c0_i32_0 : i32, i32
  }
  func.func @transform_9(%arg0: i32) -> (i32, i32) {
    %c0_i32 = arith.constant 0 : i32
    %c0_i32_0 = arith.constant 0 : i32
    %c0_i32_1 = arith.constant 0 : i32
    return %c0_i32, %c0_i32_0 : i32, i32
  }
  func.func @transform_10(%arg0: i32) -> (i32, i32) {
    %c0_i32 = arith.constant 0 : i32
    %c0_i32_0 = arith.constant 0 : i32
    %c0_i32_1 = arith.constant 0 : i32
    return %c0_i32, %c0_i32_0 : i32, i32
  }
  func.func @transform_11(%arg0: i32) -> (i32, i32) {
    %c0_i32 = arith.constant 0 : i32
    %c0_i32_0 = arith.constant 0 : i32
    %c0_i32_1 = arith.constant 0 : i32
    return %c0_i32, %c0_i32_0 : i32, i32
  }
  func.func @transform_12(%arg0: i32) -> (i32, i32) {
    %c0_i32 = arith.constant 0 : i32
    %c0_i32_0 = arith.constant 0 : i32
    %c0_i32_1 = arith.constant 0 : i32
    return %c0_i32, %c0_i32_0 : i32, i32
  }
  func.func @transform_13(%arg0: i32) -> (i32, i32) {
    %c0_i32 = arith.constant 0 : i32
    %c0_i32_0 = arith.constant 0 : i32
    %c0_i32_1 = arith.constant 0 : i32
    return %c0_i32, %c0_i32_0 : i32, i32
  }
  func.func @transform_14(%arg0: i32) -> (i32, i32) {
    %c0_i32 = arith.constant 0 : i32
    %c0_i32_0 = arith.constant 0 : i32
    %c0_i32_1 = arith.constant 0 : i32
    return %c0_i32, %c0_i32_0 : i32, i32
  }
  func.func @transform_15(%arg0: i32) -> (i32, i32) {
    %c0_i32 = arith.constant 0 : i32
    %c0_i32_0 = arith.constant 0 : i32
    return %arg0, %c0_i32 : i32, i32
  }
}

</mosaic_0001>

<llo_original>
// kernel: autoencoder_forward.1
$region0: #{autoencoder_forward.1}
  #allocation0 [shape = 'u32[]', space=smem, size = 0x4, offset = 0x4, fixed_abs, tag = 'smem constant byte address 0x4 - core index']
  #allocation1 [shape = 'u32[144,128]{1,0:T(1,128)}', space=vmem, size = 0x12000, scoped, tag = 'internal scratch']
  %s0 = inlined_call_operand.hbm [shape: f32[200,784], index: 0, kind: input, shape index: {}]
  %s1 = inlined_call_operand.vmem [shape: bf16[784,128], index: 1, kind: input, shape index: {}]
  %s2 = inlined_call_operand.vmem [shape: f32[1,128], index: 2, kind: input, shape index: {}]
  %s3 = inlined_call_operand.vmem [shape: bf16[128,64], index: 3, kind: input, shape index: {}]
  %s4 = inlined_call_operand.vmem [shape: f32[1,64], index: 4, kind: input, shape index: {}]
  %s5 = inlined_call_operand.vmem [shape: bf16[64,12], index: 5, kind: input, shape index: {}]
  %s6 = inlined_call_operand.vmem [shape: f32[1,12], index: 6, kind: input, shape index: {}]
  %s7 = inlined_call_operand.vmem [shape: bf16[12,12], index: 7, kind: input, shape index: {}]
  %s8 = inlined_call_operand.vmem [shape: f32[1,12], index: 8, kind: input, shape index: {}]
  %s9 = inlined_call_operand.vmem [shape: bf16[12,64], index: 9, kind: input, shape index: {}]
  %s10 = inlined_call_operand.vmem [shape: f32[1,64], index: 10, kind: input, shape index: {}]
  %s11 = inlined_call_operand.vmem [shape: bf16[64,128], index: 11, kind: input, shape index: {}]
  %s12 = inlined_call_operand.vmem [shape: f32[1,128], index: 12, kind: input, shape index: {}]
  %s13 = inlined_call_operand.vmem [shape: bf16[128,784], index: 13, kind: input, shape index: {}]
  %s14 = inlined_call_operand.vmem [shape: f32[1,784], index: 14, kind: input, shape index: {}]
  %s15 = inlined_call_operand.hbm [shape: f32[200,784], index: 15, kind: output, shape index: {}]
  %s16 = sld [smem:[#allocation0]]
  $region97: #{autoencoder_forward.1} parent=0
    _
  %s18 = ssub.s32 1, %s16
  %s19 = scalar_select 0, %s18, %s16
  $region1: #{autoencoder_forward.1} parent=0
    #allocation2 [shape = 'u8[745472]{0}', space=vmem, size = 0xb6000, scoped, tag = 'input window, operand 0']
    #allocation3 [shape = 's32[2]{0}', space=sflag, size = 0x8, scoped, tag = 'scoped memory for autoencoder_forward.1']
    #allocation4 [shape = 's32[2]{0}', space=sflag, size = 0x8, scoped, tag = 'scoped memory for autoencoder_forward.1']
    #allocation5 [shape = 'u8[745472]{0}', space=vmem, size = 0xb6000, scoped, tag = 'output window, operand 0']
    %20 = vsyncpa [#allocation3], 0
    %s21 = scalar_lea.sflag [#allocation3], 1
    %22 = vsyncpa %s21, 0
    %23 = vsyncpa [#allocation4], 0
    %s24 = scalar_lea.sflag [#allocation4], 1
    %25 = vsyncpa %s24, 0
    loop: start=0, step=1, limit=4
    $region2: #{autoencoder_forward.1} parent=1 // loop_pre_header
      _
    $region3: #{autoencoder_forward.1} parent=1 // loop_header
      %s27 = sphi 0, %s31
      %p28 = scmp.ge.s32.totalorder %s27, 4
      %s37 = sphi 0, %s39
      %s40 = sphi 0, %s37
      %s41 = sphi 0, %s40
      %s57 = sphi 0, %s41
      %s61 = sphi 0, %s61
      %s63 = sphi 0, %s61
      %s64 = sphi 0, %s63
      %s78 = sphi 0, %s64
      %s82 = sphi 0, %s82
      %s84 = sphi 0, %s82
      %s85 = sphi 0, %s84
      %s99 = sphi 0, %s85
      %s103 = sphi 0, %s103
      %s105 = sphi 0, %s103
      %s106 = sphi 0, %s105
      %s120 = sphi 0, %s106
      %s124 = sphi 0, %s124
      %s126 = sphi 0, %s124
      %s127 = sphi 0, %s126
      %s141 = sphi 0, %s127
      %s145 = sphi 0, %s145
      %s147 = sphi 0, %s145
      %s148 = sphi 0, %s147
      %s162 = sphi 0, %s148
      %s166 = sphi 0, %s166
      %s168 = sphi 0, %s166
      %s169 = sphi 0, %s168
      %s183 = sphi 0, %s169
      %s187 = sphi 0, %s187
      %s189 = sphi 0, %s187
      %s190 = sphi 0, %s189
      %s204 = sphi 0, %s190
      %s208 = sphi 0, %s208
      %s210 = sphi 0, %s208
      %s211 = sphi 0, %s210
      %s225 = sphi 0, %s211
      %s229 = sphi 0, %s229
      %s231 = sphi 0, %s229
      %s232 = sphi 0, %s231
      %s246 = sphi 0, %s232
      %s250 = sphi 0, %s250
      %s252 = sphi 0, %s250
      %s253 = sphi 0, %s252
      %s267 = sphi 0, %s253
      %s271 = sphi 0, %s271
      %s273 = sphi 0, %s271
      %s274 = sphi 0, %s273
      %s288 = sphi 0, %s274
      %s292 = sphi 0, %s292
      %s294 = sphi 0, %s292
      %s295 = sphi 0, %s294
      %s309 = sphi 0, %s295
      %s313 = sphi 0, %s313
      %s315 = sphi 0, %s313
      %s316 = sphi 0, %s315
      %s330 = sphi 0, %s316
      %s334 = sphi 0, %s334
      %s336 = sphi 0, %s334
      %s337 = sphi 0, %s336
      %s351 = sphi 0, %s337
      %s357 = sphi 0, %s359
      %s360 = sphi 0, %s357
      %s361 = sphi 0, %s360
      %s377 = sphi 0, %s361
    $region4: #{autoencoder_forward.1} parent=1 // loop_header_branch
      %30 = sbr.rel (%p28) target = $region8
    $region5: #{autoencoder_forward.1} parent=1 // loop_body
      %s32 = ssub.s32 %s27, 1
      %s33 = ssub.s32 %s27, 2
      %s34 = sadd.s32 %s27, 1
      %s35 = ssub.s32 %s27, %s34
      %p36 = scmp.eq.s32.totalorder %s35, 0
      %s38 = sadd.s32 %s37, 1
      %s39 = scalar_select %p36, %s37, %s38
      %p42 = pneg %p36
      %p43 = scmp.eq.s32.totalorder %s27, 1
      %p44 = por %p42, %p43
      %p45 = scmp.ne.s32.totalorder %s37, %s40
      %p46 = scmp.eq.s32.totalorder %s27, 0
      %p47 = por %p45, %p46
      %p48 = scmp.ne.s32.totalorder %s37, %s40
      %p49 = scmp.eq.s32.totalorder %s32, 1
      %p50 = por %p48, %p49
      %p51 = scmp.ne.s32.totalorder %s40, %s41
      %p52 = scmp.eq.s32.totalorder %s32, 0
      %p53 = por %p51, %p52
      %p54 = scmp.ne.s32.totalorder %s40, %s41
      %p55 = scmp.eq.s32.totalorder %s33, 1
      %p56 = por %p54, %p55
      %p58 = scmp.ne.s32.totalorder %s41, %s57
      %p59 = scmp.eq.s32.totalorder %s33, 0
      %p60 = por %p58, %p59
      %s62 = sadd.s32 %s61, 1
      %p65 = scmp.eq.s32.totalorder %s27, 1
      %p66 = scmp.ne.s32.totalorder %s61, %s63
      %p67 = scmp.eq.s32.totalorder %s27, 0
      %p68 = por %p66, %p67
      %p69 = scmp.ne.s32.totalorder %s61, %s63
      %p70 = scmp.eq.s32.totalorder %s32, 1
      %p71 = por %p69, %p70
      %p72 = scmp.ne.s32.totalorder %s63, %s64
      %p73 = scmp.eq.s32.totalorder %s32, 0
      %p74 = por %p72, %p73
      %p75 = scmp.ne.s32.totalorder %s63, %s64
      %p76 = scmp.eq.s32.totalorder %s33, 1
      %p77 = por %p75, %p76
      %p79 = scmp.ne.s32.totalorder %s64, %s78
      %p80 = scmp.eq.s32.totalorder %s33, 0
      %p81 = por %p79, %p80
      %s83 = sadd.s32 %s82, 1
      %p86 = scmp.eq.s32.totalorder %s27, 1
      %p87 = scmp.ne.s32.totalorder %s82, %s84
      %p88 = scmp.eq.s32.totalorder %s27, 0
      %p89 = por %p87, %p88
      %p90 = scmp.ne.s32.totalorder %s82, %s84
      %p91 = scmp.eq.s32.totalorder %s32, 1
      %p92 = por %p90, %p91
      %p93 = scmp.ne.s32.totalorder %s84, %s85
      %p94 = scmp.eq.s32.totalorder %s32, 0
      %p95 = por %p93, %p94
      %p96 = scmp.ne.s32.totalorder %s84, %s85
      %p97 = scmp.eq.s32.totalorder %s33, 1
      %p98 = por %p96, %p97
      %p100 = scmp.ne.s32.totalorder %s85, %s99
      %p101 = scmp.eq.s32.totalorder %s33, 0
      %p102 = por %p100, %p101
      %s104 = sadd.s32 %s103, 1
      %p107 = scmp.eq.s32.totalorder %s27, 1
      %p108 = scmp.ne.s32.totalorder %s103, %s105
      %p109 = scmp.eq.s32.totalorder %s27, 0
      %p110 = por %p108, %p109
      %p111 = scmp.ne.s32.totalorder %s103, %s105
      %p112 = scmp.eq.s32.totalorder %s32, 1
      %p113 = por %p111, %p112
      %p114 = scmp.ne.s32.totalorder %s105, %s106
      %p115 = scmp.eq.s32.totalorder %s32, 0
      %p116 = por %p114, %p115
      %p117 = scmp.ne.s32.totalorder %s105, %s106
      %p118 = scmp.eq.s32.totalorder %s33, 1
      %p119 = por %p117, %p118
      %p121 = scmp.ne.s32.totalorder %s106, %s120
      %p122 = scmp.eq.s32.totalorder %s33, 0
      %p123 = por %p121, %p122
      %s125 = sadd.s32 %s124, 1
      %p128 = scmp.eq.s32.totalorder %s27, 1
      %p129 = scmp.ne.s32.totalorder %s124, %s126
      %p130 = scmp.eq.s32.totalorder %s27, 0
      %p131 = por %p129, %p130
      %p132 = scmp.ne.s32.totalorder %s124, %s126
      %p133 = scmp.eq.s32.totalorder %s32, 1
      %p134 = por %p132, %p133
      %p135 = scmp.ne.s32.totalorder %s126, %s127
      %p136 = scmp.eq.s32.totalorder %s32, 0
      %p137 = por %p135, %p136
      %p138 = scmp.ne.s32.totalorder %s126, %s127
      %p139 = scmp.eq.s32.totalorder %s33, 1
      %p140 = por %p138, %p139
      %p142 = scmp.ne.s32.totalorder %s127, %s141
      %p143 = scmp.eq.s32.totalorder %s33, 0
      %p144 = por %p142, %p143
      %s146 = sadd.s32 %s145, 1
      %p149 = scmp.eq.s32.totalorder %s27, 1
      %p150 = scmp.ne.s32.totalorder %s145, %s147
      %p151 = scmp.eq.s32.totalorder %s27, 0
      %p152 = por %p150, %p151
      %p153 = scmp.ne.s32.totalorder %s145, %s147
      %p154 = scmp.eq.s32.totalorder %s32, 1
      %p155 = por %p153, %p154
      %p156 = scmp.ne.s32.totalorder %s147, %s148
      %p157 = scmp.eq.s32.totalorder %s32, 0
      %p158 = por %p156, %p157
      %p159 = scmp.ne.s32.totalorder %s147, %s148
      %p160 = scmp.eq.s32.totalorder %s33, 1
      %p161 = por %p159, %p160
      %p163 = scmp.ne.s32.totalorder %s148, %s162
      %p164 = scmp.eq.s32.totalorder %s33, 0
      %p165 = por %p163, %p164
      %s167 = sadd.s32 %s166, 1
      %p170 = scmp.eq.s32.totalorder %s27, 1
      %p171 = scmp.ne.s32.totalorder %s166, %s168
      %p172 = scmp.eq.s32.totalorder %s27, 0
      %p173 = por %p171, %p172
      %p174 = scmp.ne.s32.totalorder %s166, %s168
      %p175 = scmp.eq.s32.totalorder %s32, 1
      %p176 = por %p174, %p175
      %p177 = scmp.ne.s32.totalorder %s168, %s169
      %p178 = scmp.eq.s32.totalorder %s32, 0
      %p179 = por %p177, %p178
      %p180 = scmp.ne.s32.totalorder %s168, %s169
      %p181 = scmp.eq.s32.totalorder %s33, 1
      %p182 = por %p180, %p181
      %p184 = scmp.ne.s32.totalorder %s169, %s183
      %p185 = scmp.eq.s32.totalorder %s33, 0
      %p186 = por %p184, %p185
      %s188 = sadd.s32 %s187, 1
      %p191 = scmp.eq.s32.totalorder %s27, 1
      %p192 = scmp.ne.s32.totalorder %s187, %s189
      %p193 = scmp.eq.s32.totalorder %s27, 0
      %p194 = por %p192, %p193
      %p195 = scmp.ne.s32.totalorder %s187, %s189
      %p196 = scmp.eq.s32.totalorder %s32, 1
      %p197 = por %p195, %p196
      %p198 = scmp.ne.s32.totalorder %s189, %s190
      %p199 = scmp.eq.s32.totalorder %s32, 0
      %p200 = por %p198, %p199
      %p201 = scmp.ne.s32.totalorder %s189, %s190
      %p202 = scmp.eq.s32.totalorder %s33, 1
      %p203 = por %p201, %p202
      %p205 = scmp.ne.s32.totalorder %s190, %s204
      %p206 = scmp.eq.s32.totalorder %s33, 0
      %p207 = por %p205, %p206
      %s209 = sadd.s32 %s208, 1
      %p212 = scmp.eq.s32.totalorder %s27, 1
      %p213 = scmp.ne.s32.totalorder %s208, %s210
      %p214 = scmp.eq.s32.totalorder %s27, 0
      %p215 = por %p213, %p214
      %p216 = scmp.ne.s32.totalorder %s208, %s210
      %p217 = scmp.eq.s32.totalorder %s32, 1
      %p218 = por %p216, %p217
      %p219 = scmp.ne.s32.totalorder %s210, %s211
      %p220 = scmp.eq.s32.totalorder %s32, 0
      %p221 = por %p219, %p220
      %p222 = scmp.ne.s32.totalorder %s210, %s211
      %p223 = scmp.eq.s32.totalorder %s33, 1
      %p224 = por %p222, %p223
      %p226 = scmp.ne.s32.totalorder %s211, %s225
      %p227 = scmp.eq.s32.totalorder %s33, 0
      %p228 = por %p226, %p227
      %s230 = sadd.s32 %s229, 1
      %p233 = scmp.eq.s32.totalorder %s27, 1
      %p234 = scmp.ne.s32.totalorder %s229, %s231
      %p235 = scmp.eq.s32.totalorder %s27, 0
      %p236 = por %p234, %p235
      %p237 = scmp.ne.s32.totalorder %s229, %s231
      %p238 = scmp.eq.s32.totalorder %s32, 1
      %p239 = por %p237, %p238
      %p240 = scmp.ne.s32.totalorder %s231, %s232
      %p241 = scmp.eq.s32.totalorder %s32, 0
      %p242 = por %p240, %p241
      %p243 = scmp.ne.s32.totalorder %s231, %s232
      %p244 = scmp.eq.s32.totalorder %s33, 1
      %p245 = por %p243, %p244
      %p247 = scmp.ne.s32.totalorder %s232, %s246
      %p248 = scmp.eq.s32.totalorder %s33, 0
      %p249 = por %p247, %p248
      %s251 = sadd.s32 %s250, 1
      %p254 = scmp.eq.s32.totalorder %s27, 1
      %p255 = scmp.ne.s32.totalorder %s250, %s252
      %p256 = scmp.eq.s32.totalorder %s27, 0
      %p257 = por %p255, %p256
      %p258 = scmp.ne.s32.totalorder %s250, %s252
      %p259 = scmp.eq.s32.totalorder %s32, 1
      %p260 = por %p258, %p259
      %p261 = scmp.ne.s32.totalorder %s252, %s253
      %p262 = scmp.eq.s32.totalorder %s32, 0
      %p263 = por %p261, %p262
      %p264 = scmp.ne.s32.totalorder %s252, %s253
      %p265 = scmp.eq.s32.totalorder %s33, 1
      %p266 = por %p264, %p265
      %p268 = scmp.ne.s32.totalorder %s253, %s267
      %p269 = scmp.eq.s32.totalorder %s33, 0
      %p270 = por %p268, %p269
      %s272 = sadd.s32 %s271, 1
      %p275 = scmp.eq.s32.totalorder %s27, 1
      %p276 = scmp.ne.s32.totalorder %s271, %s273
      %p277 = scmp.eq.s32.totalorder %s27, 0
      %p278 = por %p276, %p277
      %p279 = scmp.ne.s32.totalorder %s271, %s273
      %p280 = scmp.eq.s32.totalorder %s32, 1
      %p281 = por %p279, %p280
      %p282 = scmp.ne.s32.totalorder %s273, %s274
      %p283 = scmp.eq.s32.totalorder %s32, 0
      %p284 = por %p282, %p283
      %p285 = scmp.ne.s32.totalorder %s273, %s274
      %p286 = scmp.eq.s32.totalorder %s33, 1
      %p287 = por %p285, %p286
      %p289 = scmp.ne.s32.totalorder %s274, %s288
      %p290 = scmp.eq.s32.totalorder %s33, 0
      %p291 = por %p289, %p290
      %s293 = sadd.s32 %s292, 1
      %p296 = scmp.eq.s32.totalorder %s27, 1
      %p297 = scmp.ne.s32.totalorder %s292, %s294
      %p298 = scmp.eq.s32.totalorder %s27, 0
      %p299 = por %p297, %p298
      %p300 = scmp.ne.s32.totalorder %s292, %s294
      %p301 = scmp.eq.s32.totalorder %s32, 1
      %p302 = por %p300, %p301
      %p303 = scmp.ne.s32.totalorder %s294, %s295
      %p304 = scmp.eq.s32.totalorder %s32, 0
      %p305 = por %p303, %p304
      %p306 = scmp.ne.s32.totalorder %s294, %s295
      %p307 = scmp.eq.s32.totalorder %s33, 1
      %p308 = por %p306, %p307
      %p310 = scmp.ne.s32.totalorder %s295, %s309
      %p311 = scmp.eq.s32.totalorder %s33, 0
      %p312 = por %p310, %p311
      %s314 = sadd.s32 %s313, 1
      %p317 = scmp.eq.s32.totalorder %s27, 1
      %p318 = scmp.ne.s32.totalorder %s313, %s315
      %p319 = scmp.eq.s32.totalorder %s27, 0
      %p320 = por %p318, %p319
      %p321 = scmp.ne.s32.totalorder %s313, %s315
      %p322 = scmp.eq.s32.totalorder %s32, 1
      %p323 = por %p321, %p322
      %p324 = scmp.ne.s32.totalorder %s315, %s316
      %p325 = scmp.eq.s32.totalorder %s32, 0
      %p326 = por %p324, %p325
      %p327 = scmp.ne.s32.totalorder %s315, %s316
      %p328 = scmp.eq.s32.totalorder %s33, 1
      %p329 = por %p327, %p328
      %p331 = scmp.ne.s32.totalorder %s316, %s330
      %p332 = scmp.eq.s32.totalorder %s33, 0
      %p333 = por %p331, %p332
      %s335 = sadd.s32 %s334, 1
      %p338 = scmp.eq.s32.totalorder %s27, 1
      %p339 = scmp.ne.s32.totalorder %s334, %s336
      %p340 = scmp.eq.s32.totalorder %s27, 0
      %p341 = por %p339, %p340
      %p342 = scmp.ne.s32.totalorder %s334, %s336
      %p343 = scmp.eq.s32.totalorder %s32, 1
      %p344 = por %p342, %p343
      %p345 = scmp.ne.s32.totalorder %s336, %s337
      %p346 = scmp.eq.s32.totalorder %s32, 0
      %p347 = por %p345, %p346
      %p348 = scmp.ne.s32.totalorder %s336, %s337
      %p349 = scmp.eq.s32.totalorder %s33, 1
      %p350 = por %p348, %p349
      %p352 = scmp.ne.s32.totalorder %s337, %s351
      %p353 = scmp.eq.s32.totalorder %s33, 0
      %p354 = por %p352, %p353
      %s355 = ssub.s32 %s27, %s34
      %p356 = scmp.eq.s32.totalorder %s355, 0
      %s358 = sadd.s32 %s357, 1
      %s359 = scalar_select %p356, %s357, %s358
      %p362 = pneg %p356
      %p363 = scmp.eq.s32.totalorder %s27, 1
      %p364 = por %p362, %p363
      %p365 = scmp.ne.s32.totalorder %s357, %s360
      %p366 = scmp.eq.s32.totalorder %s27, 0
      %p367 = por %p365, %p366
      %p368 = scmp.ne.s32.totalorder %s357, %s360
      %p369 = scmp.eq.s32.totalorder %s32, 1
      %p370 = por %p368, %p369
      %p371 = scmp.ne.s32.totalorder %s360, %s361
      %p372 = scmp.eq.s32.totalorder %s32, 0
      %p373 = por %p371, %p372
      %p374 = scmp.ne.s32.totalorder %s360, %s361
      %p375 = scmp.eq.s32.totalorder %s33, 1
      %p376 = por %p374, %p375
      %p378 = scmp.ne.s32.totalorder %s361, %s377
      %p379 = scmp.eq.s32.totalorder %s33, 0
      %p380 = por %p378, %p379
      %p381 = scmp.le.s32.totalorder 1, %s27
      %p382 = scmp.lt.s32.totalorder %s27, 3
      %p383 = pnand %p381, %p382
      %p384 = pneg %p383
      // Predicated region
      $region9: #{autoencoder_forward.1} parent=5 // pred_check
        _
      $region10: #{autoencoder_forward.1} parent=5 // pred_check_branch
        %386 = sbr.rel (%p383) target = $region12
      $region11: #{autoencoder_forward.1} parent=5 // pred_region
        %s387 = ssub.s32 %s27, 1
        // Predicated region
        $region13: #{autoencoder_forward.1} parent=11 // pred_check
          %p388 = pneg %p74
        $region14: #{autoencoder_forward.1} parent=11 // pred_check_branch
          %390 = sbr.rel (%p388) target = $region16
        $region15: #{autoencoder_forward.1} parent=11 // pred_region
          _
        $region16: #{autoencoder_forward.1} parent=11 // pred_fallthru
          _
        // Predicated region
        $region17: #{autoencoder_forward.1} parent=11 // pred_check
          %p391 = pneg %p95
        $region18: #{autoencoder_forward.1} parent=11 // pred_check_branch
          %393 = sbr.rel (%p391) target = $region20
        $region19: #{autoencoder_forward.1} parent=11 // pred_region
          _
        $region20: #{autoencoder_forward.1} parent=11 // pred_fallthru
          _
        // Predicated region
        $region21: #{autoencoder_forward.1} parent=11 // pred_check
          %p394 = pneg %p116
        $region22: #{autoencoder_forward.1} parent=11 // pred_check_branch
          %396 = sbr.rel (%p394) target = $region24
        $region23: #{autoencoder_forward.1} parent=11 // pred_region
          _
        $region24: #{autoencoder_forward.1} parent=11 // pred_fallthru
          _
        // Predicated region
        $region25: #{autoencoder_forward.1} parent=11 // pred_check
          %p397 = pneg %p137
        $region26: #{autoencoder_forward.1} parent=11 // pred_check_branch
          %399 = sbr.rel (%p397) target = $region28
        $region27: #{autoencoder_forward.1} parent=11 // pred_region
          _
        $region28: #{autoencoder_forward.1} parent=11 // pred_fallthru
          _
        // Predicated region
        $region29: #{autoencoder_forward.1} parent=11 // pred_check
          %p400 = pneg %p158
        $region30: #{autoencoder_forward.1} parent=11 // pred_check_branch
          %402 = sbr.rel (%p400) target = $region32
        $region31: #{autoencoder_forward.1} parent=11 // pred_region
          _
        $region32: #{autoencoder_forward.1} parent=11 // pred_fallthru
          _
        // Predicated region
        $region33: #{autoencoder_forward.1} parent=11 // pred_check
          %p403 = pneg %p179
        $region34: #{autoencoder_forward.1} parent=11 // pred_check_branch
          %405 = sbr.rel (%p403) target = $region36
        $region35: #{autoencoder_forward.1} parent=11 // pred_region
          _
        $region36: #{autoencoder_forward.1} parent=11 // pred_fallthru
          _
        // Predicated region
        $region37: #{autoencoder_forward.1} parent=11 // pred_check
          %p406 = pneg %p200
        $region38: #{autoencoder_forward.1} parent=11 // pred_check_branch
          %408 = sbr.rel (%p406) target = $region40
        $region39: #{autoencoder_forward.1} parent=11 // pred_region
          _
        $region40: #{autoencoder_forward.1} parent=11 // pred_fallthru
          _
        // Predicated region
        $region41: #{autoencoder_forward.1} parent=11 // pred_check
          %p409 = pneg %p221
        $region42: #{autoencoder_forward.1} parent=11 // pred_check_branch
          %411 = sbr.rel (%p409) target = $region44
        $region43: #{autoencoder_forward.1} parent=11 // pred_region
          _
        $region44: #{autoencoder_forward.1} parent=11 // pred_fallthru
          _
        // Predicated region
        $region45: #{autoencoder_forward.1} parent=11 // pred_check
          %p412 = pneg %p242
        $region46: #{autoencoder_forward.1} parent=11 // pred_check_branch
          %414 = sbr.rel (%p412) target = $region48
        $region47: #{autoencoder_forward.1} parent=11 // pred_region
          _
        $region48: #{autoencoder_forward.1} parent=11 // pred_fallthru
          _
        // Predicated region
        $region49: #{autoencoder_forward.1} parent=11 // pred_check
          %p415 = pneg %p263
        $region50: #{autoencoder_forward.1} parent=11 // pred_check_branch
          %417 = sbr.rel (%p415) target = $region52
        $region51: #{autoencoder_forward.1} parent=11 // pred_region
          _
        $region52: #{autoencoder_forward.1} parent=11 // pred_fallthru
          _
        // Predicated region
        $region53: #{autoencoder_forward.1} parent=11 // pred_check
          %p418 = pneg %p284
        $region54: #{autoencoder_forward.1} parent=11 // pred_check_branch
          %420 = sbr.rel (%p418) target = $region56
        $region55: #{autoencoder_forward.1} parent=11 // pred_region
          _
        $region56: #{autoencoder_forward.1} parent=11 // pred_fallthru
          _
        // Predicated region
        $region57: #{autoencoder_forward.1} parent=11 // pred_check
          %p421 = pneg %p305
        $region58: #{autoencoder_forward.1} parent=11 // pred_check_branch
          %423 = sbr.rel (%p421) target = $region60
        $region59: #{autoencoder_forward.1} parent=11 // pred_region
          _
        $region60: #{autoencoder_forward.1} parent=11 // pred_fallthru
          _
        // Predicated region
        $region61: #{autoencoder_forward.1} parent=11 // pred_check
          %p424 = pneg %p326
        $region62: #{autoencoder_forward.1} parent=11 // pred_check_branch
          %426 = sbr.rel (%p424) target = $region64
        $region63: #{autoencoder_forward.1} parent=11 // pred_region
          _
        $region64: #{autoencoder_forward.1} parent=11 // pred_fallthru
          _
        // Predicated region
        $region65: #{autoencoder_forward.1} parent=11 // pred_check
          %p427 = pneg %p347
        $region66: #{autoencoder_forward.1} parent=11 // pred_check_branch
          %429 = sbr.rel (%p427) target = $region68
        $region67: #{autoencoder_forward.1} parent=11 // pred_region
          _
        $region68: #{autoencoder_forward.1} parent=11 // pred_fallthru
          _
      $region12: #{autoencoder_forward.1} parent=5 // pred_fallthru
        _
      %p430 = scmp.lt.s32.totalorder %s27, 2
      // Predicated region
      $region69: #{autoencoder_forward.1} parent=5 // pred_check
        %p431 = pneg %p430
      $region70: #{autoencoder_forward.1} parent=5 // pred_check_branch
        %433 = sbr.rel (%p431) target = $region72
      $region71: #{autoencoder_forward.1} parent=5 // pred_region
        // Predicated region
        $region73: #{autoencoder_forward.1} parent=71 // pred_check
          %p434 = pneg %p47
        $region74: #{autoencoder_forward.1} parent=71 // pred_check_branch
          %436 = sbr.rel (%p434) target = $region76
        $region75: #{autoencoder_forward.1} parent=71 // pred_region
          %s437 = sand.u32 %s37, 1
          %s438 = scalar_lea.sflag [#allocation3], %s437
          %s439 = sand.u32 %s37, 1
          %s440 = smul.addr %s439, 728
          %s441 = scalar_lea.vmem [#allocation2], %s440
          %s442 = smul.u32 13, %s27
          %s443 = ssub.s32 25, %s442
          %p444 = scmp.lt.s32.totalorder %s443, 13
          %s445 = scalar_select %p444, %s443, 13
          %s446 = smul.u32 128, %s445
          %s447 = smul.u32 %s446, 7
          %s449 = ssub.s32 11648, %s447
          %450 = vsyncadd %s438, %s449
          %p451 = scmp.ne.s32.totalorder 0, %s447
          %s452 = smul.addr %s442, 7
          %s453 = smul.addr %s452, 128
          %s454 = scalar_lea.hbm %s0, %s453
          %s455 = smul.u32 56, %s445
          %s456 = sshll.u32 %s441, 4
          %s457 = int_to_ptr.vmem [resolvable:$true] %s456
          %s458 = sshll.u32 %s455, 4
          %462 = dma.hbm_to_vmem [thread:$0]  (%p451), %s454, %s458, %s457, %s438, 896, 896, 56
        $region76: #{autoencoder_forward.1} parent=71 // pred_fallthru
          _
      $region72: #{autoencoder_forward.1} parent=5 // pred_fallthru
        _
      %p463 = scmp.le.s32.totalorder 1, %s27
      %p464 = scmp.lt.s32.totalorder %s27, 3
      %p465 = pnand %p463, %p464
      %p466 = pneg %p465
      // Predicated region
      $region77: #{autoencoder_forward.1} parent=5 // pred_check
        _
      $region78: #{autoencoder_forward.1} parent=5 // pred_check_branch
        %468 = sbr.rel (%p465) target = $region80
      $region79: #{autoencoder_forward.1} parent=5 // pred_region
        %s469 = ssub.s32 %s27, 1
        %s470 = sand.u32 %s40, 1
        %s471 = scalar_lea.sflag [#allocation3], %s470
        %s472 = sand.u32 %s40, 1
        %s473 = smul.addr %s472, 728
        %s474 = scalar_lea.vmem [#allocation2], %s473
        // Predicated region
        $region81: #{autoencoder_forward.1} parent=79 // pred_check
          %p475 = pneg %p53
        $region82: #{autoencoder_forward.1} parent=79 // pred_check_branch
          %477 = sbr.rel (%p475) target = $region84
        $region83: #{autoencoder_forward.1} parent=79 // pred_region
          %478 = dma.done %s471, 11648
        $region84: #{autoencoder_forward.1} parent=79 // pred_fallthru
          _
        %s479 = sand.u32 %s40, 1
        %s480 = scalar_lea.sflag [#allocation3], %s479
        %s481 = sand.u32 %s40, 1
        %s482 = smul.addr %s481, 728
        %s483 = scalar_lea.vmem [#allocation2], %s482
        %p484 = pneg %p53
        %p485 = pneg %p50
        %p486 = pneg %p74
        %p487 = pneg %p71
        %p488 = pneg %p95
        %p489 = pneg %p92
        %p490 = pneg %p116
        %p491 = pneg %p113
        %p492 = pneg %p137
        %p493 = pneg %p134
        %p494 = pneg %p158
        %p495 = pneg %p155
        %p496 = pneg %p179
        %p497 = pneg %p176
        %p498 = pneg %p200
        %p499 = pneg %p197
        %p500 = pneg %p221
        %p501 = pneg %p218
        %p502 = pneg %p242
        %p503 = pneg %p239
        %p504 = pneg %p263
        %p505 = pneg %p260
        %p506 = pneg %p284
        %p507 = pneg %p281
        %p508 = pneg %p305
        %p509 = pneg %p302
        %p510 = pneg %p326
        %p511 = pneg %p323
        %p512 = pneg %p347
        %p513 = pneg %p344
        %p514 = pneg %p373
        %p515 = pneg %p370
        %s516 = sand.u32 %s360, 1
        %s517 = scalar_lea.sflag [#allocation4], %s516
        %s518 = sand.u32 %s360, 1
        %s519 = smul.addr %s518, 728
        %s520 = scalar_lea.vmem [#allocation5], %s519
        %s521 = smul.u32 13, %s32
        %s522 = ssub.s32 25, %s521
        %p523 = scmp.lt.s32.totalorder %s522, 13
        %s524 = scalar_select %p523, %s522, 13
        %s525 = smul.u32 128, %s524
        %s526 = smul.u32 %s525, 7
        %s527 = smul.u32 13, %s32
        %s528 = ssub.s32 25, %s527
        %p529 = scmp.lt.s32.totalorder %s528, 13
        %s530 = scalar_select %p529, %s528, 13
        %s531 = smul.u32 128, %s530
        %s532 = smul.u32 %s531, 7
        %v534 = vld [vmem:[%s474] sm:$0xff]
        %v535 = vld [vmem:[%s474 + $0x8] sm:$0xff]
        %v536 = vld [vmem:[%s474 + $0x10] sm:$0xff]
        %v537 = vld [vmem:[%s474 + $0x18] sm:$0xff]
        %v538 = vld [vmem:[%s474 + $0x20] sm:$0xff]
        %v539 = vld [vmem:[%s474 + $0x28] sm:$0xff]
        %v540 = vld [vmem:[%s474 + $0x30] sm:$0xff]
        %v541 = vld [vmem:[%s474 + $0x38] sm:$0xff]
        %v542 = vld [vmem:[%s474 + $0x40] sm:$0xff]
        %v543 = vld [vmem:[%s474 + $0x48] sm:$0xff]
        %v544 = vld [vmem:[%s474 + $0x50] sm:$0xff]
        %v545 = vld [vmem:[%s474 + $0x58] sm:$0xff]
        %v546 = vld [vmem:[%s474 + $0x60] sm:$0xff]
        %v547 = vld [vmem:[%s474 + $0x68] sm:$0xff]
        %v548 = vld [vmem:[%s474 + $0x70] sm:$0xff]
        %v549 = vld [vmem:[%s474 + $0x78] sm:$0xff]
        %v550 = vld [vmem:[%s474 + $0x80] sm:$0xff]
        %v551 = vld [vmem:[%s474 + $0x88] sm:$0xff]
        %v552 = vld [vmem:[%s474 + $0x90] sm:$0xff]
        %v553 = vld [vmem:[%s474 + $0x98] sm:$0xff]
        %v554 = vld [vmem:[%s474 + $0xa0] sm:$0xff]
        %v555 = vld [vmem:[%s474 + $0xa8] sm:$0xff]
        %v556 = vld [vmem:[%s474 + $0xb0] sm:$0xff]
        %v557 = vld [vmem:[%s474 + $0xb8] sm:$0xff]
        %v558 = vld [vmem:[%s474 + $0xc0] sm:$0xff]
        %v559 = vld [vmem:[%s474 + $0xc8] sm:$0xff]
        %v560 = vld [vmem:[%s474 + $0xd0] sm:$0xff]
        %v561 = vld [vmem:[%s474 + $0xd8] sm:$0xff]
        %v562 = vld [vmem:[%s474 + $0xe0] sm:$0xff]
        %v563 = vld [vmem:[%s474 + $0xe8] sm:$0xff]
        %v564 = vld [vmem:[%s474 + $0xf0] sm:$0xff]
        %v565 = vld [vmem:[%s474 + $0xf8] sm:$0xff]
        %v566 = vld [vmem:[%s474 + $0x100] sm:$0xff]
        %v567 = vld [vmem:[%s474 + $0x108] sm:$0xff]
        %v568 = vld [vmem:[%s474 + $0x110] sm:$0xff]
        %v569 = vld [vmem:[%s474 + $0x118] sm:$0xff]
        %v570 = vld [vmem:[%s474 + $0x120] sm:$0xff]
        %v571 = vld [vmem:[%s474 + $0x128] sm:$0xff]
        %v572 = vld [vmem:[%s474 + $0x130] sm:$0xff]
        %v573 = vld [vmem:[%s474 + $0x138] sm:$0xff]
        %v574 = vld [vmem:[%s474 + $0x140] sm:$0xff]
        %v575 = vld [vmem:[%s474 + $0x148] sm:$0xff]
        %v576 = vld [vmem:[%s474 + $0x150] sm:$0xff]
        %v577 = vld [vmem:[%s474 + $0x158] sm:$0xff]
        %v578 = vld [vmem:[%s474 + $0x160] sm:$0xff]
        %v579 = vld [vmem:[%s474 + $0x168] sm:$0xff]
        %v580 = vld [vmem:[%s474 + $0x170] sm:$0xff]
        %v581 = vld [vmem:[%s474 + $0x178] sm:$0xff]
        %v582 = vld [vmem:[%s474 + $0x180] sm:$0xff]
        %v583 = vld [vmem:[%s474 + $0x188] sm:$0xff]
        %v584 = vld [vmem:[%s474 + $0x190] sm:$0xff]
        %v585 = vld [vmem:[%s474 + $0x198] sm:$0xff]
        %v586 = vld [vmem:[%s474 + $0x1a0] sm:$0xff]
        %v587 = vld [vmem:[%s474 + $0x1a8] sm:$0xff]
        %v588 = vld [vmem:[%s474 + $0x1b0] sm:$0xff]
        %v589 = vld [vmem:[%s474 + $0x1b8] sm:$0xff]
        %v590 = vld [vmem:[%s474 + $0x1c0] sm:$0xff]
        %v591 = vld [vmem:[%s474 + $0x1c8] sm:$0xff]
        %v592 = vld [vmem:[%s474 + $0x1d0] sm:$0xff]
        %v593 = vld [vmem:[%s474 + $0x1d8] sm:$0xff]
        %v594 = vld [vmem:[%s474 + $0x1e0] sm:$0xff]
        %v595 = vld [vmem:[%s474 + $0x1e8] sm:$0xff]
        %v596 = vld [vmem:[%s474 + $0x1f0] sm:$0xff]
        %v597 = vld [vmem:[%s474 + $0x1f8] sm:$0xff]
        %v598 = vld [vmem:[%s474 + $0x200] sm:$0xff]
        %v599 = vld [vmem:[%s474 + $0x208] sm:$0xff]
        %v600 = vld [vmem:[%s474 + $0x210] sm:$0xff]
        %v601 = vld [vmem:[%s474 + $0x218] sm:$0xff]
        %v602 = vld [vmem:[%s474 + $0x220] sm:$0xff]
        %v603 = vld [vmem:[%s474 + $0x228] sm:$0xff]
        %v604 = vld [vmem:[%s474 + $0x230] sm:$0xff]
        %v605 = vld [vmem:[%s474 + $0x238] sm:$0xff]
        %v606 = vld [vmem:[%s474 + $0x240] sm:$0xff]
        %v607 = vld [vmem:[%s474 + $0x248] sm:$0xff]
        %v608 = vld [vmem:[%s474 + $0x250] sm:$0xff]
        %v609 = vld [vmem:[%s474 + $0x258] sm:$0xff]
        %v610 = vld [vmem:[%s474 + $0x260] sm:$0xff]
        %v611 = vld [vmem:[%s474 + $0x268] sm:$0xff]
        %v612 = vld [vmem:[%s474 + $0x270] sm:$0xff]
        %v613 = vld [vmem:[%s474 + $0x278] sm:$0xff]
        %v614 = vld [vmem:[%s474 + $0x280] sm:$0xff]
        %v615 = vld [vmem:[%s474 + $0x288] sm:$0xff]
        %v616 = vld [vmem:[%s474 + $0x290] sm:$0xff]
        %v617 = vld [vmem:[%s474 + $0x298] sm:$0xff]
        %v618 = vld [vmem:[%s474 + $0x2a0] sm:$0xff]
        %v619 = vld [vmem:[%s474 + $0x2a8] sm:$0xff]
        %v620 = vld [vmem:[%s474 + $0x2b0] sm:$0xff]
        %v621 = vld [vmem:[%s474 + $0x2b8] sm:$0xff]
        %v622 = vld [vmem:[%s474 + $0x2c0] sm:$0xff]
        %v623 = vld [vmem:[%s474 + $0x2c8] sm:$0xff]
        %v624 = vld [vmem:[%s474 + $0x2d0] sm:$0xff]
        %v625 = vpack.c.bf16 %v541, %v534
        %v626 = vpack.c.bf16 %v542, %v535
        %v627 = vpack.c.bf16 %v543, %v536
        %v628 = vpack.c.bf16 %v544, %v537
        %v629 = vpack.c.bf16 %v545, %v538
        %v630 = vpack.c.bf16 %v546, %v539
        %v631 = vpack.c.bf16 %v547, %v540
        %v632 = vpack.c.bf16 %v555, %v548
        %v633 = vpack.c.bf16 %v556, %v549
        %v634 = vpack.c.bf16 %v557, %v550
        %v635 = vpack.c.bf16 %v558, %v551
        %v636 = vpack.c.bf16 %v559, %v552
        %v637 = vpack.c.bf16 %v560, %v553
        %v638 = vpack.c.bf16 %v561, %v554
        %v639 = vpack.c.bf16 %v569, %v562
        %v640 = vpack.c.bf16 %v570, %v563
        %v641 = vpack.c.bf16 %v571, %v564
        %v642 = vpack.c.bf16 %v572, %v565
        %v643 = vpack.c.bf16 %v573, %v566
        %v644 = vpack.c.bf16 %v574, %v567
        %v645 = vpack.c.bf16 %v575, %v568
        %v646 = vpack.c.bf16 %v583, %v576
        %v647 = vpack.c.bf16 %v584, %v577
        %v648 = vpack.c.bf16 %v585, %v578
        %v649 = vpack.c.bf16 %v586, %v579
        %v650 = vpack.c.bf16 %v587, %v580
        %v651 = vpack.c.bf16 %v588, %v581
        %v652 = vpack.c.bf16 %v589, %v582
        %v653 = vpack.c.bf16 %v597, %v590
        %v654 = vpack.c.bf16 %v598, %v591
        %v655 = vpack.c.bf16 %v599, %v592
        %v656 = vpack.c.bf16 %v600, %v593
        %v657 = vpack.c.bf16 %v601, %v594
        %v658 = vpack.c.bf16 %v602, %v595
        %v659 = vpack.c.bf16 %v603, %v596
        %v660 = vpack.c.bf16 %v611, %v604
        %v661 = vpack.c.bf16 %v612, %v605
        %v662 = vpack.c.bf16 %v613, %v606
        %v663 = vpack.c.bf16 %v614, %v607
        %v664 = vpack.c.bf16 %v615, %v608
        %v665 = vpack.c.bf16 %v616, %v609
        %v666 = vpack.c.bf16 %v617, %v610
        %v667 = vpack.c.bf16 %v618, %v618
        %v668 = vpack.c.bf16 %v619, %v619
        %v669 = vpack.c.bf16 %v620, %v620
        %v670 = vpack.c.bf16 %v621, %v621
        %v671 = vpack.c.bf16 %v622, %v622
        %v672 = vpack.c.bf16 %v623, %v623
        %v673 = vpack.c.bf16 %v624, %v624
        %v674 = vld [vmem:[%s1] sm:$0xf]
        %v675 = vld [vmem:[%s1 + $0x4] sm:$0xf]
        %v676 = vld [vmem:[%s1 + $0x8] sm:$0xf]
        %v677 = vld [vmem:[%s1 + $0xc] sm:$0xf]
        %v678 = vld [vmem:[%s1 + $0x10] sm:$0xf]
        %v679 = vld [vmem:[%s1 + $0x14] sm:$0xf]
        %v680 = vld [vmem:[%s1 + $0x18] sm:$0xf]
        %v681 = vld [vmem:[%s1 + $0x1c] sm:$0xf]
        %v682 = vld [vmem:[%s1 + $0x20] sm:$0xf]
        %v683 = vld [vmem:[%s1 + $0x24] sm:$0xf]
        %v684 = vld [vmem:[%s1 + $0x28] sm:$0xf]
        %v685 = vld [vmem:[%s1 + $0x2c] sm:$0xf]
        %v686 = vld [vmem:[%s1 + $0x30] sm:$0xf]
        %v687 = vld [vmem:[%s1 + $0x34] sm:$0xf]
        %v688 = vld [vmem:[%s1 + $0x38] sm:$0xf]
        %v689 = vld [vmem:[%s1 + $0x3c] sm:$0xf]
        %v690 = vld [vmem:[%s1 + $0x40] sm:$0xf]
        %v691 = vld [vmem:[%s1 + $0x44] sm:$0xf]
        %v692 = vld [vmem:[%s1 + $0x48] sm:$0xf]
        %v693 = vld [vmem:[%s1 + $0x4c] sm:$0xf]
        %v694 = vld [vmem:[%s1 + $0x50] sm:$0xf]
        %v695 = vld [vmem:[%s1 + $0x54] sm:$0xf]
        %v696 = vld [vmem:[%s1 + $0x58] sm:$0xf]
        %v697 = vld [vmem:[%s1 + $0x5c] sm:$0xf]
        %v698 = vld [vmem:[%s1 + $0x60] sm:$0xf]
        %v699 = vld [vmem:[%s1 + $0x64] sm:$0xf]
        %v700 = vld [vmem:[%s1 + $0x68] sm:$0xf]
        %v701 = vld [vmem:[%s1 + $0x6c] sm:$0xf]
        %v702 = vld [vmem:[%s1 + $0x70] sm:$0xf]
        %v703 = vld [vmem:[%s1 + $0x74] sm:$0xf]
        %v704 = vld [vmem:[%s1 + $0x78] sm:$0xf]
        %v705 = vld [vmem:[%s1 + $0x7c] sm:$0xf]
        %v706 = vld [vmem:[%s1 + $0x80] sm:$0xf]
        %v707 = vld [vmem:[%s1 + $0x84] sm:$0xf]
        %v708 = vld [vmem:[%s1 + $0x88] sm:$0xf]
        %v709 = vld [vmem:[%s1 + $0x8c] sm:$0xf]
        %v710 = vld [vmem:[%s1 + $0x90] sm:$0xf]
        %v711 = vld [vmem:[%s1 + $0x94] sm:$0xf]
        %v712 = vld [vmem:[%s1 + $0x98] sm:$0xf]
        %v713 = vld [vmem:[%s1 + $0x9c] sm:$0xf]
        %v714 = vld [vmem:[%s1 + $0xa0] sm:$0xf]
        %v715 = vld [vmem:[%s1 + $0xa4] sm:$0xf]
        %v716 = vld [vmem:[%s1 + $0xa8] sm:$0xf]
        %v717 = vld [vmem:[%s1 + $0xac] sm:$0xf]
        %v718 = vld [vmem:[%s1 + $0xb0] sm:$0xf]
        %v719 = vld [vmem:[%s1 + $0xb4] sm:$0xf]
        %v720 = vld [vmem:[%s1 + $0xb8] sm:$0xf]
        %v721 = vld [vmem:[%s1 + $0xbc] sm:$0xf]
        %v722 = vld [vmem:[%s1 + $0xc0] sm:$0xf]
        %v723 = vld [vmem:[%s1 + $0xc4] sm:$0xf]
        %v724 = vld [vmem:[%s1 + $0xc8] sm:$0xf]
        %v725 = vld [vmem:[%s1 + $0xcc] sm:$0xf]
        %v726 = vld [vmem:[%s1 + $0xd0] sm:$0xf]
        %v727 = vld [vmem:[%s1 + $0xd4] sm:$0xf]
        %v728 = vld [vmem:[%s1 + $0xd8] sm:$0xf]
        %v729 = vld [vmem:[%s1 + $0xdc] sm:$0xf]
        %v730 = vld [vmem:[%s1 + $0xe0] sm:$0xf]
        %v731 = vld [vmem:[%s1 + $0xe4] sm:$0xf]
        %v732 = vld [vmem:[%s1 + $0xe8] sm:$0xf]
        %v733 = vld [vmem:[%s1 + $0xec] sm:$0xf]
        %v734 = vld [vmem:[%s1 + $0xf0] sm:$0xf]
        %v735 = vld [vmem:[%s1 + $0xf4] sm:$0xf]
        %v736 = vld [vmem:[%s1 + $0xf8] sm:$0xf]
        %v737 = vld [vmem:[%s1 + $0xfc] sm:$0xf]
        %v738 = vld [vmem:[%s1 + $0x100] sm:$0xf]
        %v739 = vld [vmem:[%s1 + $0x104] sm:$0xf]
        %v740 = vld [vmem:[%s1 + $0x108] sm:$0xf]
        %v741 = vld [vmem:[%s1 + $0x10c] sm:$0xf]
        %v742 = vld [vmem:[%s1 + $0x110] sm:$0xf]
        %v743 = vld [vmem:[%s1 + $0x114] sm:$0xf]
        %v744 = vld [vmem:[%s1 + $0x118] sm:$0xf]
        %v745 = vld [vmem:[%s1 + $0x11c] sm:$0xf]
        %v746 = vld [vmem:[%s1 + $0x120] sm:$0xf]
        %v747 = vld [vmem:[%s1 + $0x124] sm:$0xf]
        %v748 = vld [vmem:[%s1 + $0x128] sm:$0xf]
        %v749 = vld [vmem:[%s1 + $0x12c] sm:$0xf]
        %v750 = vld [vmem:[%s1 + $0x130] sm:$0xf]
        %v751 = vld [vmem:[%s1 + $0x134] sm:$0xf]
        %v752 = vld [vmem:[%s1 + $0x138] sm:$0xf]
        %v753 = vld [vmem:[%s1 + $0x13c] sm:$0xf]
        %v754 = vld [vmem:[%s1 + $0x140] sm:$0xf]
        %v755 = vld [vmem:[%s1 + $0x144] sm:$0xf]
        %v756 = vld [vmem:[%s1 + $0x148] sm:$0xf]
        %v757 = vld [vmem:[%s1 + $0x14c] sm:$0xf]
        %v758 = vld [vmem:[%s1 + $0x150] sm:$0xf]
        %v759 = vld [vmem:[%s1 + $0x154] sm:$0xf]
        %v760 = vld [vmem:[%s1 + $0x158] sm:$0xf]
        %v761 = vld [vmem:[%s1 + $0x15c] sm:$0xf]
        %v762 = vld [vmem:[%s1 + $0x160] sm:$0xf]
        %v763 = vld [vmem:[%s1 + $0x164] sm:$0xf]
        %v764 = vld [vmem:[%s1 + $0x168] sm:$0xf]
        %v765 = vld [vmem:[%s1 + $0x16c] sm:$0xf]
        %v766 = vld [vmem:[%s1 + $0x170] sm:$0xf]
        %v767 = vld [vmem:[%s1 + $0x174] sm:$0xf]
        %v768 = vld [vmem:[%s1 + $0x178] sm:$0xf]
        %v769 = vld [vmem:[%s1 + $0x17c] sm:$0xf]
        %v770 = vld [vmem:[%s1 + $0x180] sm:$0xf]
        %v771 = vld [vmem:[%s1 + $0x184] sm:$0xf]
        %v772 = vld [vmem:[%s2] sm:$0x1]
        %v774 = vlaneseq
        %v775 = vshrl.u32 %v774, 7
        %v776 = vsub.s32 0, %v775
        %v777 = vrot.slane %v772, %v776
        %v877 = vunpack.c.l.b16 %v674
        %v878 = vunpack.c.l.b16 %v675
        %v879 = vunpack.c.l.b16 %v676
        %v880 = vunpack.c.l.b16 %v677
        %v881 = vunpack.c.l.b16 %v678
        %v882 = vunpack.c.l.b16 %v679
        %v883 = vunpack.c.l.b16 %v680
        %v884 = vunpack.c.l.b16 %v681
        %v885 = vunpack.c.l.b16 %v682
        %v886 = vunpack.c.l.b16 %v683
        %v887 = vunpack.c.l.b16 %v684
        %v888 = vunpack.c.l.b16 %v685
        %v889 = vunpack.c.l.b16 %v686
        %v890 = vunpack.c.l.b16 %v687
        %v891 = vunpack.c.l.b16 %v688
        %v892 = vunpack.c.l.b16 %v689
        %v893 = vunpack.c.l.b16 %v690
        %v894 = vunpack.c.l.b16 %v691
        %v895 = vunpack.c.l.b16 %v692
        %v896 = vunpack.c.l.b16 %v693
        %v897 = vunpack.c.l.b16 %v694
        %v898 = vunpack.c.l.b16 %v695
        %v899 = vunpack.c.l.b16 %v696
        %v900 = vunpack.c.l.b16 %v697
        %v901 = vunpack.c.l.b16 %v698
        %v902 = vunpack.c.l.b16 %v699
        %v903 = vunpack.c.l.b16 %v700
        %v904 = vunpack.c.l.b16 %v701
        %v905 = vunpack.c.l.b16 %v702
        %v906 = vunpack.c.l.b16 %v703
        %v907 = vunpack.c.l.b16 %v704
        %v908 = vunpack.c.l.b16 %v705
        %v909 = vunpack.c.l.b16 %v706
        %v910 = vunpack.c.l.b16 %v707
        %v911 = vunpack.c.l.b16 %v708
        %v912 = vunpack.c.l.b16 %v709
        %v913 = vunpack.c.l.b16 %v710
        %v914 = vunpack.c.l.b16 %v711
        %v915 = vunpack.c.l.b16 %v712
        %v916 = vunpack.c.l.b16 %v713
        %v917 = vunpack.c.l.b16 %v714
        %v918 = vunpack.c.l.b16 %v715
        %v919 = vunpack.c.l.b16 %v716
        %v920 = vunpack.c.l.b16 %v717
        %v921 = vunpack.c.l.b16 %v718
        %v922 = vunpack.c.l.b16 %v719
        %v923 = vunpack.c.l.b16 %v720
        %v924 = vunpack.c.l.b16 %v721
        %v925 = vunpack.c.l.b16 %v722
        %v926 = vunpack.c.l.b16 %v723
        %v927 = vunpack.c.l.b16 %v724
        %v928 = vunpack.c.l.b16 %v725
        %v929 = vunpack.c.l.b16 %v726
        %v930 = vunpack.c.l.b16 %v727
        %v931 = vunpack.c.l.b16 %v728
        %v932 = vunpack.c.l.b16 %v729
        %v933 = vunpack.c.l.b16 %v730
        %v934 = vunpack.c.l.b16 %v731
        %v935 = vunpack.c.l.b16 %v732
        %v936 = vunpack.c.l.b16 %v733
        %v937 = vunpack.c.l.b16 %v734
        %v938 = vunpack.c.l.b16 %v735
        %v939 = vunpack.c.l.b16 %v736
        %v940 = vunpack.c.l.b16 %v737
        %v941 = vunpack.c.l.b16 %v738
        %v942 = vunpack.c.l.b16 %v739
        %v943 = vunpack.c.l.b16 %v740
        %v944 = vunpack.c.l.b16 %v741
        %v945 = vunpack.c.l.b16 %v742
        %v946 = vunpack.c.l.b16 %v743
        %v947 = vunpack.c.l.b16 %v744
        %v948 = vunpack.c.l.b16 %v745
        %v949 = vunpack.c.l.b16 %v746
        %v950 = vunpack.c.l.b16 %v747
        %v951 = vunpack.c.l.b16 %v748
        %v952 = vunpack.c.l.b16 %v749
        %v953 = vunpack.c.l.b16 %v750
        %v954 = vunpack.c.l.b16 %v751
        %v955 = vunpack.c.l.b16 %v752
        %v956 = vunpack.c.l.b16 %v753
        %v957 = vunpack.c.l.b16 %v754
        %v958 = vunpack.c.l.b16 %v755
        %v959 = vunpack.c.l.b16 %v756
        %v960 = vunpack.c.l.b16 %v757
        %v961 = vunpack.c.l.b16 %v758
        %v962 = vunpack.c.l.b16 %v759
        %v963 = vunpack.c.l.b16 %v760
        %v964 = vunpack.c.l.b16 %v761
        %v965 = vunpack.c.l.b16 %v762
        %v966 = vunpack.c.l.b16 %v763
        %v967 = vunpack.c.l.b16 %v764
        %v968 = vunpack.c.l.b16 %v765
        %v969 = vunpack.c.l.b16 %v766
        %v970 = vunpack.c.l.b16 %v767
        %v971 = vunpack.c.l.b16 %v768
        %v972 = vunpack.c.l.b16 %v769
        %v973 = vunpack.c.l.b16 %v770
        %v974 = vunpack.c.l.b16 %v771
        %v975 = vpack.c.b16 %v878, %v877
        %v976 = vpack.c.b16 %v880, %v879
        %v977 = vpack.c.b16 %v882, %v881
        %v978 = vpack.c.b16 %v884, %v883
        %v979 = vpack.c.b16 %v886, %v885
        %v980 = vpack.c.b16 %v888, %v887
        %v981 = vpack.c.b16 %v890, %v889
        %v982 = vpack.c.b16 %v892, %v891
        %v983 = vpack.c.b16 %v894, %v893
        %v984 = vpack.c.b16 %v896, %v895
        %v985 = vpack.c.b16 %v898, %v897
        %v986 = vpack.c.b16 %v900, %v899
        %v987 = vpack.c.b16 %v902, %v901
        %v988 = vpack.c.b16 %v904, %v903
        %v989 = vpack.c.b16 %v906, %v905
        %v990 = vpack.c.b16 %v908, %v907
        %v991 = vpack.c.b16 %v910, %v909
        %v992 = vpack.c.b16 %v912, %v911
        %v993 = vpack.c.b16 %v914, %v913
        %v994 = vpack.c.b16 %v916, %v915
        %v995 = vpack.c.b16 %v918, %v917
        %v996 = vpack.c.b16 %v920, %v919
        %v997 = vpack.c.b16 %v922, %v921
        %v998 = vpack.c.b16 %v924, %v923
        %v999 = vpack.c.b16 %v926, %v925
        %v1000 = vpack.c.b16 %v928, %v927
        %v1001 = vpack.c.b16 %v930, %v929
        %v1002 = vpack.c.b16 %v932, %v931
        %v1003 = vpack.c.b16 %v934, %v933
        %v1004 = vpack.c.b16 %v936, %v935
        %v1005 = vpack.c.b16 %v938, %v937
        %v1006 = vpack.c.b16 %v940, %v939
        %v1007 = vpack.c.b16 %v942, %v941
        %v1008 = vpack.c.b16 %v944, %v943
        %v1009 = vpack.c.b16 %v946, %v945
        %v1010 = vpack.c.b16 %v948, %v947
        %v1011 = vpack.c.b16 %v950, %v949
        %v1012 = vpack.c.b16 %v952, %v951
        %v1013 = vpack.c.b16 %v954, %v953
        %v1014 = vpack.c.b16 %v956, %v955
        %v1015 = vpack.c.b16 %v958, %v957
        %v1016 = vpack.c.b16 %v960, %v959
        %v1017 = vpack.c.b16 %v962, %v961
        %v1018 = vpack.c.b16 %v964, %v963
        %v1019 = vpack.c.b16 %v966, %v965
        %v1020 = vpack.c.b16 %v968, %v967
        %v1021 = vpack.c.b16 %v970, %v969
        %v1022 = vpack.c.b16 %v972, %v971
        %v1023 = vpack.c.b16 %v974, %v973
        %vm1073 = vcmask 130048
        %v1075 = vsel %vm1073, %v631, 0
        %v1078 = vsel %vm1073, %v638, 0
        %v1081 = vsel %vm1073, %v645, 0
        %v1084 = vsel %vm1073, %v652, 0
        %v1087 = vsel %vm1073, %v659, 0
        %v1090 = vsel %vm1073, %v666, 0
        %v1093 = vsel %vm1073, %v673, 0
        %1095 = vmatprep.subr.bf16.mxu0 0
        %1096 = vmatpush1.bf16.msra.mxu0 %v975
        %1097 = vmatprep.subr.bf16.mxu0 0
        %1098 = vmatpush1.bf16.msra.mxu0 %v976
        %1099 = vmatprep.subr.bf16.mxu0 0
        %1100 = vmatpush1.bf16.msra.mxu0 %v977
        %1101 = vmatprep.subr.bf16.mxu0 0
        %1102 = vmatpush1.bf16.msra.mxu0 %v978
        %1103 = vmatprep.subr.bf16.mxu0 0
        %1104 = vmatpush1.bf16.msra.mxu0 %v979
        %1105 = vmatprep.subr.bf16.mxu0 0
        %1106 = vmatpush1.bf16.msra.mxu0 %v980
        %1107 = vmatprep.subr.bf16.mxu0 0
        %1108 = vmatpush1.bf16.msra.mxu0 %v981
        %1109 = vmatprep.subr.bf16.mxu0 0
        %1110 = vmatpush1.bf16.msra.mxu0 %v982
        %1111 = vmatprep.subr.bf16.mxu0 0
        %1112 = vmatpush1.bf16.msra.mxu0 %v983
        %1113 = vmatprep.subr.bf16.mxu0 0
        %1114 = vmatpush1.bf16.msra.mxu0 %v984
        %1115 = vmatprep.subr.bf16.mxu0 0
        %1116 = vmatpush1.bf16.msra.mxu0 %v985
        %1117 = vmatprep.subr.bf16.mxu0 0
        %1118 = vmatpush1.bf16.msra.mxu0 %v986
        %1119 = vmatprep.subr.bf16.mxu0 0
        %1120 = vmatpush1.bf16.msra.mxu0 %v987
        %1121 = vmatprep.subr.bf16.mxu0 0
        %1122 = vmatpush1.bf16.msra.mxu0 %v988
        %1123 = vmatprep.subr.bf16.mxu0 0
        %1124 = vmatpush1.bf16.msra.mxu0 %v989
        %1125 = vmatprep.subr.bf16.mxu0 0
        %1126 = vmatpush1.bf16.msra.mxu0 %v990
        %1127 = vmatprep.mubr.bf16.mxu0 %v626
        %1128 = vmatmul.mubr.bf16.gmra.mrb[0].mxu0 %v625
        %v1129 = vpop.f32.mrb[0].mxu0
        %v1130 = vadd.f32 %v777, %v1129
        %v1131 = vpop.f32.mrb[0].mxu0
        %v1132 = vpop.f32.mrb[0].mxu0
        %v1133 = vadd.f32 %v777, %v1132
        %v1134 = vpop.f32.mrb[0].mxu0
        %1135 = vmatprep.mubr.bf16.mxu0 %v633
        %1136 = vmatmul.mubr.bf16.gmra.mrb[0].mxu0 %v632
        %v1137 = vpop.f32.mrb[0].mxu0
        %v1138 = vadd.f32 %v777, %v1137
        %v1139 = vpop.f32.mrb[0].mxu0
        %v1140 = vpop.f32.mrb[0].mxu0
        %v1141 = vadd.f32 %v777, %v1140
        %v1142 = vpop.f32.mrb[0].mxu0
        %1143 = vmatprep.mubr.bf16.mxu0 %v640
        %1144 = vmatmul.mubr.bf16.gmra.mrb[0].mxu0 %v639
        %v1145 = vpop.f32.mrb[0].mxu0
        %v1146 = vadd.f32 %v777, %v1145
        %v1147 = vpop.f32.mrb[0].mxu0
        %v1148 = vpop.f32.mrb[0].mxu0
        %v1149 = vadd.f32 %v777, %v1148
        %v1150 = vpop.f32.mrb[0].mxu0
        %1151 = vmatprep.mubr.bf16.mxu0 %v647
        %1152 = vmatmul.mubr.bf16.gmra.mrb[0].mxu0 %v646
        %v1153 = vpop.f32.mrb[0].mxu0
        %v1154 = vadd.f32 %v777, %v1153
        %v1155 = vpop.f32.mrb[0].mxu0
        %v1156 = vpop.f32.mrb[0].mxu0
        %v1157 = vadd.f32 %v777, %v1156
        %v1158 = vpop.f32.mrb[0].mxu0
        %1159 = vmatprep.mubr.bf16.mxu0 %v654
        %1160 = vmatmul.mubr.bf16.gmra.mrb[0].mxu0 %v653
        %v1161 = vpop.f32.mrb[0].mxu0
        %v1162 = vadd.f32 %v777, %v1161
        %v1163 = vpop.f32.mrb[0].mxu0
        %v1164 = vpop.f32.mrb[0].mxu0
        %v1165 = vadd.f32 %v777, %v1164
        %v1166 = vpop.f32.mrb[0].mxu0
        %1167 = vmatprep.mubr.bf16.mxu0 %v661
        %1168 = vmatmul.mubr.bf16.gmra.mrb[0].mxu0 %v660
        %v1169 = vpop.f32.mrb[0].mxu0
        %v1170 = vadd.f32 %v777, %v1169
        %v1171 = vpop.f32.mrb[0].mxu0
        %v1172 = vpop.f32.mrb[0].mxu0
        %v1173 = vadd.f32 %v777, %v1172
        %v1174 = vpop.f32.mrb[0].mxu0
        %1175 = vmatprep.mubr.bf16.mxu0 %v668
        %1176 = vmatmul.mubr.bf16.gmra.mrb[0].mxu0 %v667
        %v1177 = vpop.f32.mrb[0].mxu0
        %v1178 = vadd.f32 %v777, %v1177
        %v1179 = vpop.f32.mrb[0].mxu0
        %v1180 = vpop.f32.mrb[0].mxu0
        %v1181 = vpop.f32.mrb[0].mxu0
        %1182 = vdwg.mxu0
        %1183 = vmatprep.subr.bf16.mxu0 0
        %1184 = vmatpush1.bf16.msra.mxu0 %v991
        %1185 = vmatprep.subr.bf16.mxu0 0
        %1186 = vmatpush1.bf16.msra.mxu0 %v992
        %1187 = vmatprep.subr.bf16.mxu0 0
        %1188 = vmatpush1.bf16.msra.mxu0 %v993
        %1189 = vmatprep.subr.bf16.mxu0 0
        %1190 = vmatpush1.bf16.msra.mxu0 %v994
        %1191 = vmatprep.subr.bf16.mxu0 0
        %1192 = vmatpush1.bf16.msra.mxu0 %v995
        %1193 = vmatprep.subr.bf16.mxu0 0
        %1194 = vmatpush1.bf16.msra.mxu0 %v996
        %1195 = vmatprep.subr.bf16.mxu0 0
        %1196 = vmatpush1.bf16.msra.mxu0 %v997
        %1197 = vmatprep.subr.bf16.mxu0 0
        %1198 = vmatpush1.bf16.msra.mxu0 %v998
        %1199 = vmatprep.subr.bf16.mxu0 0
        %1200 = vmatpush1.bf16.msra.mxu0 %v999
        %1201 = vmatprep.subr.bf16.mxu0 0
        %1202 = vmatpush1.bf16.msra.mxu0 %v1000
        %1203 = vmatprep.subr.bf16.mxu0 0
        %1204 = vmatpush1.bf16.msra.mxu0 %v1001
        %1205 = vmatprep.subr.bf16.mxu0 0
        %1206 = vmatpush1.bf16.msra.mxu0 %v1002
        %1207 = vmatprep.subr.bf16.mxu0 0
        %1208 = vmatpush1.bf16.msra.mxu0 %v1003
        %1209 = vmatprep.subr.bf16.mxu0 0
        %1210 = vmatpush1.bf16.msra.mxu0 %v1004
        %1211 = vmatprep.subr.bf16.mxu0 0
        %1212 = vmatpush1.bf16.msra.mxu0 %v1005
        %1213 = vmatprep.subr.bf16.mxu0 0
        %1214 = vmatpush1.bf16.msra.mxu0 %v1006
        %1215 = vmatprep.mubr.bf16.mxu0 %v628
        %1216 = vmatmul.mubr.bf16.gmra.mrb[0].mxu0 %v627
        %v1217 = vpop.f32.mrb[0].mxu0
        %v1218 = vadd.f32 %v1130, %v1217
        %v1219 = vpop.f32.mrb[0].mxu0
        %v1220 = vpop.f32.mrb[0].mxu0
        %v1221 = vadd.f32 %v1133, %v1220
        %v1222 = vpop.f32.mrb[0].mxu0
        %1223 = vmatprep.mubr.bf16.mxu0 %v635
        %1224 = vmatmul.mubr.bf16.gmra.mrb[0].mxu0 %v634
        %v1225 = vpop.f32.mrb[0].mxu0
        %v1226 = vadd.f32 %v1138, %v1225
        %v1227 = vpop.f32.mrb[0].mxu0
        %v1228 = vpop.f32.mrb[0].mxu0
        %v1229 = vadd.f32 %v1141, %v1228
        %v1230 = vpop.f32.mrb[0].mxu0
        %1231 = vmatprep.mubr.bf16.mxu0 %v642
        %1232 = vmatmul.mubr.bf16.gmra.mrb[0].mxu0 %v641
        %v1233 = vpop.f32.mrb[0].mxu0
        %v1234 = vadd.f32 %v1146, %v1233
        %v1235 = vpop.f32.mrb[0].mxu0
        %v1236 = vpop.f32.mrb[0].mxu0
        %v1237 = vadd.f32 %v1149, %v1236
        %v1238 = vpop.f32.mrb[0].mxu0
        %1239 = vmatprep.mubr.bf16.mxu0 %v649
        %1240 = vmatmul.mubr.bf16.gmra.mrb[0].mxu0 %v648
        %v1241 = vpop.f32.mrb[0].mxu0
        %v1242 = vadd.f32 %v1154, %v1241
        %v1243 = vpop.f32.mrb[0].mxu0
        %v1244 = vpop.f32.mrb[0].mxu0
        %v1245 = vadd.f32 %v1157, %v1244
        %v1246 = vpop.f32.mrb[0].mxu0
        %1247 = vmatprep.mubr.bf16.mxu0 %v656
        %1248 = vmatmul.mubr.bf16.gmra.mrb[0].mxu0 %v655
        %v1249 = vpop.f32.mrb[0].mxu0
        %v1250 = vadd.f32 %v1162, %v1249
        %v1251 = vpop.f32.mrb[0].mxu0
        %v1252 = vpop.f32.mrb[0].mxu0
        %v1253 = vadd.f32 %v1165, %v1252
        %v1254 = vpop.f32.mrb[0].mxu0
        %1255 = vmatprep.mubr.bf16.mxu0 %v663
        %1256 = vmatmul.mubr.bf16.gmra.mrb[0].mxu0 %v662
        %v1257 = vpop.f32.mrb[0].mxu0
        %v1258 = vadd.f32 %v1170, %v1257
        %v1259 = vpop.f32.mrb[0].mxu0
        %v1260 = vpop.f32.mrb[0].mxu0
        %v1261 = vadd.f32 %v1173, %v1260
        %v1262 = vpop.f32.mrb[0].mxu0
        %1263 = vmatprep.mubr.bf16.mxu0 %v670
        %1264 = vmatmul.mubr.bf16.gmra.mrb[0].mxu0 %v669
        %v1265 = vpop.f32.mrb[0].mxu0
        %v1266 = vadd.f32 %v1178, %v1265
        %v1267 = vpop.f32.mrb[0].mxu0
        %v1268 = vpop.f32.mrb[0].mxu0
        %v1269 = vpop.f32.mrb[0].mxu0
        %1270 = vdwg.mxu0
        %1271 = vmatprep.subr.bf16.mxu0 0
        %1272 = vmatpush1.bf16.msra.mxu0 %v1007
        %1273 = vmatprep.subr.bf16.mxu0 0
        %1274 = vmatpush1.bf16.msra.mxu0 %v1008
        %1275 = vmatprep.subr.bf16.mxu0 0
        %1276 = vmatpush1.bf16.msra.mxu0 %v1009
        %1277 = vmatprep.subr.bf16.mxu0 0
        %1278 = vmatpush1.bf16.msra.mxu0 %v1010
        %1279 = vmatprep.subr.bf16.mxu0 0
        %1280 = vmatpush1.bf16.msra.mxu0 %v1011
        %1281 = vmatprep.subr.bf16.mxu0 0
        %1282 = vmatpush1.bf16.msra.mxu0 %v1012
        %1283 = vmatprep.subr.bf16.mxu0 0
        %1284 = vmatpush1.bf16.msra.mxu0 %v1013
        %1285 = vmatprep.subr.bf16.mxu0 0
        %1286 = vmatpush1.bf16.msra.mxu0 %v1014
        %1287 = vmatprep.subr.bf16.mxu0 0
        %1288 = vmatpush1.bf16.msra.mxu0 %v1015
        %1289 = vmatprep.subr.bf16.mxu0 0
        %1290 = vmatpush1.bf16.msra.mxu0 %v1016
        %1291 = vmatprep.subr.bf16.mxu0 0
        %1292 = vmatpush1.bf16.msra.mxu0 %v1017
        %1293 = vmatprep.subr.bf16.mxu0 0
        %1294 = vmatpush1.bf16.msra.mxu0 %v1018
        %1295 = vmatprep.subr.bf16.mxu0 0
        %1296 = vmatpush1.bf16.msra.mxu0 %v1019
        %1297 = vmatprep.subr.bf16.mxu0 0
        %1298 = vmatpush1.bf16.msra.mxu0 %v1020
        %1299 = vmatprep.subr.bf16.mxu0 0
        %1300 = vmatpush1.bf16.msra.mxu0 %v1021
        %1301 = vmatprep.subr.bf16.mxu0 0
        %1302 = vmatpush1.bf16.msra.mxu0 %v1022
        %1303 = vmatprep.mubr.bf16.mxu0 %v630
        %1304 = vmatmul.mubr.bf16.gmra.mrb[0].mxu0 %v629
        %v1305 = vpop.f32.mrb[0].mxu0
        %v1306 = vadd.f32 %v1218, %v1305
        %v1307 = vpop.f32.mrb[0].mxu0
        %v1308 = vpop.f32.mrb[0].mxu0
        %v1309 = vadd.f32 %v1221, %v1308
        %v1310 = vpop.f32.mrb[0].mxu0
        %1311 = vmatprep.mubr.bf16.mxu0 %v637
        %1312 = vmatmul.mubr.bf16.gmra.mrb[0].mxu0 %v636
        %v1313 = vpop.f32.mrb[0].mxu0
        %v1314 = vadd.f32 %v1226, %v1313
        %v1315 = vpop.f32.mrb[0].mxu0
        %v1316 = vpop.f32.mrb[0].mxu0
        %v1317 = vadd.f32 %v1229, %v1316
        %v1318 = vpop.f32.mrb[0].mxu0
        %1319 = vmatprep.mubr.bf16.mxu0 %v644
        %1320 = vmatmul.mubr.bf16.gmra.mrb[0].mxu0 %v643
        %v1321 = vpop.f32.mrb[0].mxu0
        %v1322 = vadd.f32 %v1234, %v1321
        %v1323 = vpop.f32.mrb[0].mxu0
        %v1324 = vpop.f32.mrb[0].mxu0
        %v1325 = vadd.f32 %v1237, %v1324
        %v1326 = vpop.f32.mrb[0].mxu0
        %1327 = vmatprep.mubr.bf16.mxu0 %v651
        %1328 = vmatmul.mubr.bf16.gmra.mrb[0].mxu0 %v650
        %v1329 = vpop.f32.mrb[0].mxu0
        %v1330 = vadd.f32 %v1242, %v1329
        %v1331 = vpop.f32.mrb[0].mxu0
        %v1332 = vpop.f32.mrb[0].mxu0
        %v1333 = vadd.f32 %v1245, %v1332
        %v1334 = vpop.f32.mrb[0].mxu0
        %1335 = vmatprep.mubr.bf16.mxu0 %v658
        %1336 = vmatmul.mubr.bf16.gmra.mrb[0].mxu0 %v657
        %v1337 = vpop.f32.mrb[0].mxu0
        %v1338 = vadd.f32 %v1250, %v1337
        %v1339 = vpop.f32.mrb[0].mxu0
        %v1340 = vpop.f32.mrb[0].mxu0
        %v1341 = vadd.f32 %v1253, %v1340
        %v1342 = vpop.f32.mrb[0].mxu0
        %1343 = vmatprep.mubr.bf16.mxu0 %v665
        %1344 = vmatmul.mubr.bf16.gmra.mrb[0].mxu0 %v664
        %v1345 = vpop.f32.mrb[0].mxu0
        %v1346 = vadd.f32 %v1258, %v1345
        %v1347 = vpop.f32.mrb[0].mxu0
        %v1348 = vpop.f32.mrb[0].mxu0
        %v1349 = vadd.f32 %v1261, %v1348
        %v1350 = vpop.f32.mrb[0].mxu0
        %1351 = vmatprep.mubr.bf16.mxu0 %v672
        %1352 = vmatmul.mubr.bf16.gmra.mrb[0].mxu0 %v671
        %v1353 = vpop.f32.mrb[0].mxu0
        %v1354 = vadd.f32 %v1266, %v1353
        %v1355 = vpop.f32.mrb[0].mxu0
        %v1356 = vpop.f32.mrb[0].mxu0
        %v1357 = vpop.f32.mrb[0].mxu0
        %1358 = vdwg.mxu0
        %1359 = vmatprep.subr.bf16.mxu0 0
        %1360 = vmatpush1.bf16.msra.mxu0 %v1023
        %1361 = vmatprep.subr.bf16.mxu0 0
        %1362 = vmatpush1.bf16.msra.mxu0 0
        %1363 = vmatprep.subr.bf16.mxu0 0
        %1364 = vmatpush1.bf16.msra.mxu0 0
        %1365 = vmatprep.subr.bf16.mxu0 0
        %1366 = vmatpush1.bf16.msra.mxu0 0
        %1367 = vmatprep.subr.bf16.mxu0 0
        %1368 = vmatpush1.bf16.msra.mxu0 0
        %1369 = vmatprep.subr.bf16.mxu0 0
        %1370 = vmatpush1.bf16.msra.mxu0 0
        %1371 = vmatprep.subr.bf16.mxu0 0
        %1372 = vmatpush1.bf16.msra.mxu0 0
        %1373 = vmatprep.subr.bf16.mxu0 0
        %1374 = vmatpush1.bf16.msra.mxu0 0
        %1375 = vmatprep.subr.bf16.mxu0 0
        %1376 = vmatpush1.bf16.msra.mxu0 0
        %1377 = vmatprep.subr.bf16.mxu0 0
        %1378 = vmatpush1.bf16.msra.mxu0 0
        %1379 = vmatprep.subr.bf16.mxu0 0
        %1380 = vmatpush1.bf16.msra.mxu0 0
        %1381 = vmatprep.subr.bf16.mxu0 0
        %1382 = vmatpush1.bf16.msra.mxu0 0
        %1383 = vmatprep.subr.bf16.mxu0 0
        %1384 = vmatpush1.bf16.msra.mxu0 0
        %1385 = vmatprep.subr.bf16.mxu0 0
        %1386 = vmatpush1.bf16.msra.mxu0 0
        %1387 = vmatprep.subr.bf16.mxu0 0
        %1388 = vmatpush1.bf16.msra.mxu0 0
        %1389 = vmatprep.subr.bf16.mxu0 0
        %1390 = vmatpush1.bf16.msra.mxu0 0
        %1391 = vmatprep.mubr.bf16.mxu0 0
        %1392 = vmatmul.mubr.bf16.gmra.mrb[0].mxu0 %v1075
        %v1393 = vpop.f32.mrb[0].mxu0
        %v1394 = vadd.f32 %v1306, %v1393
        %v1395 = vpop.f32.mrb[0].mxu0
        %v1396 = vpop.f32.mrb[0].mxu0
        %v1397 = vadd.f32 %v1309, %v1396
        %v1398 = vpop.f32.mrb[0].mxu0
        %1399 = vmatprep.mubr.bf16.mxu0 0
        %1400 = vmatmul.mubr.bf16.gmra.mrb[0].mxu0 %v1078
        %v1401 = vpop.f32.mrb[0].mxu0
        %v1402 = vadd.f32 %v1314, %v1401
        %v1403 = vpop.f32.mrb[0].mxu0
        %v1404 = vpop.f32.mrb[0].mxu0
        %v1405 = vadd.f32 %v1317, %v1404
        %v1406 = vpop.f32.mrb[0].mxu0
        %1407 = vmatprep.mubr.bf16.mxu0 0
        %1408 = vmatmul.mubr.bf16.gmra.mrb[0].mxu0 %v1081
        %v1409 = vpop.f32.mrb[0].mxu0
        %v1410 = vadd.f32 %v1322, %v1409
        %v1411 = vpop.f32.mrb[0].mxu0
        %v1412 = vpop.f32.mrb[0].mxu0
        %v1413 = vadd.f32 %v1325, %v1412
        %v1414 = vpop.f32.mrb[0].mxu0
        %1415 = vmatprep.mubr.bf16.mxu0 0
        %1416 = vmatmul.mubr.bf16.gmra.mrb[0].mxu0 %v1084
        %v1417 = vpop.f32.mrb[0].mxu0
        %v1418 = vadd.f32 %v1330, %v1417
        %v1419 = vpop.f32.mrb[0].mxu0
        %v1420 = vpop.f32.mrb[0].mxu0
        %v1421 = vadd.f32 %v1333, %v1420
        %v1422 = vpop.f32.mrb[0].mxu0
        %1423 = vmatprep.mubr.bf16.mxu0 0
        %1424 = vmatmul.mubr.bf16.gmra.mrb[0].mxu0 %v1087
        %v1425 = vpop.f32.mrb[0].mxu0
        %v1426 = vadd.f32 %v1338, %v1425
        %v1427 = vpop.f32.mrb[0].mxu0
        %v1428 = vpop.f32.mrb[0].mxu0
        %v1429 = vadd.f32 %v1341, %v1428
        %v1430 = vpop.f32.mrb[0].mxu0
        %1431 = vmatprep.mubr.bf16.mxu0 0
        %1432 = vmatmul.mubr.bf16.gmra.mrb[0].mxu0 %v1090
        %v1433 = vpop.f32.mrb[0].mxu0
        %v1434 = vadd.f32 %v1346, %v1433
        %v1435 = vpop.f32.mrb[0].mxu0
        %v1436 = vpop.f32.mrb[0].mxu0
        %v1437 = vadd.f32 %v1349, %v1436
        %v1438 = vpop.f32.mrb[0].mxu0
        %1439 = vmatprep.mubr.bf16.mxu0 0
        %1440 = vmatmul.mubr.bf16.gmra.mrb[0].mxu0 %v1093
        %v1441 = vpop.f32.mrb[0].mxu0
        %v1442 = vadd.f32 %v1354, %v1441
        %v1443 = vpop.f32.mrb[0].mxu0
        %v1444 = vpop.f32.mrb[0].mxu0
        %v1445 = vpop.f32.mrb[0].mxu0
        %1446 = vdwg.mxu0
        %v1447 = vmax.f32 %v1394, 0.0
        %v1448 = vmax.f32 %v1397, 0.0
        %v1449 = vmax.f32 %v1402, 0.0
        %v1450 = vmax.f32 %v1405, 0.0
        %v1451 = vmax.f32 %v1410, 0.0
        %v1452 = vmax.f32 %v1413, 0.0
        %v1453 = vmax.f32 %v1418, 0.0
        %v1454 = vmax.f32 %v1421, 0.0
        %v1455 = vmax.f32 %v1426, 0.0
        %v1456 = vmax.f32 %v1429, 0.0
        %v1457 = vmax.f32 %v1434, 0.0
        %v1458 = vmax.f32 %v1437, 0.0
        %v1459 = vmax.f32 %v1442, 0.0
        %v1460 = vpack.c.bf16 %v1448, %v1447
        %v1461 = vpack.c.bf16 %v1450, %v1449
        %v1462 = vpack.c.bf16 %v1452, %v1451
        %v1463 = vpack.c.bf16 %v1454, %v1453
        %v1464 = vpack.c.bf16 %v1456, %v1455
        %v1465 = vpack.c.bf16 %v1458, %v1457
        %v1466 = vpack.c.bf16 %v1459, %v1459
        %v1467 = vld [vmem:[%s3] sm:$0xf]
        %v1468 = vld [vmem:[%s3 + $0x4] sm:$0xf]
        %v1469 = vld [vmem:[%s3 + $0x8] sm:$0xf]
        %v1470 = vld [vmem:[%s3 + $0xc] sm:$0xf]
        %v1471 = vld [vmem:[%s3 + $0x10] sm:$0xf]
        %v1472 = vld [vmem:[%s3 + $0x14] sm:$0xf]
        %v1473 = vld [vmem:[%s3 + $0x18] sm:$0xf]
        %v1474 = vld [vmem:[%s3 + $0x1c] sm:$0xf]
        %v1475 = vld [vmem:[%s3 + $0x20] sm:$0xf]
        %v1476 = vld [vmem:[%s3 + $0x24] sm:$0xf]
        %v1477 = vld [vmem:[%s3 + $0x28] sm:$0xf]
        %v1478 = vld [vmem:[%s3 + $0x2c] sm:$0xf]
        %v1479 = vld [vmem:[%s3 + $0x30] sm:$0xf]
        %v1480 = vld [vmem:[%s3 + $0x34] sm:$0xf]
        %v1481 = vld [vmem:[%s3 + $0x38] sm:$0xf]
        %v1482 = vld [vmem:[%s3 + $0x3c] sm:$0xf]
        %v1483 = vld [vmem:[%s4] sm:$0x1]
        %v1485 = vlaneseq
        %v1486 = vshrl.u32 %v1485, 7
        %v1487 = vsub.s32 0, %v1486
        %v1488 = vrot.slane %v1483, %v1487
        %v1506 = vunpack.c.l.b16 %v1467
        %v1507 = vunpack.c.l.b16 %v1468
        %v1508 = vunpack.c.l.b16 %v1469
        %v1509 = vunpack.c.l.b16 %v1470
        %v1510 = vunpack.c.l.b16 %v1471
        %v1511 = vunpack.c.l.b16 %v1472
        %v1512 = vunpack.c.l.b16 %v1473
        %v1513 = vunpack.c.l.b16 %v1474
        %v1514 = vunpack.c.l.b16 %v1475
        %v1515 = vunpack.c.l.b16 %v1476
        %v1516 = vunpack.c.l.b16 %v1477
        %v1517 = vunpack.c.l.b16 %v1478
        %v1518 = vunpack.c.l.b16 %v1479
        %v1519 = vunpack.c.l.b16 %v1480
        %v1520 = vunpack.c.l.b16 %v1481
        %v1521 = vunpack.c.l.b16 %v1482
        %v1522 = vpack.c.b16 %v1507, %v1506
        %v1523 = vpack.c.b16 %v1509, %v1508
        %v1524 = vpack.c.b16 %v1511, %v1510
        %v1525 = vpack.c.b16 %v1513, %v1512
        %v1526 = vpack.c.b16 %v1515, %v1514
        %v1527 = vpack.c.b16 %v1517, %v1516
        %v1528 = vpack.c.b16 %v1519, %v1518
        %v1529 = vpack.c.b16 %v1521, %v1520
        %1538 = vmatprep.subr.bf16.mxu0 0
        %1539 = vmatpush1.bf16.msra.mxu0 %v1522
        %1540 = vmatprep.subr.bf16.mxu0 0
        %1541 = vmatpush1.bf16.msra.mxu0 %v1523
        %1542 = vmatprep.subr.bf16.mxu0 0
        %1543 = vmatpush1.bf16.msra.mxu0 %v1524
        %1544 = vmatprep.subr.bf16.mxu0 0
        %1545 = vmatpush1.bf16.msra.mxu0 %v1525
        %1546 = vmatprep.subr.bf16.mxu0 0
        %1547 = vmatpush1.bf16.msra.mxu0 %v1526
        %1548 = vmatprep.subr.bf16.mxu0 0
        %1549 = vmatpush1.bf16.msra.mxu0 %v1527
        %1550 = vmatprep.subr.bf16.mxu0 0
        %1551 = vmatpush1.bf16.msra.mxu0 %v1528
        %1552 = vmatprep.subr.bf16.mxu0 0
        %1553 = vmatpush1.bf16.msra.mxu0 %v1529
        %1554 = vmatprep.subr.bf16.mxu0 0
        %1555 = vmatpush1.bf16.msra.mxu0 0
        %1556 = vmatprep.subr.bf16.mxu0 0
        %1557 = vmatpush1.bf16.msra.mxu0 0
        %1558 = vmatprep.subr.bf16.mxu0 0
        %1559 = vmatpush1.bf16.msra.mxu0 0
        %1560 = vmatprep.subr.bf16.mxu0 0
        %1561 = vmatpush1.bf16.msra.mxu0 0
        %1562 = vmatprep.subr.bf16.mxu0 0
        %1563 = vmatpush1.bf16.msra.mxu0 0
        %1564 = vmatprep.subr.bf16.mxu0 0
        %1565 = vmatpush1.bf16.msra.mxu0 0
        %1566 = vmatprep.subr.bf16.mxu0 0
        %1567 = vmatpush1.bf16.msra.mxu0 0
        %1568 = vmatprep.subr.bf16.mxu0 0
        %1569 = vmatpush1.bf16.msra.mxu0 0
        %1570 = vmatprep.mubr.bf16.mxu0 0
        %1571 = vmatmul.mubr.bf16.gmra.mrb[0].mxu0 %v1460
        %v1572 = vpop.f32.mrb[0].mxu0
        %v1573 = vadd.f32 %v1488, %v1572
        %v1574 = vpop.f32.mrb[0].mxu0
        %v1575 = vpop.f32.mrb[0].mxu0
        %v1576 = vadd.f32 %v1488, %v1575
        %v1577 = vpop.f32.mrb[0].mxu0
        %1578 = vmatprep.mubr.bf16.mxu0 0
        %1579 = vmatmul.mubr.bf16.gmra.mrb[0].mxu0 %v1461
        %v1580 = vpop.f32.mrb[0].mxu0
        %v1581 = vadd.f32 %v1488, %v1580
        %v1582 = vpop.f32.mrb[0].mxu0
        %v1583 = vpop.f32.mrb[0].mxu0
        %v1584 = vadd.f32 %v1488, %v1583
        %v1585 = vpop.f32.mrb[0].mxu0
        %1586 = vmatprep.mubr.bf16.mxu0 0
        %1587 = vmatmul.mubr.bf16.gmra.mrb[0].mxu0 %v1462
        %v1588 = vpop.f32.mrb[0].mxu0
        %v1589 = vadd.f32 %v1488, %v1588
        %v1590 = vpop.f32.mrb[0].mxu0
        %v1591 = vpop.f32.mrb[0].mxu0
        %v1592 = vadd.f32 %v1488, %v1591
        %v1593 = vpop.f32.mrb[0].mxu0
        %1594 = vmatprep.mubr.bf16.mxu0 0
        %1595 = vmatmul.mubr.bf16.gmra.mrb[0].mxu0 %v1463
        %v1596 = vpop.f32.mrb[0].mxu0
        %v1597 = vadd.f32 %v1488, %v1596
        %v1598 = vpop.f32.mrb[0].mxu0
        %v1599 = vpop.f32.mrb[0].mxu0
        %v1600 = vadd.f32 %v1488, %v1599
        %v1601 = vpop.f32.mrb[0].mxu0
        %1602 = vmatprep.mubr.bf16.mxu0 0
        %1603 = vmatmul.mubr.bf16.gmra.mrb[0].mxu0 %v1464
        %v1604 = vpop.f32.mrb[0].mxu0
        %v1605 = vadd.f32 %v1488, %v1604
        %v1606 = vpop.f32.mrb[0].mxu0
        %v1607 = vpop.f32.mrb[0].mxu0
        %v1608 = vadd.f32 %v1488, %v1607
        %v1609 = vpop.f32.mrb[0].mxu0
        %1610 = vmatprep.mubr.bf16.mxu0 0
        %1611 = vmatmul.mubr.bf16.gmra.mrb[0].mxu0 %v1465
        %v1612 = vpop.f32.mrb[0].mxu0
        %v1613 = vadd.f32 %v1488, %v1612
        %v1614 = vpop.f32.mrb[0].mxu0
        %v1615 = vpop.f32.mrb[0].mxu0
        %v1616 = vadd.f32 %v1488, %v1615
        %v1617 = vpop.f32.mrb[0].mxu0
        %1618 = vmatprep.mubr.bf16.mxu0 0
        %1619 = vmatmul.mubr.bf16.gmra.mrb[0].mxu0 %v1466
        %v1620 = vpop.f32.mrb[0].mxu0
        %v1621 = vadd.f32 %v1488, %v1620
        %v1622 = vpop.f32.mrb[0].mxu0
        %v1623 = vpop.f32.mrb[0].mxu0
        %v1624 = vpop.f32.mrb[0].mxu0
        %1625 = vdwg.mxu0
        %v1626 = vmax.f32 %v1573, 0.0
        %v1627 = vmax.f32 %v1576, 0.0
        %v1628 = vmax.f32 %v1581, 0.0
        %v1629 = vmax.f32 %v1584, 0.0
        %v1630 = vmax.f32 %v1589, 0.0
        %v1631 = vmax.f32 %v1592, 0.0
        %v1632 = vmax.f32 %v1597, 0.0
        %v1633 = vmax.f32 %v1600, 0.0
        %v1634 = vmax.f32 %v1605, 0.0
        %v1635 = vmax.f32 %v1608, 0.0
        %v1636 = vmax.f32 %v1613, 0.0
        %v1637 = vmax.f32 %v1616, 0.0
        %v1638 = vmax.f32 %v1621, 0.0
        %v1639 = vpack.c.bf16 %v1627, %v1626
        %v1640 = vpack.c.bf16 %v1629, %v1628
        %v1641 = vpack.c.bf16 %v1631, %v1630
        %v1642 = vpack.c.bf16 %v1633, %v1632
        %v1643 = vpack.c.bf16 %v1635, %v1634
        %v1644 = vpack.c.bf16 %v1637, %v1636
        %v1645 = vpack.c.bf16 %v1638, %v1638
        %v1646 = vld [vmem:[%s5] sm:$0xf]
        %v1647 = vld [vmem:[%s5 + $0x4] sm:$0xf]
        %v1648 = vld [vmem:[%s5 + $0x8] sm:$0xf]
        %v1649 = vld [vmem:[%s5 + $0xc] sm:$0xf]
        %v1650 = vld [vmem:[%s5 + $0x10] sm:$0xf]
        %v1651 = vld [vmem:[%s5 + $0x14] sm:$0xf]
        %v1652 = vld [vmem:[%s5 + $0x18] sm:$0xf]
        %v1653 = vld [vmem:[%s5 + $0x1c] sm:$0xf]
        %v1654 = vld [vmem:[%s6] sm:$0x1]
        %v1656 = vlaneseq
        %v1657 = vshrl.u32 %v1656, 7
        %v1658 = vsub.s32 0, %v1657
        %v1659 = vrot.slane %v1654, %v1658
        %v1669 = vunpack.c.l.b16 %v1646
        %v1670 = vunpack.c.l.b16 %v1647
        %v1671 = vunpack.c.l.b16 %v1648
        %v1672 = vunpack.c.l.b16 %v1649
        %v1673 = vunpack.c.l.b16 %v1650
        %v1674 = vunpack.c.l.b16 %v1651
        %v1675 = vunpack.c.l.b16 %v1652
        %v1676 = vunpack.c.l.b16 %v1653
        %v1677 = vpack.c.b16 %v1670, %v1669
        %v1678 = vpack.c.b16 %v1672, %v1671
        %v1679 = vpack.c.b16 %v1674, %v1673
        %v1680 = vpack.c.b16 %v1676, %v1675
        %vm1685 = vcmask 523264
        %v1687 = vsel %vm1685, %v1639, 0
        %v1690 = vsel %vm1685, %v1640, 0
        %v1693 = vsel %vm1685, %v1641, 0
        %v1696 = vsel %vm1685, %v1642, 0
        %v1699 = vsel %vm1685, %v1643, 0
        %v1702 = vsel %vm1685, %v1644, 0
        %v1705 = vsel %vm1685, %v1645, 0
        %1707 = vmatprep.subr.bf16.mxu0 0
        %1708 = vmatpush1.bf16.msra.mxu0 %v1677
        %1709 = vmatprep.subr.bf16.mxu0 0
        %1710 = vmatpush1.bf16.msra.mxu0 %v1678
        %1711 = vmatprep.subr.bf16.mxu0 0
        %1712 = vmatpush1.bf16.msra.mxu0 %v1679
        %1713 = vmatprep.subr.bf16.mxu0 0
        %1714 = vmatpush1.bf16.msra.mxu0 %v1680
        %1715 = vmatprep.subr.bf16.mxu0 0
        %1716 = vmatpush1.bf16.msra.mxu0 0
        %1717 = vmatprep.subr.bf16.mxu0 0
        %1718 = vmatpush1.bf16.msra.mxu0 0
        %1719 = vmatprep.subr.bf16.mxu0 0
        %1720 = vmatpush1.bf16.msra.mxu0 0
        %1721 = vmatprep.subr.bf16.mxu0 0
        %1722 = vmatpush1.bf16.msra.mxu0 0
        %1723 = vmatprep.subr.bf16.mxu0 0
        %1724 = vmatpush1.bf16.msra.mxu0 0
        %1725 = vmatprep.subr.bf16.mxu0 0
        %1726 = vmatpush1.bf16.msra.mxu0 0
        %1727 = vmatprep.subr.bf16.mxu0 0
        %1728 = vmatpush1.bf16.msra.mxu0 0
        %1729 = vmatprep.subr.bf16.mxu0 0
        %1730 = vmatpush1.bf16.msra.mxu0 0
        %1731 = vmatprep.subr.bf16.mxu0 0
        %1732 = vmatpush1.bf16.msra.mxu0 0
        %1733 = vmatprep.subr.bf16.mxu0 0
        %1734 = vmatpush1.bf16.msra.mxu0 0
        %1735 = vmatprep.subr.bf16.mxu0 0
        %1736 = vmatpush1.bf16.msra.mxu0 0
        %1737 = vmatprep.subr.bf16.mxu0 0
        %1738 = vmatpush1.bf16.msra.mxu0 0
        %1739 = vmatprep.mubr.bf16.mxu0 0
        %1740 = vmatmul.mubr.bf16.gmra.mrb[0].mxu0 %v1687
        %v1741 = vpop.f32.mrb[0].mxu0
        %v1742 = vadd.f32 %v1659, %v1741
        %v1743 = vpop.f32.mrb[0].mxu0
        %v1744 = vpop.f32.mrb[0].mxu0
        %v1745 = vadd.f32 %v1659, %v1744
        %v1746 = vpop.f32.mrb[0].mxu0
        %1747 = vmatprep.mubr.bf16.mxu0 0
        %1748 = vmatmul.mubr.bf16.gmra.mrb[0].mxu0 %v1690
        %v1749 = vpop.f32.mrb[0].mxu0
        %v1750 = vadd.f32 %v1659, %v1749
        %v1751 = vpop.f32.mrb[0].mxu0
        %v1752 = vpop.f32.mrb[0].mxu0
        %v1753 = vadd.f32 %v1659, %v1752
        %v1754 = vpop.f32.mrb[0].mxu0
        %1755 = vmatprep.mubr.bf16.mxu0 0
        %1756 = vmatmul.mubr.bf16.gmra.mrb[0].mxu0 %v1693
        %v1757 = vpop.f32.mrb[0].mxu0
        %v1758 = vadd.f32 %v1659, %v1757
        %v1759 = vpop.f32.mrb[0].mxu0
        %v1760 = vpop.f32.mrb[0].mxu0
        %v1761 = vadd.f32 %v1659, %v1760
        %v1762 = vpop.f32.mrb[0].mxu0
        %1763 = vmatprep.mubr.bf16.mxu0 0
        %1764 = vmatmul.mubr.bf16.gmra.mrb[0].mxu0 %v1696
        %v1765 = vpop.f32.mrb[0].mxu0
        %v1766 = vadd.f32 %v1659, %v1765
        %v1767 = vpop.f32.mrb[0].mxu0
        %v1768 = vpop.f32.mrb[0].mxu0
        %v1769 = vadd.f32 %v1659, %v1768
        %v1770 = vpop.f32.mrb[0].mxu0
        %1771 = vmatprep.mubr.bf16.mxu0 0
        %1772 = vmatmul.mubr.bf16.gmra.mrb[0].mxu0 %v1699
        %v1773 = vpop.f32.mrb[0].mxu0
        %v1774 = vadd.f32 %v1659, %v1773
        %v1775 = vpop.f32.mrb[0].mxu0
        %v1776 = vpop.f32.mrb[0].mxu0
        %v1777 = vadd.f32 %v1659, %v1776
        %v1778 = vpop.f32.mrb[0].mxu0
        %1779 = vmatprep.mubr.bf16.mxu0 0
        %1780 = vmatmul.mubr.bf16.gmra.mrb[0].mxu0 %v1702
        %v1781 = vpop.f32.mrb[0].mxu0
        %v1782 = vadd.f32 %v1659, %v1781
        %v1783 = vpop.f32.mrb[0].mxu0
        %v1784 = vpop.f32.mrb[0].mxu0
        %v1785 = vadd.f32 %v1659, %v1784
        %v1786 = vpop.f32.mrb[0].mxu0
        %1787 = vmatprep.mubr.bf16.mxu0 0
        %1788 = vmatmul.mubr.bf16.gmra.mrb[0].mxu0 %v1705
        %v1789 = vpop.f32.mrb[0].mxu0
        %v1790 = vadd.f32 %v1659, %v1789
        %v1791 = vpop.f32.mrb[0].mxu0
        %v1792 = vpop.f32.mrb[0].mxu0
        %v1793 = vpop.f32.mrb[0].mxu0
        %1794 = vdwg.mxu0
        %v1795 = vmax.f32 %v1742, 0.0
        %v1796 = vmax.f32 %v1745, 0.0
        %v1797 = vmax.f32 %v1750, 0.0
        %v1798 = vmax.f32 %v1753, 0.0
        %v1799 = vmax.f32 %v1758, 0.0
        %v1800 = vmax.f32 %v1761, 0.0
        %v1801 = vmax.f32 %v1766, 0.0
        %v1802 = vmax.f32 %v1769, 0.0
        %v1803 = vmax.f32 %v1774, 0.0
        %v1804 = vmax.f32 %v1777, 0.0
        %v1805 = vmax.f32 %v1782, 0.0
        %v1806 = vmax.f32 %v1785, 0.0
        %v1807 = vmax.f32 %v1790, 0.0
        %v1808 = vpack.c.bf16 %v1796, %v1795
        %v1809 = vpack.c.bf16 %v1798, %v1797
        %v1810 = vpack.c.bf16 %v1800, %v1799
        %v1811 = vpack.c.bf16 %v1802, %v1801
        %v1812 = vpack.c.bf16 %v1804, %v1803
        %v1813 = vpack.c.bf16 %v1806, %v1805
        %v1814 = vpack.c.bf16 %v1807, %v1807
        %v1815 = vld [vmem:[%s7] sm:$0xf]
        %v1816 = vld [vmem:[%s7 + $0x4] sm:$0x3]
        %v1817 = vld [vmem:[%s8] sm:$0x1]
        %v1819 = vlaneseq
        %v1820 = vshrl.u32 %v1819, 7
        %v1821 = vsub.s32 0, %v1820
        %v1822 = vrot.slane %v1817, %v1821
        %v1826 = vunpack.c.l.b16 %v1815
        %v1827 = vunpack.c.l.b16 %v1816
        %v1828 = vpack.c.b16 %v1827, %v1826
        %vm1829 = vcmask 97280
        %v1831 = vsel %vm1829, %v1808, 0
        %v1834 = vsel %vm1829, %v1809, 0
        %v1837 = vsel %vm1829, %v1810, 0
        %v1840 = vsel %vm1829, %v1811, 0
        %v1843 = vsel %vm1829, %v1812, 0
        %v1846 = vsel %vm1829, %v1813, 0
        %v1849 = vsel %vm1829, %v1814, 0
        %vm1851 = vcmask 1045504
        %v1853 = vsel %vm1851, %v1828, 0
        %1855 = vmatprep.subr.bf16.mxu0 0
        %1856 = vmatpush1.bf16.msra.mxu0 %v1853
        %1857 = vmatprep.subr.bf16.mxu0 0
        %1858 = vmatpush1.bf16.msra.mxu0 0
        %1859 = vmatprep.subr.bf16.mxu0 0
        %1860 = vmatpush1.bf16.msra.mxu0 0
        %1861 = vmatprep.subr.bf16.mxu0 0
        %1862 = vmatpush1.bf16.msra.mxu0 0
        %1863 = vmatprep.subr.bf16.mxu0 0
        %1864 = vmatpush1.bf16.msra.mxu0 0
        %1865 = vmatprep.subr.bf16.mxu0 0
        %1866 = vmatpush1.bf16.msra.mxu0 0
        %1867 = vmatprep.subr.bf16.mxu0 0
        %1868 = vmatpush1.bf16.msra.mxu0 0
        %1869 = vmatprep.subr.bf16.mxu0 0
        %1870 = vmatpush1.bf16.msra.mxu0 0
        %1871 = vmatprep.subr.bf16.mxu0 0
        %1872 = vmatpush1.bf16.msra.mxu0 0
        %1873 = vmatprep.subr.bf16.mxu0 0
        %1874 = vmatpush1.bf16.msra.mxu0 0
        %1875 = vmatprep.subr.bf16.mxu0 0
        %1876 = vmatpush1.bf16.msra.mxu0 0
        %1877 = vmatprep.subr.bf16.mxu0 0
        %1878 = vmatpush1.bf16.msra.mxu0 0
        %1879 = vmatprep.subr.bf16.mxu0 0
        %1880 = vmatpush1.bf16.msra.mxu0 0
        %1881 = vmatprep.subr.bf16.mxu0 0
        %1882 = vmatpush1.bf16.msra.mxu0 0
        %1883 = vmatprep.subr.bf16.mxu0 0
        %1884 = vmatpush1.bf16.msra.mxu0 0
        %1885 = vmatprep.subr.bf16.mxu0 0
        %1886 = vmatpush1.bf16.msra.mxu0 0
        %1887 = vmatprep.mubr.bf16.mxu0 0
        %1888 = vmatmul.mubr.bf16.gmra.mrb[0].mxu0 %v1831
        %v1889 = vpop.f32.mrb[0].mxu0
        %v1890 = vadd.f32 %v1822, %v1889
        %v1891 = vpop.f32.mrb[0].mxu0
        %v1892 = vpop.f32.mrb[0].mxu0
        %v1893 = vadd.f32 %v1822, %v1892
        %v1894 = vpop.f32.mrb[0].mxu0
        %1895 = vmatprep.mubr.bf16.mxu0 0
        %1896 = vmatmul.mubr.bf16.gmra.mrb[0].mxu0 %v1834
        %v1897 = vpop.f32.mrb[0].mxu0
        %v1898 = vadd.f32 %v1822, %v1897
        %v1899 = vpop.f32.mrb[0].mxu0
        %v1900 = vpop.f32.mrb[0].mxu0
        %v1901 = vadd.f32 %v1822, %v1900
        %v1902 = vpop.f32.mrb[0].mxu0
        %1903 = vmatprep.mubr.bf16.mxu0 0
        %1904 = vmatmul.mubr.bf16.gmra.mrb[0].mxu0 %v1837
        %v1905 = vpop.f32.mrb[0].mxu0
        %v1906 = vadd.f32 %v1822, %v1905
        %v1907 = vpop.f32.mrb[0].mxu0
        %v1908 = vpop.f32.mrb[0].mxu0
        %v1909 = vadd.f32 %v1822, %v1908
        %v1910 = vpop.f32.mrb[0].mxu0
        %1911 = vmatprep.mubr.bf16.mxu0 0
        %1912 = vmatmul.mubr.bf16.gmra.mrb[0].mxu0 %v1840
        %v1913 = vpop.f32.mrb[0].mxu0
        %v1914 = vadd.f32 %v1822, %v1913
        %v1915 = vpop.f32.mrb[0].mxu0
        %v1916 = vpop.f32.mrb[0].mxu0
        %v1917 = vadd.f32 %v1822, %v1916
        %v1918 = vpop.f32.mrb[0].mxu0
        %1919 = vmatprep.mubr.bf16.mxu0 0
        %1920 = vmatmul.mubr.bf16.gmra.mrb[0].mxu0 %v1843
        %v1921 = vpop.f32.mrb[0].mxu0
        %v1922 = vadd.f32 %v1822, %v1921
        %v1923 = vpop.f32.mrb[0].mxu0
        %v1924 = vpop.f32.mrb[0].mxu0
        %v1925 = vadd.f32 %v1822, %v1924
        %v1926 = vpop.f32.mrb[0].mxu0
        %1927 = vmatprep.mubr.bf16.mxu0 0
        %1928 = vmatmul.mubr.bf16.gmra.mrb[0].mxu0 %v1846
        %v1929 = vpop.f32.mrb[0].mxu0
        %v1930 = vadd.f32 %v1822, %v1929
        %v1931 = vpop.f32.mrb[0].mxu0
        %v1932 = vpop.f32.mrb[0].mxu0
        %v1933 = vadd.f32 %v1822, %v1932
        %v1934 = vpop.f32.mrb[0].mxu0
        %1935 = vmatprep.mubr.bf16.mxu0 0
        %1936 = vmatmul.mubr.bf16.gmra.mrb[0].mxu0 %v1849
        %v1937 = vpop.f32.mrb[0].mxu0
        %v1938 = vadd.f32 %v1822, %v1937
        %v1939 = vpop.f32.mrb[0].mxu0
        %v1940 = vpop.f32.mrb[0].mxu0
        %v1941 = vpop.f32.mrb[0].mxu0
        %1942 = vdwg.mxu0
        %v1943 = vmax.f32 %v1890, 0.0
        %v1944 = vmax.f32 %v1893, 0.0
        %v1945 = vmax.f32 %v1898, 0.0
        %v1946 = vmax.f32 %v1901, 0.0
        %v1947 = vmax.f32 %v1906, 0.0
        %v1948 = vmax.f32 %v1909, 0.0
        %v1949 = vmax.f32 %v1914, 0.0
        %v1950 = vmax.f32 %v1917, 0.0
        %v1951 = vmax.f32 %v1922, 0.0
        %v1952 = vmax.f32 %v1925, 0.0
        %v1953 = vmax.f32 %v1930, 0.0
        %v1954 = vmax.f32 %v1933, 0.0
        %v1955 = vmax.f32 %v1938, 0.0
        %v1956 = vpack.c.bf16 %v1944, %v1943
        %v1957 = vpack.c.bf16 %v1946, %v1945
        %v1958 = vpack.c.bf16 %v1948, %v1947
        %v1959 = vpack.c.bf16 %v1950, %v1949
        %v1960 = vpack.c.bf16 %v1952, %v1951
        %v1961 = vpack.c.bf16 %v1954, %v1953
        %v1962 = vpack.c.bf16 %v1955, %v1955
        %v1963 = vld [vmem:[%s9] sm:$0xf]
        %v1964 = vld [vmem:[%s9 + $0x4] sm:$0x3]
        %v1965 = vld [vmem:[%s10] sm:$0x1]
        %v1967 = vlaneseq
        %v1968 = vshrl.u32 %v1967, 7
        %v1969 = vsub.s32 0, %v1968
        %v1970 = vrot.slane %v1965, %v1969
        %v1974 = vunpack.c.l.b16 %v1963
        %v1975 = vunpack.c.l.b16 %v1964
        %v1976 = vpack.c.b16 %v1975, %v1974
        %v1978 = vsel %vm1829, %v1956, 0
        %v1981 = vsel %vm1829, %v1957, 0
        %v1984 = vsel %vm1829, %v1958, 0
        %v1987 = vsel %vm1829, %v1959, 0
        %v1990 = vsel %vm1829, %v1960, 0
        %v1993 = vsel %vm1829, %v1961, 0
        %v1996 = vsel %vm1829, %v1962, 0
        %v1999 = vsel %vm1851, %v1976, 0
        %2001 = vmatprep.subr.bf16.mxu0 0
        %2002 = vmatpush1.bf16.msra.mxu0 %v1999
        %2003 = vmatprep.subr.bf16.mxu0 0
        %2004 = vmatpush1.bf16.msra.mxu0 0
        %2005 = vmatprep.subr.bf16.mxu0 0
        %2006 = vmatpush1.bf16.msra.mxu0 0
        %2007 = vmatprep.subr.bf16.mxu0 0
        %2008 = vmatpush1.bf16.msra.mxu0 0
        %2009 = vmatprep.subr.bf16.mxu0 0
        %2010 = vmatpush1.bf16.msra.mxu0 0
        %2011 = vmatprep.subr.bf16.mxu0 0
        %2012 = vmatpush1.bf16.msra.mxu0 0
        %2013 = vmatprep.subr.bf16.mxu0 0
        %2014 = vmatpush1.bf16.msra.mxu0 0
        %2015 = vmatprep.subr.bf16.mxu0 0
        %2016 = vmatpush1.bf16.msra.mxu0 0
        %2017 = vmatprep.subr.bf16.mxu0 0
        %2018 = vmatpush1.bf16.msra.mxu0 0
        %2019 = vmatprep.subr.bf16.mxu0 0
        %2020 = vmatpush1.bf16.msra.mxu0 0
        %2021 = vmatprep.subr.bf16.mxu0 0
        %2022 = vmatpush1.bf16.msra.mxu0 0
        %2023 = vmatprep.subr.bf16.mxu0 0
        %2024 = vmatpush1.bf16.msra.mxu0 0
        %2025 = vmatprep.subr.bf16.mxu0 0
        %2026 = vmatpush1.bf16.msra.mxu0 0
        %2027 = vmatprep.subr.bf16.mxu0 0
        %2028 = vmatpush1.bf16.msra.mxu0 0
        %2029 = vmatprep.subr.bf16.mxu0 0
        %2030 = vmatpush1.bf16.msra.mxu0 0
        %2031 = vmatprep.subr.bf16.mxu0 0
        %2032 = vmatpush1.bf16.msra.mxu0 0
        %2033 = vmatprep.mubr.bf16.mxu0 0
        %2034 = vmatmul.mubr.bf16.gmra.mrb[0].mxu0 %v1978
        %v2035 = vpop.f32.mrb[0].mxu0
        %v2036 = vadd.f32 %v1970, %v2035
        %v2037 = vpop.f32.mrb[0].mxu0
        %v2038 = vpop.f32.mrb[0].mxu0
        %v2039 = vadd.f32 %v1970, %v2038
        %v2040 = vpop.f32.mrb[0].mxu0
        %2041 = vmatprep.mubr.bf16.mxu0 0
        %2042 = vmatmul.mubr.bf16.gmra.mrb[0].mxu0 %v1981
        %v2043 = vpop.f32.mrb[0].mxu0
        %v2044 = vadd.f32 %v1970, %v2043
        %v2045 = vpop.f32.mrb[0].mxu0
        %v2046 = vpop.f32.mrb[0].mxu0
        %v2047 = vadd.f32 %v1970, %v2046
        %v2048 = vpop.f32.mrb[0].mxu0
        %2049 = vmatprep.mubr.bf16.mxu0 0
        %2050 = vmatmul.mubr.bf16.gmra.mrb[0].mxu0 %v1984
        %v2051 = vpop.f32.mrb[0].mxu0
        %v2052 = vadd.f32 %v1970, %v2051
        %v2053 = vpop.f32.mrb[0].mxu0
        %v2054 = vpop.f32.mrb[0].mxu0
        %v2055 = vadd.f32 %v1970, %v2054
        %v2056 = vpop.f32.mrb[0].mxu0
        %2057 = vmatprep.mubr.bf16.mxu0 0
        %2058 = vmatmul.mubr.bf16.gmra.mrb[0].mxu0 %v1987
        %v2059 = vpop.f32.mrb[0].mxu0
        %v2060 = vadd.f32 %v1970, %v2059
        %v2061 = vpop.f32.mrb[0].mxu0
        %v2062 = vpop.f32.mrb[0].mxu0
        %v2063 = vadd.f32 %v1970, %v2062
        %v2064 = vpop.f32.mrb[0].mxu0
        %2065 = vmatprep.mubr.bf16.mxu0 0
        %2066 = vmatmul.mubr.bf16.gmra.mrb[0].mxu0 %v1990
        %v2067 = vpop.f32.mrb[0].mxu0
        %v2068 = vadd.f32 %v1970, %v2067
        %v2069 = vpop.f32.mrb[0].mxu0
        %v2070 = vpop.f32.mrb[0].mxu0
        %v2071 = vadd.f32 %v1970, %v2070
        %v2072 = vpop.f32.mrb[0].mxu0
        %2073 = vmatprep.mubr.bf16.mxu0 0
        %2074 = vmatmul.mubr.bf16.gmra.mrb[0].mxu0 %v1993
        %v2075 = vpop.f32.mrb[0].mxu0
        %v2076 = vadd.f32 %v1970, %v2075
        %v2077 = vpop.f32.mrb[0].mxu0
        %v2078 = vpop.f32.mrb[0].mxu0
        %v2079 = vadd.f32 %v1970, %v2078
        %v2080 = vpop.f32.mrb[0].mxu0
        %2081 = vmatprep.mubr.bf16.mxu0 0
        %2082 = vmatmul.mubr.bf16.gmra.mrb[0].mxu0 %v1996
        %v2083 = vpop.f32.mrb[0].mxu0
        %v2084 = vadd.f32 %v1970, %v2083
        %v2085 = vpop.f32.mrb[0].mxu0
        %v2086 = vpop.f32.mrb[0].mxu0
        %v2087 = vpop.f32.mrb[0].mxu0
        %2088 = vdwg.mxu0
        %v2089 = vmax.f32 %v2036, 0.0
        %v2090 = vmax.f32 %v2039, 0.0
        %v2091 = vmax.f32 %v2044, 0.0
        %v2092 = vmax.f32 %v2047, 0.0
        %v2093 = vmax.f32 %v2052, 0.0
        %v2094 = vmax.f32 %v2055, 0.0
        %v2095 = vmax.f32 %v2060, 0.0
        %v2096 = vmax.f32 %v2063, 0.0
        %v2097 = vmax.f32 %v2068, 0.0
        %v2098 = vmax.f32 %v2071, 0.0
        %v2099 = vmax.f32 %v2076, 0.0
        %v2100 = vmax.f32 %v2079, 0.0
        %v2101 = vmax.f32 %v2084, 0.0
        %v2102 = vpack.c.bf16 %v2090, %v2089
        %v2103 = vpack.c.bf16 %v2092, %v2091
        %v2104 = vpack.c.bf16 %v2094, %v2093
        %v2105 = vpack.c.bf16 %v2096, %v2095
        %v2106 = vpack.c.bf16 %v2098, %v2097
        %v2107 = vpack.c.bf16 %v2100, %v2099
        %v2108 = vpack.c.bf16 %v2101, %v2101
        %v2109 = vld [vmem:[%s11] sm:$0xf]
        %v2110 = vld [vmem:[%s11 + $0x4] sm:$0xf]
        %v2111 = vld [vmem:[%s11 + $0x8] sm:$0xf]
        %v2112 = vld [vmem:[%s11 + $0xc] sm:$0xf]
        %v2113 = vld [vmem:[%s11 + $0x10] sm:$0xf]
        %v2114 = vld [vmem:[%s11 + $0x14] sm:$0xf]
        %v2115 = vld [vmem:[%s11 + $0x18] sm:$0xf]
        %v2116 = vld [vmem:[%s11 + $0x1c] sm:$0xf]
        %v2117 = vld [vmem:[%s12] sm:$0x1]
        %v2119 = vlaneseq
        %v2120 = vshrl.u32 %v2119, 7
        %v2121 = vsub.s32 0, %v2120
        %v2122 = vrot.slane %v2117, %v2121
        %v2132 = vunpack.c.l.b16 %v2109
        %v2133 = vunpack.c.l.b16 %v2110
        %v2134 = vunpack.c.l.b16 %v2111
        %v2135 = vunpack.c.l.b16 %v2112
        %v2136 = vunpack.c.l.b16 %v2113
        %v2137 = vunpack.c.l.b16 %v2114
        %v2138 = vunpack.c.l.b16 %v2115
        %v2139 = vunpack.c.l.b16 %v2116
        %v2140 = vpack.c.b16 %v2133, %v2132
        %v2141 = vpack.c.b16 %v2135, %v2134
        %v2142 = vpack.c.b16 %v2137, %v2136
        %v2143 = vpack.c.b16 %v2139, %v2138
        %v2149 = vsel %vm1685, %v2102, 0
        %v2152 = vsel %vm1685, %v2103, 0
        %v2155 = vsel %vm1685, %v2104, 0
        %v2158 = vsel %vm1685, %v2105, 0
        %v2161 = vsel %vm1685, %v2106, 0
        %v2164 = vsel %vm1685, %v2107, 0
        %v2167 = vsel %vm1685, %v2108, 0
        %2169 = vmatprep.subr.bf16.mxu0 0
        %2170 = vmatpush1.bf16.msra.mxu0 %v2140
        %2171 = vmatprep.subr.bf16.mxu0 0
        %2172 = vmatpush1.bf16.msra.mxu0 %v2141
        %2173 = vmatprep.subr.bf16.mxu0 0
        %2174 = vmatpush1.bf16.msra.mxu0 %v2142
        %2175 = vmatprep.subr.bf16.mxu0 0
        %2176 = vmatpush1.bf16.msra.mxu0 %v2143
        %2177 = vmatprep.subr.bf16.mxu0 0
        %2178 = vmatpush1.bf16.msra.mxu0 0
        %2179 = vmatprep.subr.bf16.mxu0 0
        %2180 = vmatpush1.bf16.msra.mxu0 0
        %2181 = vmatprep.subr.bf16.mxu0 0
        %2182 = vmatpush1.bf16.msra.mxu0 0
        %2183 = vmatprep.subr.bf16.mxu0 0
        %2184 = vmatpush1.bf16.msra.mxu0 0
        %2185 = vmatprep.subr.bf16.mxu0 0
        %2186 = vmatpush1.bf16.msra.mxu0 0
        %2187 = vmatprep.subr.bf16.mxu0 0
        %2188 = vmatpush1.bf16.msra.mxu0 0
        %2189 = vmatprep.subr.bf16.mxu0 0
        %2190 = vmatpush1.bf16.msra.mxu0 0
        %2191 = vmatprep.subr.bf16.mxu0 0
        %2192 = vmatpush1.bf16.msra.mxu0 0
        %2193 = vmatprep.subr.bf16.mxu0 0
        %2194 = vmatpush1.bf16.msra.mxu0 0
        %2195 = vmatprep.subr.bf16.mxu0 0
        %2196 = vmatpush1.bf16.msra.mxu0 0
        %2197 = vmatprep.subr.bf16.mxu0 0
        %2198 = vmatpush1.bf16.msra.mxu0 0
        %2199 = vmatprep.subr.bf16.mxu0 0
        %2200 = vmatpush1.bf16.msra.mxu0 0
        %2201 = vmatprep.mubr.bf16.mxu0 0
        %2202 = vmatmul.mubr.bf16.gmra.mrb[0].mxu0 %v2149
        %v2203 = vpop.f32.mrb[0].mxu0
        %v2204 = vadd.f32 %v2122, %v2203
        %v2205 = vpop.f32.mrb[0].mxu0
        %v2206 = vpop.f32.mrb[0].mxu0
        %v2207 = vadd.f32 %v2122, %v2206
        %v2208 = vpop.f32.mrb[0].mxu0
        %2209 = vmatprep.mubr.bf16.mxu0 0
        %2210 = vmatmul.mubr.bf16.gmra.mrb[0].mxu0 %v2152
        %v2211 = vpop.f32.mrb[0].mxu0
        %v2212 = vadd.f32 %v2122, %v2211
        %v2213 = vpop.f32.mrb[0].mxu0
        %v2214 = vpop.f32.mrb[0].mxu0
        %v2215 = vadd.f32 %v2122, %v2214
        %v2216 = vpop.f32.mrb[0].mxu0
        %2217 = vmatprep.mubr.bf16.mxu0 0
        %2218 = vmatmul.mubr.bf16.gmra.mrb[0].mxu0 %v2155
        %v2219 = vpop.f32.mrb[0].mxu0
        %v2220 = vadd.f32 %v2122, %v2219
        %v2221 = vpop.f32.mrb[0].mxu0
        %v2222 = vpop.f32.mrb[0].mxu0
        %v2223 = vadd.f32 %v2122, %v2222
        %v2224 = vpop.f32.mrb[0].mxu0
        %2225 = vmatprep.mubr.bf16.mxu0 0
        %2226 = vmatmul.mubr.bf16.gmra.mrb[0].mxu0 %v2158
        %v2227 = vpop.f32.mrb[0].mxu0
        %v2228 = vadd.f32 %v2122, %v2227
        %v2229 = vpop.f32.mrb[0].mxu0
        %v2230 = vpop.f32.mrb[0].mxu0
        %v2231 = vadd.f32 %v2122, %v2230
        %v2232 = vpop.f32.mrb[0].mxu0
        %2233 = vmatprep.mubr.bf16.mxu0 0
        %2234 = vmatmul.mubr.bf16.gmra.mrb[0].mxu0 %v2161
        %v2235 = vpop.f32.mrb[0].mxu0
        %v2236 = vadd.f32 %v2122, %v2235
        %v2237 = vpop.f32.mrb[0].mxu0
        %v2238 = vpop.f32.mrb[0].mxu0
        %v2239 = vadd.f32 %v2122, %v2238
        %v2240 = vpop.f32.mrb[0].mxu0
        %2241 = vmatprep.mubr.bf16.mxu0 0
        %2242 = vmatmul.mubr.bf16.gmra.mrb[0].mxu0 %v2164
        %v2243 = vpop.f32.mrb[0].mxu0
        %v2244 = vadd.f32 %v2122, %v2243
        %v2245 = vpop.f32.mrb[0].mxu0
        %v2246 = vpop.f32.mrb[0].mxu0
        %v2247 = vadd.f32 %v2122, %v2246
        %v2248 = vpop.f32.mrb[0].mxu0
        %2249 = vmatprep.mubr.bf16.mxu0 0
        %2250 = vmatmul.mubr.bf16.gmra.mrb[0].mxu0 %v2167
        %v2251 = vpop.f32.mrb[0].mxu0
        %v2252 = vadd.f32 %v2122, %v2251
        %v2253 = vpop.f32.mrb[0].mxu0
        %v2254 = vpop.f32.mrb[0].mxu0
        %v2255 = vpop.f32.mrb[0].mxu0
        %2256 = vdwg.mxu0
        %v2257 = vmax.f32 %v2204, 0.0
        %v2258 = vmax.f32 %v2207, 0.0
        %v2259 = vmax.f32 %v2212, 0.0
        %v2260 = vmax.f32 %v2215, 0.0
        %v2261 = vmax.f32 %v2220, 0.0
        %v2262 = vmax.f32 %v2223, 0.0
        %v2263 = vmax.f32 %v2228, 0.0
        %v2264 = vmax.f32 %v2231, 0.0
        %v2265 = vmax.f32 %v2236, 0.0
        %v2266 = vmax.f32 %v2239, 0.0
        %v2267 = vmax.f32 %v2244, 0.0
        %v2268 = vmax.f32 %v2247, 0.0
        %v2269 = vmax.f32 %v2252, 0.0
        %v2270 = vpack.c.bf16 %v2258, %v2257
        %v2271 = vpack.c.bf16 %v2260, %v2259
        %v2272 = vpack.c.bf16 %v2262, %v2261
        %v2273 = vpack.c.bf16 %v2264, %v2263
        %v2274 = vpack.c.bf16 %v2266, %v2265
        %v2275 = vpack.c.bf16 %v2268, %v2267
        %v2276 = vpack.c.bf16 %v2269, %v2269
        %v2277 = vld [vmem:[%s13] sm:$0xff]
        %v2278 = vld [vmem:[%s13 + $0x8] sm:$0xff]
        %v2279 = vld [vmem:[%s13 + $0x10] sm:$0xff]
        %v2280 = vld [vmem:[%s13 + $0x18] sm:$0xf]
        %v2281 = vld [vmem:[%s13 + $0x1c] sm:$0xff]
        %v2282 = vld [vmem:[%s13 + $0x24] sm:$0xff]
        %v2283 = vld [vmem:[%s13 + $0x2c] sm:$0xff]
        %v2284 = vld [vmem:[%s13 + $0x34] sm:$0xf]
        %v2285 = vld [vmem:[%s13 + $0x38] sm:$0xff]
        %v2286 = vld [vmem:[%s13 + $0x40] sm:$0xff]
        %v2287 = vld [vmem:[%s13 + $0x48] sm:$0xff]
        %v2288 = vld [vmem:[%s13 + $0x50] sm:$0xf]
        %v2289 = vld [vmem:[%s13 + $0x54] sm:$0xff]
        %v2290 = vld [vmem:[%s13 + $0x5c] sm:$0xff]
        %v2291 = vld [vmem:[%s13 + $0x64] sm:$0xff]
        %v2292 = vld [vmem:[%s13 + $0x6c] sm:$0xf]
        %v2293 = vld [vmem:[%s13 + $0x70] sm:$0xff]
        %v2294 = vld [vmem:[%s13 + $0x78] sm:$0xff]
        %v2295 = vld [vmem:[%s13 + $0x80] sm:$0xff]
        %v2296 = vld [vmem:[%s13 + $0x88] sm:$0xf]
        %v2297 = vld [vmem:[%s13 + $0x8c] sm:$0xff]
        %v2298 = vld [vmem:[%s13 + $0x94] sm:$0xff]
        %v2299 = vld [vmem:[%s13 + $0x9c] sm:$0xff]
        %v2300 = vld [vmem:[%s13 + $0xa4] sm:$0xf]
        %v2301 = vld [vmem:[%s13 + $0xa8] sm:$0xff]
        %v2302 = vld [vmem:[%s13 + $0xb0] sm:$0xff]
        %v2303 = vld [vmem:[%s13 + $0xb8] sm:$0xff]
        %v2304 = vld [vmem:[%s13 + $0xc0] sm:$0xf]
        %v2305 = vld [vmem:[%s13 + $0xc4] sm:$0xff]
        %v2306 = vld [vmem:[%s13 + $0xcc] sm:$0xff]
        %v2307 = vld [vmem:[%s13 + $0xd4] sm:$0xff]
        %v2308 = vld [vmem:[%s13 + $0xdc] sm:$0xf]
        %v2309 = vld [vmem:[%s13 + $0xe0] sm:$0xff]
        %v2310 = vld [vmem:[%s13 + $0xe8] sm:$0xff]
        %v2311 = vld [vmem:[%s13 + $0xf0] sm:$0xff]
        %v2312 = vld [vmem:[%s13 + $0xf8] sm:$0xf]
        %v2313 = vld [vmem:[%s13 + $0xfc] sm:$0xff]
        %v2314 = vld [vmem:[%s13 + $0x104] sm:$0xff]
        %v2315 = vld [vmem:[%s13 + $0x10c] sm:$0xff]
        %v2316 = vld [vmem:[%s13 + $0x114] sm:$0xf]
        %v2317 = vld [vmem:[%s13 + $0x118] sm:$0xff]
        %v2318 = vld [vmem:[%s13 + $0x120] sm:$0xff]
        %v2319 = vld [vmem:[%s13 + $0x128] sm:$0xff]
        %v2320 = vld [vmem:[%s13 + $0x130] sm:$0xf]
        %v2321 = vld [vmem:[%s13 + $0x134] sm:$0xff]
        %v2322 = vld [vmem:[%s13 + $0x13c] sm:$0xff]
        %v2323 = vld [vmem:[%s13 + $0x144] sm:$0xff]
        %v2324 = vld [vmem:[%s13 + $0x14c] sm:$0xf]
        %v2325 = vld [vmem:[%s13 + $0x150] sm:$0xff]
        %v2326 = vld [vmem:[%s13 + $0x158] sm:$0xff]
        %v2327 = vld [vmem:[%s13 + $0x160] sm:$0xff]
        %v2328 = vld [vmem:[%s13 + $0x168] sm:$0xf]
        %v2329 = vld [vmem:[%s13 + $0x16c] sm:$0xff]
        %v2330 = vld [vmem:[%s13 + $0x174] sm:$0xff]
        %v2331 = vld [vmem:[%s13 + $0x17c] sm:$0xff]
        %v2332 = vld [vmem:[%s13 + $0x184] sm:$0xf]
        %v2333 = vld [vmem:[%s13 + $0x188] sm:$0xff]
        %v2334 = vld [vmem:[%s13 + $0x190] sm:$0xff]
        %v2335 = vld [vmem:[%s13 + $0x198] sm:$0xff]
        %v2336 = vld [vmem:[%s13 + $0x1a0] sm:$0xf]
        %v2337 = vld [vmem:[%s13 + $0x1a4] sm:$0xff]
        %v2338 = vld [vmem:[%s13 + $0x1ac] sm:$0xff]
        %v2339 = vld [vmem:[%s13 + $0x1b4] sm:$0xff]
        %v2340 = vld [vmem:[%s13 + $0x1bc] sm:$0xf]
        %v2341 = vld [vmem:[%s14] sm:$0x7f]
        %v2343 = vlaneseq
        %v2344 = vshrl.u32 %v2343, 7
        %v2345 = vsub.s32 0, %v2344
        %v2346 = vrot.slane %v2341, %v2345
        %v2347 = vlaneseq
        %v2348 = vshrl.u32 %v2347, 7
        %v2349 = vsub.s32 1, %v2348
        %v2350 = vrot.slane %v2341, %v2349
        %v2351 = vlaneseq
        %v2352 = vshrl.u32 %v2351, 7
        %v2353 = vsub.s32 2, %v2352
        %v2354 = vrot.slane %v2341, %v2353
        %v2355 = vlaneseq
        %v2356 = vshrl.u32 %v2355, 7
        %v2357 = vsub.s32 3, %v2356
        %v2358 = vrot.slane %v2341, %v2357
        %v2359 = vlaneseq
        %v2360 = vshrl.u32 %v2359, 7
        %v2361 = vsub.s32 4, %v2360
        %v2362 = vrot.slane %v2341, %v2361
        %v2363 = vlaneseq
        %v2364 = vshrl.u32 %v2363, 7
        %v2365 = vsub.s32 5, %v2364
        %v2366 = vrot.slane %v2341, %v2365
        %v2367 = vlaneseq
        %v2368 = vshrl.u32 %v2367, 7
        %v2369 = vsub.s32 6, %v2368
        %v2370 = vrot.slane %v2341, %v2369
        %v2442 = vunpack.c.l.b16 %v2277
        %v2443 = vunpack.c.h.b16 %v2277
        %v2444 = vunpack.c.l.b16 %v2278
        %v2445 = vunpack.c.h.b16 %v2278
        %v2446 = vunpack.c.l.b16 %v2279
        %v2447 = vunpack.c.h.b16 %v2279
        %v2448 = vunpack.c.l.b16 %v2280
        %v2449 = vunpack.c.l.b16 %v2281
        %v2450 = vunpack.c.h.b16 %v2281
        %v2451 = vunpack.c.l.b16 %v2282
        %v2452 = vunpack.c.h.b16 %v2282
        %v2453 = vunpack.c.l.b16 %v2283
        %v2454 = vunpack.c.h.b16 %v2283
        %v2455 = vunpack.c.l.b16 %v2284
        %v2456 = vunpack.c.l.b16 %v2285
        %v2457 = vunpack.c.h.b16 %v2285
        %v2458 = vunpack.c.l.b16 %v2286
        %v2459 = vunpack.c.h.b16 %v2286
        %v2460 = vunpack.c.l.b16 %v2287
        %v2461 = vunpack.c.h.b16 %v2287
        %v2462 = vunpack.c.l.b16 %v2288
        %v2463 = vunpack.c.l.b16 %v2289
        %v2464 = vunpack.c.h.b16 %v2289
        %v2465 = vunpack.c.l.b16 %v2290
        %v2466 = vunpack.c.h.b16 %v2290
        %v2467 = vunpack.c.l.b16 %v2291
        %v2468 = vunpack.c.h.b16 %v2291
        %v2469 = vunpack.c.l.b16 %v2292
        %v2470 = vunpack.c.l.b16 %v2293
        %v2471 = vunpack.c.h.b16 %v2293
        %v2472 = vunpack.c.l.b16 %v2294
        %v2473 = vunpack.c.h.b16 %v2294
        %v2474 = vunpack.c.l.b16 %v2295
        %v2475 = vunpack.c.h.b16 %v2295
        %v2476 = vunpack.c.l.b16 %v2296
        %v2477 = vunpack.c.l.b16 %v2297
        %v2478 = vunpack.c.h.b16 %v2297
        %v2479 = vunpack.c.l.b16 %v2298
        %v2480 = vunpack.c.h.b16 %v2298
        %v2481 = vunpack.c.l.b16 %v2299
        %v2482 = vunpack.c.h.b16 %v2299
        %v2483 = vunpack.c.l.b16 %v2300
        %v2484 = vunpack.c.l.b16 %v2301
        %v2485 = vunpack.c.h.b16 %v2301
        %v2486 = vunpack.c.l.b16 %v2302
        %v2487 = vunpack.c.h.b16 %v2302
        %v2488 = vunpack.c.l.b16 %v2303
        %v2489 = vunpack.c.h.b16 %v2303
        %v2490 = vunpack.c.l.b16 %v2304
        %v2491 = vunpack.c.l.b16 %v2305
        %v2492 = vunpack.c.h.b16 %v2305
        %v2493 = vunpack.c.l.b16 %v2306
        %v2494 = vunpack.c.h.b16 %v2306
        %v2495 = vunpack.c.l.b16 %v2307
        %v2496 = vunpack.c.h.b16 %v2307
        %v2497 = vunpack.c.l.b16 %v2308
        %v2498 = vunpack.c.l.b16 %v2309
        %v2499 = vunpack.c.h.b16 %v2309
        %v2500 = vunpack.c.l.b16 %v2310
        %v2501 = vunpack.c.h.b16 %v2310
        %v2502 = vunpack.c.l.b16 %v2311
        %v2503 = vunpack.c.h.b16 %v2311
        %v2504 = vunpack.c.l.b16 %v2312
        %v2505 = vunpack.c.l.b16 %v2313
        %v2506 = vunpack.c.h.b16 %v2313
        %v2507 = vunpack.c.l.b16 %v2314
        %v2508 = vunpack.c.h.b16 %v2314
        %v2509 = vunpack.c.l.b16 %v2315
        %v2510 = vunpack.c.h.b16 %v2315
        %v2511 = vunpack.c.l.b16 %v2316
        %v2512 = vunpack.c.l.b16 %v2317
        %v2513 = vunpack.c.h.b16 %v2317
        %v2514 = vunpack.c.l.b16 %v2318
        %v2515 = vunpack.c.h.b16 %v2318
        %v2516 = vunpack.c.l.b16 %v2319
        %v2517 = vunpack.c.h.b16 %v2319
        %v2518 = vunpack.c.l.b16 %v2320
        %v2519 = vunpack.c.l.b16 %v2321
        %v2520 = vunpack.c.h.b16 %v2321
        %v2521 = vunpack.c.l.b16 %v2322
        %v2522 = vunpack.c.h.b16 %v2322
        %v2523 = vunpack.c.l.b16 %v2323
        %v2524 = vunpack.c.h.b16 %v2323
        %v2525 = vunpack.c.l.b16 %v2324
        %v2526 = vunpack.c.l.b16 %v2325
        %v2527 = vunpack.c.h.b16 %v2325
        %v2528 = vunpack.c.l.b16 %v2326
        %v2529 = vunpack.c.h.b16 %v2326
        %v2530 = vunpack.c.l.b16 %v2327
        %v2531 = vunpack.c.h.b16 %v2327
        %v2532 = vunpack.c.l.b16 %v2328
        %v2533 = vunpack.c.l.b16 %v2329
        %v2534 = vunpack.c.h.b16 %v2329
        %v2535 = vunpack.c.l.b16 %v2330
        %v2536 = vunpack.c.h.b16 %v2330
        %v2537 = vunpack.c.l.b16 %v2331
        %v2538 = vunpack.c.h.b16 %v2331
        %v2539 = vunpack.c.l.b16 %v2332
        %v2540 = vunpack.c.l.b16 %v2333
        %v2541 = vunpack.c.h.b16 %v2333
        %v2542 = vunpack.c.l.b16 %v2334
        %v2543 = vunpack.c.h.b16 %v2334
        %v2544 = vunpack.c.l.b16 %v2335
        %v2545 = vunpack.c.h.b16 %v2335
        %v2546 = vunpack.c.l.b16 %v2336
        %v2547 = vunpack.c.l.b16 %v2337
        %v2548 = vunpack.c.h.b16 %v2337
        %v2549 = vunpack.c.l.b16 %v2338
        %v2550 = vunpack.c.h.b16 %v2338
        %v2551 = vunpack.c.l.b16 %v2339
        %v2552 = vunpack.c.h.b16 %v2339
        %v2553 = vunpack.c.l.b16 %v2340
        %v2554 = vpack.c.b16 %v2449, %v2442
        %v2555 = vpack.c.b16 %v2450, %v2443
        %v2556 = vpack.c.b16 %v2451, %v2444
        %v2557 = vpack.c.b16 %v2452, %v2445
        %v2558 = vpack.c.b16 %v2453, %v2446
        %v2559 = vpack.c.b16 %v2454, %v2447
        %v2560 = vpack.c.b16 %v2455, %v2448
        %v2561 = vpack.c.b16 %v2463, %v2456
        %v2562 = vpack.c.b16 %v2464, %v2457
        %v2563 = vpack.c.b16 %v2465, %v2458
        %v2564 = vpack.c.b16 %v2466, %v2459
        %v2565 = vpack.c.b16 %v2467, %v2460
        %v2566 = vpack.c.b16 %v2468, %v2461
        %v2567 = vpack.c.b16 %v2469, %v2462
        %v2568 = vpack.c.b16 %v2477, %v2470
        %v2569 = vpack.c.b16 %v2478, %v2471
        %v2570 = vpack.c.b16 %v2479, %v2472
        %v2571 = vpack.c.b16 %v2480, %v2473
        %v2572 = vpack.c.b16 %v2481, %v2474
        %v2573 = vpack.c.b16 %v2482, %v2475
        %v2574 = vpack.c.b16 %v2483, %v2476
        %v2575 = vpack.c.b16 %v2491, %v2484
        %v2576 = vpack.c.b16 %v2492, %v2485
        %v2577 = vpack.c.b16 %v2493, %v2486
        %v2578 = vpack.c.b16 %v2494, %v2487
        %v2579 = vpack.c.b16 %v2495, %v2488
        %v2580 = vpack.c.b16 %v2496, %v2489
        %v2581 = vpack.c.b16 %v2497, %v2490
        %v2582 = vpack.c.b16 %v2505, %v2498
        %v2583 = vpack.c.b16 %v2506, %v2499
        %v2584 = vpack.c.b16 %v2507, %v2500
        %v2585 = vpack.c.b16 %v2508, %v2501
        %v2586 = vpack.c.b16 %v2509, %v2502
        %v2587 = vpack.c.b16 %v2510, %v2503
        %v2588 = vpack.c.b16 %v2511, %v2504
        %v2589 = vpack.c.b16 %v2519, %v2512
        %v2590 = vpack.c.b16 %v2520, %v2513
        %v2591 = vpack.c.b16 %v2521, %v2514
        %v2592 = vpack.c.b16 %v2522, %v2515
        %v2593 = vpack.c.b16 %v2523, %v2516
        %v2594 = vpack.c.b16 %v2524, %v2517
        %v2595 = vpack.c.b16 %v2525, %v2518
        %v2596 = vpack.c.b16 %v2533, %v2526
        %v2597 = vpack.c.b16 %v2534, %v2527
        %v2598 = vpack.c.b16 %v2535, %v2528
        %v2599 = vpack.c.b16 %v2536, %v2529
        %v2600 = vpack.c.b16 %v2537, %v2530
        %v2601 = vpack.c.b16 %v2538, %v2531
        %v2602 = vpack.c.b16 %v2539, %v2532
        %v2603 = vpack.c.b16 %v2547, %v2540
        %v2604 = vpack.c.b16 %v2548, %v2541
        %v2605 = vpack.c.b16 %v2549, %v2542
        %v2606 = vpack.c.b16 %v2550, %v2543
        %v2607 = vpack.c.b16 %v2551, %v2544
        %v2608 = vpack.c.b16 %v2552, %v2545
        %v2609 = vpack.c.b16 %v2553, %v2546
        %2666 = vmatprep.subr.bf16.mxu0 %v2555
        %2667 = vmatpush1.bf16.msra.mxu0 %v2554
        %2668 = vmatprep.subr.bf16.mxu0 %v2562
        %2669 = vmatpush1.bf16.msra.mxu0 %v2561
        %2670 = vmatprep.subr.bf16.mxu0 %v2569
        %2671 = vmatpush1.bf16.msra.mxu0 %v2568
        %2672 = vmatprep.subr.bf16.mxu0 %v2576
        %2673 = vmatpush1.bf16.msra.mxu0 %v2575
        %2674 = vmatprep.subr.bf16.mxu0 %v2583
        %2675 = vmatpush1.bf16.msra.mxu0 %v2582
        %2676 = vmatprep.subr.bf16.mxu0 %v2590
        %2677 = vmatpush1.bf16.msra.mxu0 %v2589
        %2678 = vmatprep.subr.bf16.mxu0 %v2597
        %2679 = vmatpush1.bf16.msra.mxu0 %v2596
        %2680 = vmatprep.subr.bf16.mxu0 %v2604
        %2681 = vmatpush1.bf16.msra.mxu0 %v2603
        %2682 = vmatprep.subr.bf16.mxu0 0
        %2683 = vmatpush1.bf16.msra.mxu0 0
        %2684 = vmatprep.subr.bf16.mxu0 0
        %2685 = vmatpush1.bf16.msra.mxu0 0
        %2686 = vmatprep.subr.bf16.mxu0 0
        %2687 = vmatpush1.bf16.msra.mxu0 0
        %2688 = vmatprep.subr.bf16.mxu0 0
        %2689 = vmatpush1.bf16.msra.mxu0 0
        %2690 = vmatprep.subr.bf16.mxu0 0
        %2691 = vmatpush1.bf16.msra.mxu0 0
        %2692 = vmatprep.subr.bf16.mxu0 0
        %2693 = vmatpush1.bf16.msra.mxu0 0
        %2694 = vmatprep.subr.bf16.mxu0 0
        %2695 = vmatpush1.bf16.msra.mxu0 0
        %2696 = vmatprep.subr.bf16.mxu0 0
        %2697 = vmatpush1.bf16.msra.mxu0 0
        %2698 = vmatprep.mubr.bf16.mxu0 0
        %2699 = vmatmul.mubr.bf16.gmra.mrb[0].mxu0 %v2270
        %v2700 = vpop.f32.mrb[0].mxu0
        %v2701 = vadd.f32 %v2346, %v2700
        %v2702 = vpop.f32.mrb[0].mxu0
        %v2703 = vadd.f32 %v2350, %v2702
        %v2704 = vpop.f32.mrb[0].mxu0
        %v2705 = vadd.f32 %v2346, %v2704
        %v2706 = vpop.f32.mrb[0].mxu0
        %v2707 = vadd.f32 %v2350, %v2706
        %2708 = vmatprep.mubr.bf16.mxu0 0
        %2709 = vmatmul.mubr.bf16.gmra.mrb[0].mxu0 %v2271
        %v2710 = vpop.f32.mrb[0].mxu0
        %v2711 = vadd.f32 %v2346, %v2710
        %v2712 = vpop.f32.mrb[0].mxu0
        %v2713 = vadd.f32 %v2350, %v2712
        %v2714 = vpop.f32.mrb[0].mxu0
        %v2715 = vadd.f32 %v2346, %v2714
        %v2716 = vpop.f32.mrb[0].mxu0
        %v2717 = vadd.f32 %v2350, %v2716
        %2718 = vmatprep.mubr.bf16.mxu0 0
        %2719 = vmatmul.mubr.bf16.gmra.mrb[0].mxu0 %v2272
        %v2720 = vpop.f32.mrb[0].mxu0
        %v2721 = vadd.f32 %v2346, %v2720
        %v2722 = vpop.f32.mrb[0].mxu0
        %v2723 = vadd.f32 %v2350, %v2722
        %v2724 = vpop.f32.mrb[0].mxu0
        %v2725 = vadd.f32 %v2346, %v2724
        %v2726 = vpop.f32.mrb[0].mxu0
        %v2727 = vadd.f32 %v2350, %v2726
        %2728 = vmatprep.mubr.bf16.mxu0 0
        %2729 = vmatmul.mubr.bf16.gmra.mrb[0].mxu0 %v2273
        %v2730 = vpop.f32.mrb[0].mxu0
        %v2731 = vadd.f32 %v2346, %v2730
        %v2732 = vpop.f32.mrb[0].mxu0
        %v2733 = vadd.f32 %v2350, %v2732
        %v2734 = vpop.f32.mrb[0].mxu0
        %v2735 = vadd.f32 %v2346, %v2734
        %v2736 = vpop.f32.mrb[0].mxu0
        %v2737 = vadd.f32 %v2350, %v2736
        %2738 = vmatprep.mubr.bf16.mxu0 0
        %2739 = vmatmul.mubr.bf16.gmra.mrb[0].mxu0 %v2274
        %v2740 = vpop.f32.mrb[0].mxu0
        %v2741 = vadd.f32 %v2346, %v2740
        %v2742 = vpop.f32.mrb[0].mxu0
        %v2743 = vadd.f32 %v2350, %v2742
        %v2744 = vpop.f32.mrb[0].mxu0
        %v2745 = vadd.f32 %v2346, %v2744
        %v2746 = vpop.f32.mrb[0].mxu0
        %v2747 = vadd.f32 %v2350, %v2746
        %2748 = vmatprep.mubr.bf16.mxu0 0
        %2749 = vmatmul.mubr.bf16.gmra.mrb[0].mxu0 %v2275
        %v2750 = vpop.f32.mrb[0].mxu0
        %v2751 = vadd.f32 %v2346, %v2750
        %v2752 = vpop.f32.mrb[0].mxu0
        %v2753 = vadd.f32 %v2350, %v2752
        %v2754 = vpop.f32.mrb[0].mxu0
        %v2755 = vadd.f32 %v2346, %v2754
        %v2756 = vpop.f32.mrb[0].mxu0
        %v2757 = vadd.f32 %v2350, %v2756
        %2758 = vmatprep.mubr.bf16.mxu0 0
        %2759 = vmatmul.mubr.bf16.gmra.mrb[0].mxu0 %v2276
        %v2760 = vpop.f32.mrb[0].mxu0
        %v2761 = vadd.f32 %v2346, %v2760
        %v2762 = vpop.f32.mrb[0].mxu0
        %v2763 = vadd.f32 %v2350, %v2762
        %v2764 = vpop.f32.mrb[0].mxu0
        %v2765 = vpop.f32.mrb[0].mxu0
        %2766 = vdwg.mxu0
        %2767 = vmatprep.subr.bf16.mxu0 %v2557
        %2768 = vmatpush1.bf16.msra.mxu0 %v2556
        %2769 = vmatprep.subr.bf16.mxu0 %v2564
        %2770 = vmatpush1.bf16.msra.mxu0 %v2563
        %2771 = vmatprep.subr.bf16.mxu0 %v2571
        %2772 = vmatpush1.bf16.msra.mxu0 %v2570
        %2773 = vmatprep.subr.bf16.mxu0 %v2578
        %2774 = vmatpush1.bf16.msra.mxu0 %v2577
        %2775 = vmatprep.subr.bf16.mxu0 %v2585
        %2776 = vmatpush1.bf16.msra.mxu0 %v2584
        %2777 = vmatprep.subr.bf16.mxu0 %v2592
        %2778 = vmatpush1.bf16.msra.mxu0 %v2591
        %2779 = vmatprep.subr.bf16.mxu0 %v2599
        %2780 = vmatpush1.bf16.msra.mxu0 %v2598
        %2781 = vmatprep.subr.bf16.mxu0 %v2606
        %2782 = vmatpush1.bf16.msra.mxu0 %v2605
        %2783 = vmatprep.subr.bf16.mxu0 0
        %2784 = vmatpush1.bf16.msra.mxu0 0
        %2785 = vmatprep.subr.bf16.mxu0 0
        %2786 = vmatpush1.bf16.msra.mxu0 0
        %2787 = vmatprep.subr.bf16.mxu0 0
        %2788 = vmatpush1.bf16.msra.mxu0 0
        %2789 = vmatprep.subr.bf16.mxu0 0
        %2790 = vmatpush1.bf16.msra.mxu0 0
        %2791 = vmatprep.subr.bf16.mxu0 0
        %2792 = vmatpush1.bf16.msra.mxu0 0
        %2793 = vmatprep.subr.bf16.mxu0 0
        %2794 = vmatpush1.bf16.msra.mxu0 0
        %2795 = vmatprep.subr.bf16.mxu0 0
        %2796 = vmatpush1.bf16.msra.mxu0 0
        %2797 = vmatprep.subr.bf16.mxu0 0
        %2798 = vmatpush1.bf16.msra.mxu0 0
        %2799 = vmatprep.mubr.bf16.mxu0 0
        %2800 = vmatmul.mubr.bf16.gmra.mrb[0].mxu0 %v2270
        %v2801 = vpop.f32.mrb[0].mxu0
        %v2802 = vadd.f32 %v2354, %v2801
        %v2803 = vpop.f32.mrb[0].mxu0
        %v2804 = vadd.f32 %v2358, %v2803
        %v2805 = vpop.f32.mrb[0].mxu0
        %v2806 = vadd.f32 %v2354, %v2805
        %v2807 = vpop.f32.mrb[0].mxu0
        %v2808 = vadd.f32 %v2358, %v2807
        %2809 = vmatprep.mubr.bf16.mxu0 0
        %2810 = vmatmul.mubr.bf16.gmra.mrb[0].mxu0 %v2271
        %v2811 = vpop.f32.mrb[0].mxu0
        %v2812 = vadd.f32 %v2354, %v2811
        %v2813 = vpop.f32.mrb[0].mxu0
        %v2814 = vadd.f32 %v2358, %v2813
        %v2815 = vpop.f32.mrb[0].mxu0
        %v2816 = vadd.f32 %v2354, %v2815
        %v2817 = vpop.f32.mrb[0].mxu0
        %v2818 = vadd.f32 %v2358, %v2817
        %2819 = vmatprep.mubr.bf16.mxu0 0
        %2820 = vmatmul.mubr.bf16.gmra.mrb[0].mxu0 %v2272
        %v2821 = vpop.f32.mrb[0].mxu0
        %v2822 = vadd.f32 %v2354, %v2821
        %v2823 = vpop.f32.mrb[0].mxu0
        %v2824 = vadd.f32 %v2358, %v2823
        %v2825 = vpop.f32.mrb[0].mxu0
        %v2826 = vadd.f32 %v2354, %v2825
        %v2827 = vpop.f32.mrb[0].mxu0
        %v2828 = vadd.f32 %v2358, %v2827
        %2829 = vmatprep.mubr.bf16.mxu0 0
        %2830 = vmatmul.mubr.bf16.gmra.mrb[0].mxu0 %v2273
        %v2831 = vpop.f32.mrb[0].mxu0
        %v2832 = vadd.f32 %v2354, %v2831
        %v2833 = vpop.f32.mrb[0].mxu0
        %v2834 = vadd.f32 %v2358, %v2833
        %v2835 = vpop.f32.mrb[0].mxu0
        %v2836 = vadd.f32 %v2354, %v2835
        %v2837 = vpop.f32.mrb[0].mxu0
        %v2838 = vadd.f32 %v2358, %v2837
        %2839 = vmatprep.mubr.bf16.mxu0 0
        %2840 = vmatmul.mubr.bf16.gmra.mrb[0].mxu0 %v2274
        %v2841 = vpop.f32.mrb[0].mxu0
        %v2842 = vadd.f32 %v2354, %v2841
        %v2843 = vpop.f32.mrb[0].mxu0
        %v2844 = vadd.f32 %v2358, %v2843
        %v2845 = vpop.f32.mrb[0].mxu0
        %v2846 = vadd.f32 %v2354, %v2845
        %v2847 = vpop.f32.mrb[0].mxu0
        %v2848 = vadd.f32 %v2358, %v2847
        %2849 = vmatprep.mubr.bf16.mxu0 0
        %2850 = vmatmul.mubr.bf16.gmra.mrb[0].mxu0 %v2275
        %v2851 = vpop.f32.mrb[0].mxu0
        %v2852 = vadd.f32 %v2354, %v2851
        %v2853 = vpop.f32.mrb[0].mxu0
        %v2854 = vadd.f32 %v2358, %v2853
        %v2855 = vpop.f32.mrb[0].mxu0
        %v2856 = vadd.f32 %v2354, %v2855
        %v2857 = vpop.f32.mrb[0].mxu0
        %v2858 = vadd.f32 %v2358, %v2857
        %2859 = vmatprep.mubr.bf16.mxu0 0
        %2860 = vmatmul.mubr.bf16.gmra.mrb[0].mxu0 %v2276
        %v2861 = vpop.f32.mrb[0].mxu0
        %v2862 = vadd.f32 %v2354, %v2861
        %v2863 = vpop.f32.mrb[0].mxu0
        %v2864 = vadd.f32 %v2358, %v2863
        %v2865 = vpop.f32.mrb[0].mxu0
        %v2866 = vpop.f32.mrb[0].mxu0
        %2867 = vdwg.mxu0
        %2868 = vmatprep.subr.bf16.mxu0 %v2559
        %2869 = vmatpush1.bf16.msra.mxu0 %v2558
        %2870 = vmatprep.subr.bf16.mxu0 %v2566
        %2871 = vmatpush1.bf16.msra.mxu0 %v2565
        %2872 = vmatprep.subr.bf16.mxu0 %v2573
        %2873 = vmatpush1.bf16.msra.mxu0 %v2572
        %2874 = vmatprep.subr.bf16.mxu0 %v2580
        %2875 = vmatpush1.bf16.msra.mxu0 %v2579
        %2876 = vmatprep.subr.bf16.mxu0 %v2587
        %2877 = vmatpush1.bf16.msra.mxu0 %v2586
        %2878 = vmatprep.subr.bf16.mxu0 %v2594
        %2879 = vmatpush1.bf16.msra.mxu0 %v2593
        %2880 = vmatprep.subr.bf16.mxu0 %v2601
        %2881 = vmatpush1.bf16.msra.mxu0 %v2600
        %2882 = vmatprep.subr.bf16.mxu0 %v2608
        %2883 = vmatpush1.bf16.msra.mxu0 %v2607
        %2884 = vmatprep.subr.bf16.mxu0 0
        %2885 = vmatpush1.bf16.msra.mxu0 0
        %2886 = vmatprep.subr.bf16.mxu0 0
        %2887 = vmatpush1.bf16.msra.mxu0 0
        %2888 = vmatprep.subr.bf16.mxu0 0
        %2889 = vmatpush1.bf16.msra.mxu0 0
        %2890 = vmatprep.subr.bf16.mxu0 0
        %2891 = vmatpush1.bf16.msra.mxu0 0
        %2892 = vmatprep.subr.bf16.mxu0 0
        %2893 = vmatpush1.bf16.msra.mxu0 0
        %2894 = vmatprep.subr.bf16.mxu0 0
        %2895 = vmatpush1.bf16.msra.mxu0 0
        %2896 = vmatprep.subr.bf16.mxu0 0
        %2897 = vmatpush1.bf16.msra.mxu0 0
        %2898 = vmatprep.subr.bf16.mxu0 0
        %2899 = vmatpush1.bf16.msra.mxu0 0
        %2900 = vmatprep.mubr.bf16.mxu0 0
        %2901 = vmatmul.mubr.bf16.gmra.mrb[0].mxu0 %v2270
        %v2902 = vpop.f32.mrb[0].mxu0
        %v2903 = vadd.f32 %v2362, %v2902
        %v2904 = vpop.f32.mrb[0].mxu0
        %v2905 = vadd.f32 %v2366, %v2904
        %v2906 = vpop.f32.mrb[0].mxu0
        %v2907 = vadd.f32 %v2362, %v2906
        %v2908 = vpop.f32.mrb[0].mxu0
        %v2909 = vadd.f32 %v2366, %v2908
        %2910 = vmatprep.mubr.bf16.mxu0 0
        %2911 = vmatmul.mubr.bf16.gmra.mrb[0].mxu0 %v2271
        %v2912 = vpop.f32.mrb[0].mxu0
        %v2913 = vadd.f32 %v2362, %v2912
        %v2914 = vpop.f32.mrb[0].mxu0
        %v2915 = vadd.f32 %v2366, %v2914
        %v2916 = vpop.f32.mrb[0].mxu0
        %v2917 = vadd.f32 %v2362, %v2916
        %v2918 = vpop.f32.mrb[0].mxu0
        %v2919 = vadd.f32 %v2366, %v2918
        %2920 = vmatprep.mubr.bf16.mxu0 0
        %2921 = vmatmul.mubr.bf16.gmra.mrb[0].mxu0 %v2272
        %v2922 = vpop.f32.mrb[0].mxu0
        %v2923 = vadd.f32 %v2362, %v2922
        %v2924 = vpop.f32.mrb[0].mxu0
        %v2925 = vadd.f32 %v2366, %v2924
        %v2926 = vpop.f32.mrb[0].mxu0
        %v2927 = vadd.f32 %v2362, %v2926
        %v2928 = vpop.f32.mrb[0].mxu0
        %v2929 = vadd.f32 %v2366, %v2928
        %2930 = vmatprep.mubr.bf16.mxu0 0
        %2931 = vmatmul.mubr.bf16.gmra.mrb[0].mxu0 %v2273
        %v2932 = vpop.f32.mrb[0].mxu0
        %v2933 = vadd.f32 %v2362, %v2932
        %v2934 = vpop.f32.mrb[0].mxu0
        %v2935 = vadd.f32 %v2366, %v2934
        %v2936 = vpop.f32.mrb[0].mxu0
        %v2937 = vadd.f32 %v2362, %v2936
        %v2938 = vpop.f32.mrb[0].mxu0
        %v2939 = vadd.f32 %v2366, %v2938
        %2940 = vmatprep.mubr.bf16.mxu0 0
        %2941 = vmatmul.mubr.bf16.gmra.mrb[0].mxu0 %v2274
        %v2942 = vpop.f32.mrb[0].mxu0
        %v2943 = vadd.f32 %v2362, %v2942
        %v2944 = vpop.f32.mrb[0].mxu0
        %v2945 = vadd.f32 %v2366, %v2944
        %v2946 = vpop.f32.mrb[0].mxu0
        %v2947 = vadd.f32 %v2362, %v2946
        %v2948 = vpop.f32.mrb[0].mxu0
        %v2949 = vadd.f32 %v2366, %v2948
        %2950 = vmatprep.mubr.bf16.mxu0 0
        %2951 = vmatmul.mubr.bf16.gmra.mrb[0].mxu0 %v2275
        %v2952 = vpop.f32.mrb[0].mxu0
        %v2953 = vadd.f32 %v2362, %v2952
        %v2954 = vpop.f32.mrb[0].mxu0
        %v2955 = vadd.f32 %v2366, %v2954
        %v2956 = vpop.f32.mrb[0].mxu0
        %v2957 = vadd.f32 %v2362, %v2956
        %v2958 = vpop.f32.mrb[0].mxu0
        %v2959 = vadd.f32 %v2366, %v2958
        %2960 = vmatprep.mubr.bf16.mxu0 0
        %2961 = vmatmul.mubr.bf16.gmra.mrb[0].mxu0 %v2276
        %v2962 = vpop.f32.mrb[0].mxu0
        %v2963 = vadd.f32 %v2362, %v2962
        %v2964 = vpop.f32.mrb[0].mxu0
        %v2965 = vadd.f32 %v2366, %v2964
        %v2966 = vpop.f32.mrb[0].mxu0
        %v2967 = vpop.f32.mrb[0].mxu0
        %2968 = vdwg.mxu0
        %2969 = vmatprep.subr.bf16.mxu0 0
        %2970 = vmatpush1.bf16.msra.mxu0 %v2560
        %2971 = vmatprep.subr.bf16.mxu0 0
        %2972 = vmatpush1.bf16.msra.mxu0 %v2567
        %2973 = vmatprep.subr.bf16.mxu0 0
        %2974 = vmatpush1.bf16.msra.mxu0 %v2574
        %2975 = vmatprep.subr.bf16.mxu0 0
        %2976 = vmatpush1.bf16.msra.mxu0 %v2581
        %2977 = vmatprep.subr.bf16.mxu0 0
        %2978 = vmatpush1.bf16.msra.mxu0 %v2588
        %2979 = vmatprep.subr.bf16.mxu0 0
        %2980 = vmatpush1.bf16.msra.mxu0 %v2595
        %2981 = vmatprep.subr.bf16.mxu0 0
        %2982 = vmatpush1.bf16.msra.mxu0 %v2602
        %2983 = vmatprep.subr.bf16.mxu0 0
        %2984 = vmatpush1.bf16.msra.mxu0 %v2609
        %2985 = vmatprep.subr.bf16.mxu0 0
        %2986 = vmatpush1.bf16.msra.mxu0 0
        %2987 = vmatprep.subr.bf16.mxu0 0
        %2988 = vmatpush1.bf16.msra.mxu0 0
        %2989 = vmatprep.subr.bf16.mxu0 0
        %2990 = vmatpush1.bf16.msra.mxu0 0
        %2991 = vmatprep.subr.bf16.mxu0 0
        %2992 = vmatpush1.bf16.msra.mxu0 0
        %2993 = vmatprep.subr.bf16.mxu0 0
        %2994 = vmatpush1.bf16.msra.mxu0 0
        %2995 = vmatprep.subr.bf16.mxu0 0
        %2996 = vmatpush1.bf16.msra.mxu0 0
        %2997 = vmatprep.subr.bf16.mxu0 0
        %2998 = vmatpush1.bf16.msra.mxu0 0
        %2999 = vmatprep.subr.bf16.mxu0 0
        %3000 = vmatpush1.bf16.msra.mxu0 0
        %3001 = vmatprep.mubr.bf16.mxu0 0
        %3002 = vmatmul.mubr.bf16.gmra.mrb[0].mxu0 %v2270
        %v3003 = vpop.f32.mrb[0].mxu0
        %v3004 = vadd.f32 %v2370, %v3003
        %v3005 = vpop.f32.mrb[0].mxu0
        %v3006 = vpop.f32.mrb[0].mxu0
        %v3007 = vadd.f32 %v2370, %v3006
        %v3008 = vpop.f32.mrb[0].mxu0
        %3009 = vmatprep.mubr.bf16.mxu0 0
        %3010 = vmatmul.mubr.bf16.gmra.mrb[0].mxu0 %v2271
        %v3011 = vpop.f32.mrb[0].mxu0
        %v3012 = vadd.f32 %v2370, %v3011
        %v3013 = vpop.f32.mrb[0].mxu0
        %v3014 = vpop.f32.mrb[0].mxu0
        %v3015 = vadd.f32 %v2370, %v3014
        %v3016 = vpop.f32.mrb[0].mxu0
        %3017 = vmatprep.mubr.bf16.mxu0 0
        %3018 = vmatmul.mubr.bf16.gmra.mrb[0].mxu0 %v2272
        %v3019 = vpop.f32.mrb[0].mxu0
        %v3020 = vadd.f32 %v2370, %v3019
        %v3021 = vpop.f32.mrb[0].mxu0
        %v3022 = vpop.f32.mrb[0].mxu0
        %v3023 = vadd.f32 %v2370, %v3022
        %v3024 = vpop.f32.mrb[0].mxu0
        %3025 = vmatprep.mubr.bf16.mxu0 0
        %3026 = vmatmul.mubr.bf16.gmra.mrb[0].mxu0 %v2273
        %v3027 = vpop.f32.mrb[0].mxu0
        %v3028 = vadd.f32 %v2370, %v3027
        %v3029 = vpop.f32.mrb[0].mxu0
        %v3030 = vpop.f32.mrb[0].mxu0
        %v3031 = vadd.f32 %v2370, %v3030
        %v3032 = vpop.f32.mrb[0].mxu0
        %3033 = vmatprep.mubr.bf16.mxu0 0
        %3034 = vmatmul.mubr.bf16.gmra.mrb[0].mxu0 %v2274
        %v3035 = vpop.f32.mrb[0].mxu0
        %v3036 = vadd.f32 %v2370, %v3035
        %v3037 = vpop.f32.mrb[0].mxu0
        %v3038 = vpop.f32.mrb[0].mxu0
        %v3039 = vadd.f32 %v2370, %v3038
        %v3040 = vpop.f32.mrb[0].mxu0
        %3041 = vmatprep.mubr.bf16.mxu0 0
        %3042 = vmatmul.mubr.bf16.gmra.mrb[0].mxu0 %v2275
        %v3043 = vpop.f32.mrb[0].mxu0
        %v3044 = vadd.f32 %v2370, %v3043
        %v3045 = vpop.f32.mrb[0].mxu0
        %v3046 = vpop.f32.mrb[0].mxu0
        %v3047 = vadd.f32 %v2370, %v3046
        %v3048 = vpop.f32.mrb[0].mxu0
        %3049 = vmatprep.mubr.bf16.mxu0 0
        %3050 = vmatmul.mubr.bf16.gmra.mrb[0].mxu0 %v2276
        %v3051 = vpop.f32.mrb[0].mxu0
        %v3052 = vadd.f32 %v2370, %v3051
        %v3053 = vpop.f32.mrb[0].mxu0
        %v3054 = vpop.f32.mrb[0].mxu0
        %v3055 = vpop.f32.mrb[0].mxu0
        %3056 = vdwg.mxu0
        %v3057 = vtanh.pop %v2701
        %v3058 = vtanh.pop %v2703
        %v3059 = vtanh.pop %v2802
        %v3060 = vtanh.pop %v2804
        %v3061 = vtanh.pop %v2903
        %v3062 = vtanh.pop %v2905
        %v3063 = vtanh.pop %v3004
        %v3064 = vtanh.pop %v2705
        %v3065 = vtanh.pop %v2707
        %v3066 = vtanh.pop %v2806
        %v3067 = vtanh.pop %v2808
        %v3068 = vtanh.pop %v2907
        %v3069 = vtanh.pop %v2909
        %v3070 = vtanh.pop %v3007
        %v3071 = vtanh.pop %v2711
        %v3072 = vtanh.pop %v2713
        %v3073 = vtanh.pop %v2812
        %v3074 = vtanh.pop %v2814
        %v3075 = vtanh.pop %v2913
        %v3076 = vtanh.pop %v2915
        %v3077 = vtanh.pop %v3012
        %v3078 = vtanh.pop %v2715
        %v3079 = vtanh.pop %v2717
        %v3080 = vtanh.pop %v2816
        %v3081 = vtanh.pop %v2818
        %v3082 = vtanh.pop %v2917
        %v3083 = vtanh.pop %v2919
        %v3084 = vtanh.pop %v3015
        %v3085 = vtanh.pop %v2721
        %v3086 = vtanh.pop %v2723
        %v3087 = vtanh.pop %v2822
        %v3088 = vtanh.pop %v2824
        %v3089 = vtanh.pop %v2923
        %v3090 = vtanh.pop %v2925
        %v3091 = vtanh.pop %v3020
        %v3092 = vtanh.pop %v2725
        %v3093 = vtanh.pop %v2727
        %v3094 = vtanh.pop %v2826
        %v3095 = vtanh.pop %v2828
        %v3096 = vtanh.pop %v2927
        %v3097 = vtanh.pop %v2929
        %v3098 = vtanh.pop %v3023
        %v3099 = vtanh.pop %v2731
        %v3100 = vtanh.pop %v2733
        %v3101 = vtanh.pop %v2832
        %v3102 = vtanh.pop %v2834
        %v3103 = vtanh.pop %v2933
        %v3104 = vtanh.pop %v2935
        %v3105 = vtanh.pop %v3028
        %v3106 = vtanh.pop %v2735
        %v3107 = vtanh.pop %v2737
        %v3108 = vtanh.pop %v2836
        %v3109 = vtanh.pop %v2838
        %v3110 = vtanh.pop %v2937
        %v3111 = vtanh.pop %v2939
        %v3112 = vtanh.pop %v3031
        %v3113 = vtanh.pop %v2741
        %v3114 = vtanh.pop %v2743
        %v3115 = vtanh.pop %v2842
        %v3116 = vtanh.pop %v2844
        %v3117 = vtanh.pop %v2943
        %v3118 = vtanh.pop %v2945
        %v3119 = vtanh.pop %v3036
        %v3120 = vtanh.pop %v2745
        %v3121 = vtanh.pop %v2747
        %v3122 = vtanh.pop %v2846
        %v3123 = vtanh.pop %v2848
        %v3124 = vtanh.pop %v2947
        %v3125 = vtanh.pop %v2949
        %v3126 = vtanh.pop %v3039
        %v3127 = vtanh.pop %v2751
        %v3128 = vtanh.pop %v2753
        %v3129 = vtanh.pop %v2852
        %v3130 = vtanh.pop %v2854
        %v3131 = vtanh.pop %v2953
        %v3132 = vtanh.pop %v2955
        %v3133 = vtanh.pop %v3044
        %v3134 = vtanh.pop %v2755
        %v3135 = vtanh.pop %v2757
        %v3136 = vtanh.pop %v2856
        %v3137 = vtanh.pop %v2858
        %v3138 = vtanh.pop %v2957
        %v3139 = vtanh.pop %v2959
        %v3140 = vtanh.pop %v3047
        %v3141 = vtanh.pop %v2761
        %v3142 = vtanh.pop %v2763
        %v3143 = vtanh.pop %v2862
        %v3144 = vtanh.pop %v2864
        %v3145 = vtanh.pop %v2963
        %v3146 = vtanh.pop %v2965
        %v3147 = vtanh.pop %v3052
        %3148 = vst [vmem:[%s520] sm:$0xff] %v3057
        %3149 = vst [vmem:[%s520 + $0x8] sm:$0xff] %v3058
        %3150 = vst [vmem:[%s520 + $0x10] sm:$0xff] %v3059
        %3151 = vst [vmem:[%s520 + $0x18] sm:$0xff] %v3060
        %3152 = vst [vmem:[%s520 + $0x20] sm:$0xff] %v3061
        %3153 = vst [vmem:[%s520 + $0x28] sm:$0xff] %v3062
        %3154 = vst.msk [vmem:[%s520 + $0x30] sm:$0xff] %vm1073, %v3063
        %3155 = vst [vmem:[%s520 + $0x38] sm:$0xff] %v3064
        %3156 = vst [vmem:[%s520 + $0x40] sm:$0xff] %v3065
        %3157 = vst [vmem:[%s520 + $0x48] sm:$0xff] %v3066
        %3158 = vst [vmem:[%s520 + $0x50] sm:$0xff] %v3067
        %3159 = vst [vmem:[%s520 + $0x58] sm:$0xff] %v3068
        %3160 = vst [vmem:[%s520 + $0x60] sm:$0xff] %v3069
        %3161 = vst.msk [vmem:[%s520 + $0x68] sm:$0xff] %vm1073, %v3070
        %3162 = vst [vmem:[%s520 + $0x70] sm:$0xff] %v3071
        %3163 = vst [vmem:[%s520 + $0x78] sm:$0xff] %v3072
        %3164 = vst [vmem:[%s520 + $0x80] sm:$0xff] %v3073
        %3165 = vst [vmem:[%s520 + $0x88] sm:$0xff] %v3074
        %3166 = vst [vmem:[%s520 + $0x90] sm:$0xff] %v3075
        %3167 = vst [vmem:[%s520 + $0x98] sm:$0xff] %v3076
        %3168 = vst.msk [vmem:[%s520 + $0xa0] sm:$0xff] %vm1073, %v3077
        %3169 = vst [vmem:[%s520 + $0xa8] sm:$0xff] %v3078
        %3170 = vst [vmem:[%s520 + $0xb0] sm:$0xff] %v3079
        %3171 = vst [vmem:[%s520 + $0xb8] sm:$0xff] %v3080
        %3172 = vst [vmem:[%s520 + $0xc0] sm:$0xff] %v3081
        %3173 = vst [vmem:[%s520 + $0xc8] sm:$0xff] %v3082
        %3174 = vst [vmem:[%s520 + $0xd0] sm:$0xff] %v3083
        %3175 = vst.msk [vmem:[%s520 + $0xd8] sm:$0xff] %vm1073, %v3084
        %3176 = vst [vmem:[%s520 + $0xe0] sm:$0xff] %v3085
        %3177 = vst [vmem:[%s520 + $0xe8] sm:$0xff] %v3086
        %3178 = vst [vmem:[%s520 + $0xf0] sm:$0xff] %v3087
        %3179 = vst [vmem:[%s520 + $0xf8] sm:$0xff] %v3088
        %3180 = vst [vmem:[%s520 + $0x100] sm:$0xff] %v3089
        %3181 = vst [vmem:[%s520 + $0x108] sm:$0xff] %v3090
        %3182 = vst.msk [vmem:[%s520 + $0x110] sm:$0xff] %vm1073, %v3091
        %3183 = vst [vmem:[%s520 + $0x118] sm:$0xff] %v3092
        %3184 = vst [vmem:[%s520 + $0x120] sm:$0xff] %v3093
        %3185 = vst [vmem:[%s520 + $0x128] sm:$0xff] %v3094
        %3186 = vst [vmem:[%s520 + $0x130] sm:$0xff] %v3095
        %3187 = vst [vmem:[%s520 + $0x138] sm:$0xff] %v3096
        %3188 = vst [vmem:[%s520 + $0x140] sm:$0xff] %v3097
        %3189 = vst.msk [vmem:[%s520 + $0x148] sm:$0xff] %vm1073, %v3098
        %3190 = vst [vmem:[%s520 + $0x150] sm:$0xff] %v3099
        %3191 = vst [vmem:[%s520 + $0x158] sm:$0xff] %v3100
        %3192 = vst [vmem:[%s520 + $0x160] sm:$0xff] %v3101
        %3193 = vst [vmem:[%s520 + $0x168] sm:$0xff] %v3102
        %3194 = vst [vmem:[%s520 + $0x170] sm:$0xff] %v3103
        %3195 = vst [vmem:[%s520 + $0x178] sm:$0xff] %v3104
        %3196 = vst.msk [vmem:[%s520 + $0x180] sm:$0xff] %vm1073, %v3105
        %3197 = vst [vmem:[%s520 + $0x188] sm:$0xff] %v3106
        %3198 = vst [vmem:[%s520 + $0x190] sm:$0xff] %v3107
        %3199 = vst [vmem:[%s520 + $0x198] sm:$0xff] %v3108
        %3200 = vst [vmem:[%s520 + $0x1a0] sm:$0xff] %v3109
        %3201 = vst [vmem:[%s520 + $0x1a8] sm:$0xff] %v3110
        %3202 = vst [vmem:[%s520 + $0x1b0] sm:$0xff] %v3111
        %3203 = vst.msk [vmem:[%s520 + $0x1b8] sm:$0xff] %vm1073, %v3112
        %3204 = vst [vmem:[%s520 + $0x1c0] sm:$0xff] %v3113
        %3205 = vst [vmem:[%s520 + $0x1c8] sm:$0xff] %v3114
        %3206 = vst [vmem:[%s520 + $0x1d0] sm:$0xff] %v3115
        %3207 = vst [vmem:[%s520 + $0x1d8] sm:$0xff] %v3116
        %3208 = vst [vmem:[%s520 + $0x1e0] sm:$0xff] %v3117
        %3209 = vst [vmem:[%s520 + $0x1e8] sm:$0xff] %v3118
        %3210 = vst.msk [vmem:[%s520 + $0x1f0] sm:$0xff] %vm1073, %v3119
        %3211 = vst [vmem:[%s520 + $0x1f8] sm:$0xff] %v3120
        %3212 = vst [vmem:[%s520 + $0x200] sm:$0xff] %v3121
        %3213 = vst [vmem:[%s520 + $0x208] sm:$0xff] %v3122
        %3214 = vst [vmem:[%s520 + $0x210] sm:$0xff] %v3123
        %3215 = vst [vmem:[%s520 + $0x218] sm:$0xff] %v3124
        %3216 = vst [vmem:[%s520 + $0x220] sm:$0xff] %v3125
        %3217 = vst.msk [vmem:[%s520 + $0x228] sm:$0xff] %vm1073, %v3126
        %3218 = vst [vmem:[%s520 + $0x230] sm:$0xff] %v3127
        %3219 = vst [vmem:[%s520 + $0x238] sm:$0xff] %v3128
        %3220 = vst [vmem:[%s520 + $0x240] sm:$0xff] %v3129
        %3221 = vst [vmem:[%s520 + $0x248] sm:$0xff] %v3130
        %3222 = vst [vmem:[%s520 + $0x250] sm:$0xff] %v3131
        %3223 = vst [vmem:[%s520 + $0x258] sm:$0xff] %v3132
        %3224 = vst.msk [vmem:[%s520 + $0x260] sm:$0xff] %vm1073, %v3133
        %3225 = vst [vmem:[%s520 + $0x268] sm:$0xff] %v3134
        %3226 = vst [vmem:[%s520 + $0x270] sm:$0xff] %v3135
        %3227 = vst [vmem:[%s520 + $0x278] sm:$0xff] %v3136
        %3228 = vst [vmem:[%s520 + $0x280] sm:$0xff] %v3137
        %3229 = vst [vmem:[%s520 + $0x288] sm:$0xff] %v3138
        %3230 = vst [vmem:[%s520 + $0x290] sm:$0xff] %v3139
        %3231 = vst.msk [vmem:[%s520 + $0x298] sm:$0xff] %vm1073, %v3140
        %3232 = vst [vmem:[%s520 + $0x2a0] sm:$0xff] %v3141
        %3233 = vst [vmem:[%s520 + $0x2a8] sm:$0xff] %v3142
        %3234 = vst [vmem:[%s520 + $0x2b0] sm:$0xff] %v3143
        %3235 = vst [vmem:[%s520 + $0x2b8] sm:$0xff] %v3144
        %3236 = vst [vmem:[%s520 + $0x2c0] sm:$0xff] %v3145
        %3237 = vst [vmem:[%s520 + $0x2c8] sm:$0xff] %v3146
        %3238 = vst.msk [vmem:[%s520 + $0x2d0] sm:$0xff] %vm1073, %v3147
        %s3239 = sand.u32 %s360, 1
        %s3240 = scalar_lea.sflag [#allocation4], %s3239
        %s3241 = sand.u32 %s360, 1
        %s3242 = smul.addr %s3241, 728
        %s3243 = scalar_lea.vmem [#allocation5], %s3242
        // Predicated region
        $region85: #{autoencoder_forward.1} parent=79 // pred_check
          %p3244 = pneg %p370
        $region86: #{autoencoder_forward.1} parent=79 // pred_check_branch
          %3246 = sbr.rel (%p3244) target = $region88
        $region87: #{autoencoder_forward.1} parent=79 // pred_region
          %s3247 = smul.u32 13, %s32
          %s3248 = ssub.s32 25, %s3247
          %p3249 = scmp.lt.s32.totalorder %s3248, 13
          %s3250 = scalar_select %p3249, %s3248, 13
          %s3251 = smul.u32 128, %s3250
          %s3252 = smul.u32 %s3251, 7
          %s3254 = ssub.s32 11648, %s3252
          %3255 = vsyncadd %s3240, %s3254
          %p3256 = scmp.ne.s32.totalorder 0, %s3252
          %s3257 = smul.addr %s3247, 7
          %s3258 = smul.addr %s3257, 128
          %s3259 = scalar_lea.hbm %s15, %s3258
          %s3260 = smul.u32 56, %s3250
          %s3261 = sshll.u32 %s3243, 4
          %s3262 = int_to_ptr.vmem [resolvable:$true] %s3261
          %s3263 = sshll.u32 %s3260, 4
          %3267 = dma.vmem_to_hbm [thread:$0]  (%p3256), %s3262, %s3263, %s3259, %s3240, 896, 896, 56
        $region88: #{autoencoder_forward.1} parent=79 // pred_fallthru
          _
      $region80: #{autoencoder_forward.1} parent=5 // pred_fallthru
        _
      %p3268 = scmp.le.s32.totalorder 2, %s27
      // Predicated region
      $region89: #{autoencoder_forward.1} parent=5 // pred_check
        %p3269 = pneg %p3268
      $region90: #{autoencoder_forward.1} parent=5 // pred_check_branch
        %3271 = sbr.rel (%p3269) target = $region92
      $region91: #{autoencoder_forward.1} parent=5 // pred_region
        %s3272 = ssub.s32 %s27, 2
        // Predicated region
        $region93: #{autoencoder_forward.1} parent=91 // pred_check
          %p3273 = pneg %p376
        $region94: #{autoencoder_forward.1} parent=91 // pred_check_branch
          %3275 = sbr.rel (%p3273) target = $region96
        $region95: #{autoencoder_forward.1} parent=91 // pred_region
          %s3276 = sand.u32 %s361, 1
          %s3277 = scalar_lea.sflag [#allocation4], %s3276
          %s3278 = sand.u32 %s361, 1
          %s3279 = smul.addr %s3278, 728
          %s3280 = scalar_lea.vmem [#allocation5], %s3279
          %3281 = dma.done %s3277, 11648
        $region96: #{autoencoder_forward.1} parent=91 // pred_fallthru
          _
      $region92: #{autoencoder_forward.1} parent=5 // pred_fallthru
        _
    $region6: #{autoencoder_forward.1} parent=1 // loop_footer
      %s31 = sadd.s32 1, %s27
    $region7: #{autoencoder_forward.1} parent=1 // loop_footer_branch
      %26 = sbr.rel target = $region3
    $region8: #{autoencoder_forward.1} parent=1 // loop_exit
      _
    %3282 = vsyncpa [#allocation3], 1
    %s3283 = scalar_lea.sflag [#allocation3], 1
    %3284 = vsyncpa %s3283, 1
    %3285 = vsyncpa [#allocation4], 1
    %s3286 = scalar_lea.sflag [#allocation4], 1
    %3287 = vsyncpa %s3286, 1

</llo_original>
